<compile_context>
chip_gen: v7x
topology: tpu7x:2x2x1
jax: 0.10.0
libtpu: 0.0.40
codegen_flags: <defaults>
</compile_context>

<pallas_src>
import functools

import numpy as np
import jax
import jax.numpy as jnp
from jax import lax
from jax.experimental import pallas as pl
from jax.experimental.pallas import tpu as pltpu

# ---------------- model hyper-params (small, consistent with the module) -----
D           = 768     # CLIP key/emb dim (emb_d == key_dim == 768)
NUM_CLASSES = 10
N_TASKS     = 2       # prompt_param[0]
POOL        = 8       # prompt_param[1][0]  (e_pool_size)
P_LENGTH    = 8       # prompt_param[1][1]  (e_p_length)
TASK_COUNT  = 0
B           = 2       # batch

_DN_LAST = (((1,), (1,)), ((), ()))   # contract last axis of both operands (no .T)
_EPS2    = 1e-24                      # (torch F.normalize eps=1e-12 on the norm)^2


# ============================ fused Pallas kernel =============================

def _clipzoo_kernel(scale_ref, xq_ref, a_ref, k_ref, p_ref, img_ref, txt_ref,
                    pout_ref, logits_ref, *, bsz, n_cls):
    """Fused CodaPrompt (eval path) + CLIP logits head.

    scale : (1,1) SMEM   raw logit_scale parameter (exp taken in-kernel)
    xq    : (B, D)  f32  text-query features q
    A, K  : (Kp, D) f32  attention / key prompts (already sliced to [0:f])
    p     : (Kp, L*D) bf16  prompt pool, flattened over (length, emb)
    img   : (B, D)  f32  image features (pre-normalization)
    txt   : (B*N, D) f32 text features, flat (pre-normalization)
    pout  : (B, L*D) bf16  P_ = einsum('bk,kld->bld', aq_k, p), flattened
    logits: (B, N)  f32  logit_scale.exp() * <normalize(img), normalize(txt)>
    """
    ones_row = jnp.ones((1, D), jnp.float32)   # for MXU-based row-norm^2 reductions

    # ---------------- CodaPrompt composition ----------------
    xq = xq_ref[...]                       # (B, D)
    A  = a_ref[...]                        # (Kp, D)
    K  = k_ref[...]                        # (Kp, D)

    # n_K = F.normalize(K, dim=1): norm^2 via MXU dot against ones, rsqrt on EUP.
    k_norm2 = lax.dot_general(K * K, ones_row, _DN_LAST,
                              preferred_element_type=jnp.float32)     # (Kp, 1)
    n_K = K * lax.rsqrt(jnp.maximum(k_norm2, _EPS2))

    # a_querry[b,k,d] = xq[b,d] * A[k,d] ; q = normalize(a_querry, dim=2)
    # aq_k[b,k] = sum_d q[b,k,d] * n_K[k,d]
    #           = (xq . (A*n_K)[k]) * rsqrt(max(||xq[b]*A[k]||^2, eps^2))
    numer  = lax.dot_general(xq, A * n_K, _DN_LAST,
                             preferred_element_type=jnp.float32)      # (B, Kp)
    denom2 = lax.dot_general(xq * xq, A * A, _DN_LAST,
                             preferred_element_type=jnp.float32)      # (B, Kp)
    aq_k = numer * lax.rsqrt(jnp.maximum(denom2, _EPS2))              # (B, Kp)

    # P_ = einsum('bk,kld->bld', aq_k, p) as one lane-dense (B, L*D) MXU matmul.
    # p already bf16 in HBM; casting aq_k is a single vreg.  f32 accumulation.
    pout = lax.dot_general(aq_k.astype(jnp.bfloat16), p_ref[...],
                           (((1,), (0,)), ((), ())),
                           preferred_element_type=jnp.float32)        # (B, L*D)
    pout_ref[...] = pout.astype(pout_ref.dtype)

    # ---------------- CLIP logits head (normalize AFTER the matmul) ----------
    img = img_ref[...]                     # (B, D)
    txt = txt_ref[...]                     # (B*N, D) flat, lane-dense

    # raw all-pairs similarity on the MXU; norm^2 vectors via MXU dots with ones.
    sim_all = lax.dot_general(img, txt, _DN_LAST,
                              preferred_element_type=jnp.float32)     # (B, B*N)
    img_norm2 = lax.dot_general(img * img, ones_row, _DN_LAST,
                                preferred_element_type=jnp.float32)   # (B, 1)
    txt_norm2 = lax.dot_general(ones_row, txt * txt, _DN_LAST,
                                preferred_element_type=jnp.float32)   # (1, B*N)

    # block-diagonal mask: keep sim[b, j] only for j in [b*n_cls, (b+1)*n_cls)
    bn  = bsz * n_cls
    row = lax.broadcasted_iota(jnp.int32, (bsz, bn), 0)
    col = lax.broadcasted_iota(jnp.int32, (bsz, bn), 1)
    blk = (col >= row * n_cls) & (col < (row + 1) * n_cls)

    inv_txt = lax.rsqrt(jnp.maximum(txt_norm2, _EPS2))                # (1, B*N)
    scaled = jnp.where(blk, sim_all * inv_txt, 0.0)                   # (B, B*N)

    # constant selector S[j, c] = 1 iff j % n_cls == c : one tiny MXU push
    jj = lax.broadcasted_iota(jnp.int32, (bn, n_cls), 0)
    cc = lax.broadcasted_iota(jnp.int32, (bn, n_cls), 1)
    sel = ((jj % n_cls) == cc).astype(jnp.float32)                    # (B*N, N)

    logits_blk = lax.dot_general(scaled, sel, (((1,), (0,)), ((), ())),
                                 preferred_element_type=jnp.float32)  # (B, N)

    scale = jnp.exp(scale_ref[0, 0])
    logits_ref[...] = (scale * lax.rsqrt(jnp.maximum(img_norm2, _EPS2))
                       * logits_blk)


# ============================ wrapper =========================================

def clipzoo_forward(x, img_fea, q_text_fea, txt_fea_flat, K0, A0, P0, logit_scale):
    """ClipZoo.forward with prompt_flag='coda', train=False (single fused call)."""
    bsz = x.shape[0]
    n_cls = txt_fea_flat.shape[0] // bsz

    # --- CodaPrompt eval slicing: [0:f] ---
    pt = POOL // N_TASKS
    f = (TASK_COUNT + 1) * pt
    K, A, p = K0[:f], A0[:f], P0[:f]
    kp, length, emb = p.shape
    # prompt pool lives in HBM as bf16 (largest input; halves its DMA bytes)
    p2 = p.reshape(kp, length * emb).astype(jnp.bfloat16)
    scale = jnp.asarray(logit_scale, jnp.float32).reshape(1, 1)

    kernel = functools.partial(_clipzoo_kernel, bsz=bsz, n_cls=n_cls)

    # Single-shot call: no grid -> no pipeline prologue/epilogue, no double
    # buffering.  All refs are whole arrays resident in VMEM (~0.2 MiB total).
    p_out, logits = pl.pallas_call(
        kernel,
        out_shape=(jax.ShapeDtypeStruct((bsz, length * emb), jnp.bfloat16),
                   jax.ShapeDtypeStruct((bsz, n_cls), jnp.float32)),
        in_specs=[
            pl.BlockSpec(memory_space=pltpu.MemorySpace.SMEM),   # logit_scale
            pl.BlockSpec(memory_space=pltpu.MemorySpace.VMEM),   # q (text query)
            pl.BlockSpec(memory_space=pltpu.MemorySpace.VMEM),   # A
            pl.BlockSpec(memory_space=pltpu.MemorySpace.VMEM),   # K
            pl.BlockSpec(memory_space=pltpu.MemorySpace.VMEM),   # p (flattened, bf16)
            pl.BlockSpec(memory_space=pltpu.MemorySpace.VMEM),   # image features
            pl.BlockSpec(memory_space=pltpu.MemorySpace.VMEM),   # text features (flat)
        ],
        out_specs=(
            pl.BlockSpec(memory_space=pltpu.MemorySpace.VMEM),   # P_ (flat, bf16)
            pl.BlockSpec(memory_space=pltpu.MemorySpace.VMEM),   # logits
        ),
    )(scale, q_text_fea, A, K, p2, img_fea, txt_fea_flat)

    P_ = p_out.reshape(bsz, length, emb)
    i = length // 2
    Ek, Ev = P_[:, :i, :], P_[:, i:, :]
    # TODO(synk): the pretrained CLIP text encoder that consumes (Ek, Ev) is a
    # checkpoint-loaded ViT-L/14 transformer and is not reproduced; txt_fea is a
    # synthetic stand-in for its output.
    return logits, (Ek, Ev)


# ============================ parameter init ==================================

def gram_schmidt_init(key, pool, dim, n_tasks):
    """Matches CodaPrompt.gram_schmidt at task_count==0: only the first
    pool//n_tasks rows are random orthonormal vectors, the rest stay zero."""
    pt = pool // n_tasks
    v = jax.random.normal(key, (dim, pt), dtype=jnp.float32)
    q, _ = jnp.linalg.qr(v)                     # (dim, pt) orthonormal columns
    out = jnp.zeros((pool, dim), jnp.float32)
    return out.at[:pt].set(q.T)


# ============================ reference (plain numpy) =========================

def _reference(img_fea, q_text_fea, txt_fea_flat, K0, A0, P0, logit_scale, bsz):
    pt = POOL // N_TASKS
    f = (TASK_COUNT + 1) * pt
    K, A, p = K0[:f], A0[:f], P0[:f]

    a_querry = q_text_fea[:, None, :] * A[None, :, :]
    n_K = K / np.maximum(np.linalg.norm(K, axis=1, keepdims=True), 1e-12)
    q = a_querry / np.maximum(
        np.linalg.norm(a_querry, axis=2, keepdims=True), 1e-12)
    aq_k = np.einsum('bkd,kd->bk', q, n_K)
    P_ = np.einsum('bk,kld->bld', aq_k, p)
    i = P_LENGTH // 2
    Ek_ref, Ev_ref = P_[:, :i, :], P_[:, i:, :]

    img_n = img_fea / np.maximum(
        np.linalg.norm(img_fea, axis=-1, keepdims=True), 1e-12)
    txt = txt_fea_flat.reshape(bsz, -1, D)
    txt_n = txt / np.maximum(np.linalg.norm(txt, axis=-1, keepdims=True), 1e-12)
    logits_ref = np.exp(logit_scale) * np.sum(img_n[:, None, :] * txt_n, axis=-1)
    return logits_ref, Ek_ref, Ev_ref


# ============================ main ============================================

if __name__ == "__main__":
    key = jax.random.PRNGKey(0)
    k_img, k_x, k_q, k_txt, k_K, k_A, k_P = jax.random.split(key, 7)

    # input images (NCHW; only the batch dim is consumed past the frozen encoder)
    x = jax.random.normal(k_x, (B, 3, 16, 16), dtype=jnp.float32)

    # TODO(synk): clip.encode_image / clip.encode_text / tokenize require the
    # pretrained ViT-L/14 checkpoint + BPE vocab; deterministic synthetic
    # encoder outputs are used instead.
    img_fea      = jax.random.normal(k_img, (B, D), dtype=jnp.float32)
    q_text_fea   = jax.random.normal(k_q, (B, D), dtype=jnp.float32)      # q
    txt_fea_flat = jax.random.normal(k_txt, (B * NUM_CLASSES, D),
                                     dtype=jnp.float32)                   # txt_fea

    # CodaPrompt parameters (deterministic, matching __init__ gram_schmidt)
    K0 = gram_schmidt_init(k_K, POOL, D, N_TASKS)
    A0 = gram_schmidt_init(k_A, POOL, D, N_TASKS)
    P0 = gram_schmidt_init(k_P, POOL, P_LENGTH * D, N_TASKS).reshape(
        POOL, P_LENGTH, D)
    logit_scale = jnp.float32(np.log(1.0 / 0.07))       # CLIP init value

    out1, (Ek, Ev) = clipzoo_forward(x, img_fea, q_text_fea, txt_fea_flat,
                                     K0, A0, P0, logit_scale)
    out1 = jax.block_until_ready(out1)
    Ek = jax.block_until_ready(Ek)
    Ev = jax.block_until_ready(Ev)

    # correctness check vs. plain-numpy reference
    logits_ref, Ek_ref, Ev_ref = _reference(
        np.asarray(img_fea), np.asarray(q_text_fea), np.asarray(txt_fea_flat),
        np.asarray(K0), np.asarray(A0), np.asarray(P0),
        float(logit_scale), B)

    np.testing.assert_allclose(np.asarray(out1), logits_ref,
                               rtol=5e-2, atol=5e-2)
    np.testing.assert_allclose(np.asarray(Ek).astype(np.float32), Ek_ref,
                               rtol=5e-2, atol=5e-2)
    np.testing.assert_allclose(np.asarray(Ev).astype(np.float32), Ev_ref,
                               rtol=5e-2, atol=5e-2)

    assert out1.shape == (B, NUM_CLASSES)
    assert Ek.shape == (B, P_LENGTH // 2, D) and Ev.shape == (B, P_LENGTH // 2, D)

    print("KERNEL_OK")
</pallas_src>

<mosaic_0001>
module attributes {stable_mosaic.version = 11 : i64} {
  func.func @_clipzoo_kernel(%arg0: memref<1x1xf32, #tpu.memory_space<smem>>, %arg1: memref<2x768xf32, #tpu.memory_space<vmem>>, %arg2: memref<4x768xf32, #tpu.memory_space<vmem>>, %arg3: memref<4x768xf32, #tpu.memory_space<vmem>>, %arg4: memref<4x6144xbf16, #tpu.memory_space<vmem>>, %arg5: memref<2x768xf32, #tpu.memory_space<vmem>>, %arg6: memref<20x768xf32, #tpu.memory_space<vmem>>, %arg7: memref<2x6144xbf16, #tpu.memory_space<vmem>>, %arg8: memref<2x10xf32, #tpu.memory_space<vmem>>) attributes {dimension_semantics = [], scalar_prefetch = 0 : i64, scratch_operands = 0 : i64, tpu.core_type = #tpu.core_type<tc>} {
    %cst = arith.constant 1.000000e+00 : f32
    %0 = vector.broadcast %cst : f32 to vector<1x768xf32>
    %c0 = arith.constant 0 : index
    %c0_0 = arith.constant 0 : index
    %1 = vector.load %arg1[%c0, %c0_0] : memref<2x768xf32, #tpu.memory_space<vmem>>, vector<2x768xf32>
    %c0_1 = arith.constant 0 : index
    %c0_2 = arith.constant 0 : index
    %2 = vector.load %arg2[%c0_1, %c0_2] : memref<4x768xf32, #tpu.memory_space<vmem>>, vector<4x768xf32>
    %c0_3 = arith.constant 0 : index
    %c0_4 = arith.constant 0 : index
    %3 = vector.load %arg3[%c0_3, %c0_4] : memref<4x768xf32, #tpu.memory_space<vmem>>, vector<4x768xf32>
    %4 = arith.mulf %3, %3 : vector<4x768xf32>
    %cst_5 = arith.constant dense<0.000000e+00> : vector<4x1xf32>
    %5 = tpu.matmul %4, %0, %cst_5 {dimension_numbers = #tpu.dot_dimension_numbers<[1], [1], [0], [0], [0, 0, 1, 0], [], []>} : vector<4x768xf32>, vector<1x768xf32>, vector<4x1xf32> -> vector<4x1xf32>
    %cst_6 = arith.constant 1.000000e-24 : f32
    %6 = vector.broadcast %cst_6 : f32 to vector<4x1xf32>
    %7 = arith.maximumf %5, %6 : vector<4x1xf32>
    %8 = math.rsqrt %7 : vector<4x1xf32>
    %9 = vector.broadcast %8 : vector<4x1xf32> to vector<4x768xf32>
    %10 = arith.mulf %3, %9 : vector<4x768xf32>
    %11 = arith.mulf %2, %10 : vector<4x768xf32>
    %cst_7 = arith.constant dense<0.000000e+00> : vector<2x4xf32>
    %12 = tpu.matmul %1, %11, %cst_7 {dimension_numbers = #tpu.dot_dimension_numbers<[1], [1], [0], [0], [0, 0, 1, 0], [], []>} : vector<2x768xf32>, vector<4x768xf32>, vector<2x4xf32> -> vector<2x4xf32>
    %13 = arith.mulf %1, %1 : vector<2x768xf32>
    %14 = arith.mulf %2, %2 : vector<4x768xf32>
    %cst_8 = arith.constant dense<0.000000e+00> : vector<2x4xf32>
    %15 = tpu.matmul %13, %14, %cst_8 {dimension_numbers = #tpu.dot_dimension_numbers<[1], [1], [0], [0], [0, 0, 1, 0], [], []>} : vector<2x768xf32>, vector<4x768xf32>, vector<2x4xf32> -> vector<2x4xf32>
    %cst_9 = arith.constant 1.000000e-24 : f32
    %16 = vector.broadcast %cst_9 : f32 to vector<2x4xf32>
    %17 = arith.maximumf %15, %16 : vector<2x4xf32>
    %18 = math.rsqrt %17 : vector<2x4xf32>
    %19 = arith.mulf %12, %18 : vector<2x4xf32>
    %20 = arith.truncf %19 : vector<2x4xf32> to vector<2x4xbf16>
    %c0_10 = arith.constant 0 : index
    %c0_11 = arith.constant 0 : index
    %21 = vector.load %arg4[%c0_10, %c0_11] : memref<4x6144xbf16, #tpu.memory_space<vmem>>, vector<4x6144xbf16>
    %cst_12 = arith.constant dense<0.000000e+00> : vector<2x6144xf32>
    %22 = tpu.matmul %20, %21, %cst_12 {dimension_numbers = #tpu.dot_dimension_numbers<[1], [0], [0], [1], [0, 0, 1, 1], [], []>} : vector<2x4xbf16>, vector<4x6144xbf16>, vector<2x6144xf32> -> vector<2x6144xf32>
    %23 = arith.truncf %22 : vector<2x6144xf32> to vector<2x6144xbf16>
    %c0_13 = arith.constant 0 : index
    %c0_14 = arith.constant 0 : index
    %24 = vector.load %arg7[%c0_13, %c0_14] : memref<2x6144xbf16, #tpu.memory_space<vmem>>, vector<2x6144xbf16>
    tpu.vector_store %arg7[%c0_13, %c0_14], %23 {strides = array<i32>} : memref<2x6144xbf16, #tpu.memory_space<vmem>>, vector<2x6144xbf16>,
    %c0_15 = arith.constant 0 : index
    %c0_16 = arith.constant 0 : index
    %25 = vector.load %arg5[%c0_15, %c0_16] : memref<2x768xf32, #tpu.memory_space<vmem>>, vector<2x768xf32>
    %c0_17 = arith.constant 0 : index
    %c0_18 = arith.constant 0 : index
    %26 = vector.load %arg6[%c0_17, %c0_18] : memref<20x768xf32, #tpu.memory_space<vmem>>, vector<20x768xf32>
    %cst_19 = arith.constant dense<0.000000e+00> : vector<2x20xf32>
    %27 = tpu.matmul %25, %26, %cst_19 {dimension_numbers = #tpu.dot_dimension_numbers<[1], [1], [0], [0], [0, 0, 1, 0], [], []>} : vector<2x768xf32>, vector<20x768xf32>, vector<2x20xf32> -> vector<2x20xf32>
    %28 = arith.mulf %25, %25 : vector<2x768xf32>
    %cst_20 = arith.constant dense<0.000000e+00> : vector<2x1xf32>
    %29 = tpu.matmul %28, %0, %cst_20 {dimension_numbers = #tpu.dot_dimension_numbers<[1], [1], [0], [0], [0, 0, 1, 0], [], []>} : vector<2x768xf32>, vector<1x768xf32>, vector<2x1xf32> -> vector<2x1xf32>
    %30 = arith.mulf %26, %26 : vector<20x768xf32>
    %cst_21 = arith.constant dense<0.000000e+00> : vector<1x20xf32>
    %31 = tpu.matmul %0, %30, %cst_21 {dimension_numbers = #tpu.dot_dimension_numbers<[1], [1], [0], [0], [0, 0, 1, 0], [], []>} : vector<1x768xf32>, vector<20x768xf32>, vector<1x20xf32> -> vector<1x20xf32>
    %32 = tpu.iota {dimensions = array<i32: 0>} : vector<2x20xi32>
    %33 = tpu.iota {dimensions = array<i32: 1>} : vector<2x20xi32>
    %c10_i32 = arith.constant 10 : i32
    %34 = vector.broadcast %c10_i32 : i32 to vector<2x20xi32>
    %35 = arith.muli %32, %34 : vector<2x20xi32>
    %36 = arith.cmpi sge, %33, %35 : vector<2x20xi32>
    %c1_i32 = arith.constant 1 : i32
    %37 = vector.broadcast %c1_i32 : i32 to vector<2x20xi32>
    %38 = arith.addi %32, %37 : vector<2x20xi32>
    %c10_i32_22 = arith.constant 10 : i32
    %39 = vector.broadcast %c10_i32_22 : i32 to vector<2x20xi32>
    %40 = arith.muli %38, %39 : vector<2x20xi32>
    %41 = arith.cmpi slt, %33, %40 : vector<2x20xi32>
    %42 = arith.andi %36, %41 : vector<2x20xi1>
    %cst_23 = arith.constant 1.000000e-24 : f32
    %43 = vector.broadcast %cst_23 : f32 to vector<1x20xf32>
    %44 = arith.maximumf %31, %43 : vector<1x20xf32>
    %45 = math.rsqrt %44 : vector<1x20xf32>
    %46 = vector.broadcast %45 : vector<1x20xf32> to vector<2x20xf32>
    %47 = arith.mulf %27, %46 : vector<2x20xf32>
    %cst_24 = arith.constant 0.000000e+00 : f32
    %48 = vector.broadcast %cst_24 : f32 to vector<2x20xf32>
    %49 = arith.select %42, %47, %48 : vector<2x20xi1>, vector<2x20xf32>
    %50 = tpu.iota {dimensions = array<i32: 0>} : vector<20x10xi32>
    %51 = tpu.iota {dimensions = array<i32: 1>} : vector<20x10xi32>
    %c10_i32_25 = arith.constant 10 : i32
    %c0_i32 = arith.constant 0 : i32
    %52 = arith.cmpi eq, %c10_i32_25, %c0_i32 : i32
    %c1_i32_26 = arith.constant 1 : i32
    %53 = arith.select %52, %c1_i32_26, %c10_i32_25 : i32
    %54 = vector.broadcast %53 : i32 to vector<20x10xi32>
    %55 = arith.remsi %50, %54 : vector<20x10xi32>
    %c0_i32_27 = arith.constant 0 : i32
    %56 = vector.broadcast %c0_i32_27 : i32 to vector<20x10xi32>
    %57 = arith.cmpi ne, %55, %56 : vector<20x10xi32>
    %c0_i32_28 = arith.constant 0 : i32
    %58 = vector.broadcast %c0_i32_28 : i32 to vector<20x10xi32>
    %59 = arith.cmpi slt, %55, %58 : vector<20x10xi32>
    %c0_i32_29 = arith.constant 0 : i32
    %60 = arith.cmpi slt, %53, %c0_i32_29 : i32
    %61 = vector.broadcast %60 : i1 to vector<20x10xi1>
    %62 = vector.broadcast %61 : vector<20x10xi1> to vector<20x10xi1>
    %63 = arith.xori %59, %62 : vector<20x10xi1>
    %64 = arith.andi %63, %57 : vector<20x10xi1>
    %65 = vector.broadcast %53 : i32 to vector<20x10xi32>
    %66 = arith.addi %55, %65 : vector<20x10xi32>
    %67 = arith.select %64, %66, %55 : vector<20x10xi1>, vector<20x10xi32>
    %68 = arith.cmpi eq, %67, %51 : vector<20x10xi32>
    %69 = arith.extui %68 : vector<20x10xi1> to vector<20x10xi32>
    %70 = arith.sitofp %69 : vector<20x10xi32> to vector<20x10xf32>
    %cst_30 = arith.constant dense<0.000000e+00> : vector<2x10xf32>
    %71 = tpu.matmul %49, %70, %cst_30 {dimension_numbers = #tpu.dot_dimension_numbers<[1], [0], [0], [1], [0, 0, 1, 1], [], []>} : vector<2x20xf32>, vector<20x10xf32>, vector<2x10xf32> -> vector<2x10xf32>
    %c0_31 = arith.constant 0 : index
    %c0_32 = arith.constant 0 : index
    %72 = memref.load %arg0[%c0_31, %c0_32] : memref<1x1xf32, #tpu.memory_space<smem>>
    %73 = math.exp %72 : f32
    %cst_33 = arith.constant 1.000000e-24 : f32
    %74 = vector.broadcast %cst_33 : f32 to vector<2x1xf32>
    %75 = arith.maximumf %29, %74 : vector<2x1xf32>
    %76 = math.rsqrt %75 : vector<2x1xf32>
    %77 = vector.broadcast %73 : f32 to vector<2x1xf32>
    %78 = arith.mulf %77, %76 : vector<2x1xf32>
    %79 = vector.broadcast %78 : vector<2x1xf32> to vector<2x10xf32>
    %80 = arith.mulf %79, %71 : vector<2x10xf32>
    %c0_34 = arith.constant 0 : index
    %c0_35 = arith.constant 0 : index
    %81 = vector.load %arg8[%c0_34, %c0_35] : memref<2x10xf32, #tpu.memory_space<vmem>>, vector<2x10xf32>
    tpu.vector_store %arg8[%c0_34, %c0_35], %80 {strides = array<i32>} : memref<2x10xf32, #tpu.memory_space<vmem>>, vector<2x10xf32>,
    return
  }
}

</mosaic_0001>

<llo_original>
// kernel: tpu_custom_call.1
$region0: #{tpu_custom_call.1}
  #allocation0 [shape = 'u32[]', space=smem, size = 0x4, offset = 0x4, fixed_abs, tag = 'smem constant byte address 0x4 - core index']
  #allocation1 [shape = 'u32[144,128]{1,0:T(1,128)}', space=vmem, size = 0x12000, scoped, tag = 'internal scratch']
  #allocation2 [shape = 'f32[1,1]{1,0:T(1,128)S(6)}', space=smem, size = 0x200, scoped, tag = 'scoped memory for tpu_custom_call.1']
  %s0 = inlined_call_operand.<no memory space> [shape: f32[1,1], index: 0, kind: input, shape index: {}]
  %s1 = inlined_call_operand.hbm [shape: f32[2,768], index: 1, kind: input, shape index: {}]
  %s2 = inlined_call_operand.hbm [shape: f32[4,768], index: 2, kind: input, shape index: {}]
  %s3 = inlined_call_operand.hbm [shape: f32[4,768], index: 3, kind: input, shape index: {}]
  %s4 = inlined_call_operand.hbm [shape: bf16[4,6144], index: 4, kind: input, shape index: {}]
  %s5 = inlined_call_operand.vmem [shape: f32[2,768], index: 5, kind: input, shape index: {}]
  %s6 = inlined_call_operand.hbm [shape: f32[20,768], index: 6, kind: input, shape index: {}]
  %s7 = inlined_call_operand.hbm [shape: bf16[2,6144], index: 7, kind: output, shape index: {0}]
  %s8 = inlined_call_operand.hbm [shape: f32[2,10], index: 8, kind: output, shape index: {1}]
  %9 = xla_tuple %s7, %s8
  %s10 = sld [smem:[#allocation0]]
  $region66: #{tpu_custom_call.1} parent=0
    _
  %s12 = ssub.s32 1, %s10
  %s13 = scalar_select 0, %s12, %s10
  %14 = sst [smem:[#allocation2]] %s0
  $region1: #{tpu_custom_call.1} parent=0
    #allocation3 [shape = 'u8[6144]{0}', space=vmem, size = 0x1800, scoped, tag = 'input window, operand 1, single buffered']
    #allocation4 [shape = 's32[1]{0}', space=sflag, size = 0x4, scoped, tag = 'scoped memory for tpu_custom_call.1']
    #allocation5 [shape = 's32[1]{0}', space=sflag, size = 0x4, scoped, tag = 'scoped memory for tpu_custom_call.1']
    #allocation6 [shape = 'u8[12288]{0}', space=vmem, size = 0x3000, scoped, tag = 'input window, operand 2, single buffered']
    #allocation7 [shape = 's32[1]{0}', space=sflag, size = 0x4, scoped, tag = 'scoped memory for tpu_custom_call.1']
    #allocation8 [shape = 'u8[12288]{0}', space=vmem, size = 0x3000, scoped, tag = 'input window, operand 3, single buffered']
    #allocation9 [shape = 'u8[49152]{0}', space=vmem, size = 0xc000, scoped, tag = 'input window, operand 4, single buffered']
    #allocation10 [shape = 's32[1]{0}', space=sflag, size = 0x4, scoped, tag = 'scoped memory for tpu_custom_call.1']
    #allocation11 [shape = 'u8[73728]{0}', space=vmem, size = 0x12000, scoped, tag = 'input window, operand 6, single buffered']
    #allocation12 [shape = 'u8[24576]{0}', space=vmem, size = 0x6000, scoped, tag = 'output window, operand 0, single buffered']
    #allocation13 [shape = 'u8[1024]{0}', space=vmem, size = 0x400, scoped, tag = 'output window, operand 1, single buffered']
    #allocation14 [shape = 's32[1]{0}', space=sflag, size = 0x4, scoped, tag = 'scoped memory for tpu_custom_call.1']
    %15 = vsyncpa [#allocation4], 0
    %16 = vsyncpa [#allocation7], 0
    %17 = vsyncpa [#allocation10], 0
    %18 = vsyncpa [#allocation5], 0
    %19 = vsyncpa [#allocation14], 0
    // Predicated region
    $region2: #{tpu_custom_call.1} parent=1 // pred_check
      _
    $region3: #{tpu_custom_call.1} parent=1 // pred_check_branch
      %21 = sbr.rel (0) target = $region5
    $region4: #{tpu_custom_call.1} parent=1 // pred_region
      _
    $region5: #{tpu_custom_call.1} parent=1 // pred_fallthru
      _
    // Predicated region
    $region6: #{tpu_custom_call.1} parent=1 // pred_check
      _
    $region7: #{tpu_custom_call.1} parent=1 // pred_check_branch
      %23 = sbr.rel (0) target = $region9
    $region8: #{tpu_custom_call.1} parent=1 // pred_region
      %s25 = ssub.s32 192, 192
      %26 = vsyncadd [#allocation4], %s25
      %s28 = sshll.u32 [#allocation3], 4
      %s29 = int_to_ptr.vmem [resolvable:$true] %s28
      %31 = dma.hbm_to_vmem [thread:$0]  %s1, 192, %s29, [#allocation4]
    $region9: #{tpu_custom_call.1} parent=1 // pred_fallthru
      _
    // Predicated region
    $region10: #{tpu_custom_call.1} parent=1 // pred_check
      _
    $region11: #{tpu_custom_call.1} parent=1 // pred_check_branch
      %33 = sbr.rel (0) target = $region13
    $region12: #{tpu_custom_call.1} parent=1 // pred_region
      %s35 = ssub.s32 384, 384
      %36 = vsyncadd [#allocation7], %s35
      %s38 = sshll.u32 [#allocation6], 4
      %s39 = int_to_ptr.vmem [resolvable:$true] %s38
      %41 = dma.hbm_to_vmem [thread:$0]  %s2, 384, %s39, [#allocation7]
    $region13: #{tpu_custom_call.1} parent=1 // pred_fallthru
      _
    // Predicated region
    $region14: #{tpu_custom_call.1} parent=1 // pred_check
      _
    $region15: #{tpu_custom_call.1} parent=1 // pred_check_branch
      %43 = sbr.rel (0) target = $region17
    $region16: #{tpu_custom_call.1} parent=1 // pred_region
      %s45 = ssub.s32 384, 384
      %46 = vsyncadd [#allocation7], %s45
      %s48 = sshll.u32 [#allocation8], 4
      %s49 = int_to_ptr.vmem [resolvable:$true] %s48
      %51 = dma.hbm_to_vmem [thread:$0]  %s3, 384, %s49, [#allocation7]
    $region17: #{tpu_custom_call.1} parent=1 // pred_fallthru
      _
    // Predicated region
    $region18: #{tpu_custom_call.1} parent=1 // pred_check
      _
    $region19: #{tpu_custom_call.1} parent=1 // pred_check_branch
      %53 = sbr.rel (0) target = $region21
    $region20: #{tpu_custom_call.1} parent=1 // pred_region
      %s55 = ssub.s32 1536, 1536
      %56 = vsyncadd [#allocation10], %s55
      %s58 = sshll.u32 [#allocation9], 4
      %s59 = int_to_ptr.vmem [resolvable:$true] %s58
      %61 = dma.hbm_to_vmem [thread:$0]  %s4, 1536, %s59, [#allocation10]
    $region21: #{tpu_custom_call.1} parent=1 // pred_fallthru
      _
    // Predicated region
    $region22: #{tpu_custom_call.1} parent=1 // pred_check
      _
    $region23: #{tpu_custom_call.1} parent=1 // pred_check_branch
      %63 = sbr.rel (0) target = $region25
    $region24: #{tpu_custom_call.1} parent=1 // pred_region
      _
    $region25: #{tpu_custom_call.1} parent=1 // pred_fallthru
      _
    // Predicated region
    $region26: #{tpu_custom_call.1} parent=1 // pred_check
      _
    $region27: #{tpu_custom_call.1} parent=1 // pred_check_branch
      %65 = sbr.rel (0) target = $region29
    $region28: #{tpu_custom_call.1} parent=1 // pred_region
      %s67 = ssub.s32 2304, 2304
      %68 = vsyncadd [#allocation10], %s67
      %s69 = sshll.u32 [#allocation11], 4
      %s70 = int_to_ptr.vmem [resolvable:$true] %s69
      %75 = dma.hbm_to_vmem [thread:$0]  %s6, 2304, %s70, [#allocation10], 768, 768, 48
    $region29: #{tpu_custom_call.1} parent=1 // pred_fallthru
      _
    // Predicated region
    $region30: #{tpu_custom_call.1} parent=1 // pred_check
      _
    $region31: #{tpu_custom_call.1} parent=1 // pred_check_branch
      %77 = sbr.rel (0) target = $region33
    $region32: #{tpu_custom_call.1} parent=1 // pred_region
      %78 = dma.done [#allocation4], 192
    $region33: #{tpu_custom_call.1} parent=1 // pred_fallthru
      _
    // Predicated region
    $region34: #{tpu_custom_call.1} parent=1 // pred_check
      _
    $region35: #{tpu_custom_call.1} parent=1 // pred_check_branch
      %80 = sbr.rel (0) target = $region37
    $region36: #{tpu_custom_call.1} parent=1 // pred_region
      %81 = dma.done [#allocation7], 384
    $region37: #{tpu_custom_call.1} parent=1 // pred_fallthru
      _
    // Predicated region
    $region38: #{tpu_custom_call.1} parent=1 // pred_check
      _
    $region39: #{tpu_custom_call.1} parent=1 // pred_check_branch
      %83 = sbr.rel (0) target = $region41
    $region40: #{tpu_custom_call.1} parent=1 // pred_region
      %84 = dma.done [#allocation7], 384
    $region41: #{tpu_custom_call.1} parent=1 // pred_fallthru
      _
    // Predicated region
    $region42: #{tpu_custom_call.1} parent=1 // pred_check
      _
    $region43: #{tpu_custom_call.1} parent=1 // pred_check_branch
      %86 = sbr.rel (0) target = $region45
    $region44: #{tpu_custom_call.1} parent=1 // pred_region
      %87 = dma.done [#allocation10], 1536
    $region45: #{tpu_custom_call.1} parent=1 // pred_fallthru
      _
    // Predicated region
    $region46: #{tpu_custom_call.1} parent=1 // pred_check
      _
    $region47: #{tpu_custom_call.1} parent=1 // pred_check_branch
      %89 = sbr.rel (0) target = $region49
    $region48: #{tpu_custom_call.1} parent=1 // pred_region
      %90 = dma.done [#allocation10], 2304
    $region49: #{tpu_custom_call.1} parent=1 // pred_fallthru
      _
    %v92 = vld [vmem:[#allocation3] sm:$0xff]
    %v93 = vld [vmem:[#allocation3 + $0x8] sm:$0xf]
    %v94 = vld [vmem:[#allocation6] sm:$0xff]
    %v95 = vld [vmem:[#allocation6 + $0x8] sm:$0xff]
    %v96 = vld [vmem:[#allocation6 + $0x10] sm:$0xff]
    %v97 = vld [vmem:[#allocation8] sm:$0xff]
    %v98 = vld [vmem:[#allocation8 + $0x8] sm:$0xff]
    %v99 = vld [vmem:[#allocation8 + $0x10] sm:$0xff]
    %v100 = vmul.f32 %v97, %v97
    %v101 = vmul.f32 %v98, %v98
    %v102 = vmul.f32 %v99, %v99
    %v106 = vcombine.high %v100, %v100
    %v107 = vcombine.high %v101, %v101
    %v108 = vcombine.high %v102, %v102
    %vm112 = vcmask 1043456
    %v113 = vsel %vm112, %v100, 0.0
    %v114 = vsel %vm112, %v106, 0.0
    %v115 = vadd.f32 %v113, %v114
    %v116 = vsel %vm112, %v101, 0.0
    %v117 = vadd.f32 %v115, %v116
    %v118 = vsel %vm112, %v107, 0.0
    %v119 = vadd.f32 %v117, %v118
    %v120 = vsel %vm112, %v102, 0.0
    %v121 = vadd.f32 %v119, %v120
    %v122 = vsel %vm112, %v108, 0.0
    %v123 = vadd.f32 %v121, %v122
    %124 = vadd.xlane.f32.xlu0 %v123
    %v125 = vpop.xlane.xlu0 %124
    %v126 = vmax.f32 %v125, 1e-24
    %v127 = vrsqrt.pop %v126
    %v130 = vunpack.c.l.s4 839922192
    %v131 = vunpack.c.0.s8 %v130
    %v132 = vlaneseq
    %v133 = vshrl.u32 %v132, 7
    %v134 = vsub.s32 %v131, %v133
    %v135 = vrot.slane %v127, %v134
    %v137 = vmul.f32 %v97, %v135
    %v138 = vmul.f32 %v98, %v135
    %v139 = vmul.f32 %v99, %v135
    %v140 = vmul.f32 %v94, %v137
    %v141 = vmul.f32 %v95, %v138
    %v142 = vmul.f32 %v96, %v139
    %v145 = vcombine.high %v92, %v92
    %v147 = vunpack.c.l.s4 1983009808
    %v148 = vunpack.c.0.s8 %v147
    %v149 = vlaneseq
    %v150 = vshrl.u32 %v149, 7
    %v151 = vsub.s32 %v148, %v150
    %v152 = vrot.slane %v92, %v151
    %v154 = vunpack.c.l.s4 1983009808
    %v155 = vunpack.c.0.s8 %v154
    %v156 = vlaneseq
    %v157 = vshrl.u32 %v156, 7
    %v158 = vsub.s32 %v155, %v157
    %v159 = vrot.slane %v145, %v158
    %v160 = vcombine.high %v152, %v152
    %v161 = vcombine.high %v159, %v159
    %v163 = vunpack.c.l.s4 1983009808
    %v164 = vunpack.c.0.s8 %v163
    %v165 = vlaneseq
    %v166 = vshrl.u32 %v165, 7
    %v167 = vsub.s32 %v164, %v166
    %v168 = vrot.slane %v93, %v167
    %v169 = vcombine.high %v168, %v168
    %v179 = vcombine.high %v140, %v140
    %v180 = vcombine.high %v141, %v141
    %v181 = vcombine.high %v142, %v142
    %185 = vmatprep.subr.mxu0 %v179
    %186 = vmatpush1.xpose.msra.mxu0 %v140
    %187 = vmatprep.subr.mxu0 0.0
    %188 = vmatpush1.xpose.msra.mxu0 0.0
    %189 = vmatprep.subr.mxu0 0.0
    %190 = vmatpush1.xpose.msra.mxu0 0.0
    %191 = vmatprep.subr.mxu0 0.0
    %192 = vmatpush1.xpose.msra.mxu0 0.0
    %193 = vmatprep.subr.mxu0 0.0
    %194 = vmatpush1.xpose.msra.mxu0 0.0
    %195 = vmatprep.subr.mxu0 0.0
    %196 = vmatpush1.xpose.msra.mxu0 0.0
    %197 = vmatprep.subr.mxu0 0.0
    %198 = vmatpush1.xpose.msra.mxu0 0.0
    %199 = vmatprep.subr.mxu0 0.0
    %200 = vmatpush1.xpose.msra.mxu0 0.0
    %201 = vmatprep.subr.mxu0 0.0
    %202 = vmatpush1.xpose.msra.mxu0 0.0
    %203 = vmatprep.subr.mxu0 0.0
    %204 = vmatpush1.xpose.msra.mxu0 0.0
    %205 = vmatprep.subr.mxu0 0.0
    %206 = vmatpush1.xpose.msra.mxu0 0.0
    %207 = vmatprep.subr.mxu0 0.0
    %208 = vmatpush1.xpose.msra.mxu0 0.0
    %209 = vmatprep.subr.mxu0 0.0
    %210 = vmatpush1.xpose.msra.mxu0 0.0
    %211 = vmatprep.subr.mxu0 0.0
    %212 = vmatpush1.xpose.msra.mxu0 0.0
    %213 = vmatprep.subr.mxu0 0.0
    %214 = vmatpush1.xpose.msra.mxu0 0.0
    %215 = vmatprep.subr.mxu0 0.0
    %216 = vmatpush1.xpose.msra.mxu0 0.0
    %217 = vmatprep.subr.mxu0 0.0
    %218 = vmatpush1.xpose.msra.mxu0 0.0
    %219 = vmatprep.subr.mxu0 0.0
    %220 = vmatpush1.xpose.msra.mxu0 0.0
    %221 = vmatprep.subr.mxu0 0.0
    %222 = vmatpush1.xpose.msra.mxu0 0.0
    %223 = vmatprep.subr.mxu0 0.0
    %224 = vmatpush1.xpose.msra.mxu0 0.0
    %225 = vmatprep.subr.mxu0 0.0
    %226 = vmatpush1.xpose.msra.mxu0 0.0
    %227 = vmatprep.subr.mxu0 0.0
    %228 = vmatpush1.xpose.msra.mxu0 0.0
    %229 = vmatprep.subr.mxu0 0.0
    %230 = vmatpush1.xpose.msra.mxu0 0.0
    %231 = vmatprep.subr.mxu0 0.0
    %232 = vmatpush1.xpose.msra.mxu0 0.0
    %233 = vmatprep.subr.mxu0 0.0
    %234 = vmatpush1.xpose.msra.mxu0 0.0
    %235 = vmatprep.subr.mxu0 0.0
    %236 = vmatpush1.xpose.msra.mxu0 0.0
    %237 = vmatprep.subr.mxu0 0.0
    %238 = vmatpush1.xpose.msra.mxu0 0.0
    %239 = vmatprep.subr.mxu0 0.0
    %240 = vmatpush1.xpose.msra.mxu0 0.0
    %241 = vmatprep.subr.mxu0 0.0
    %242 = vmatpush1.xpose.msra.mxu0 0.0
    %243 = vmatprep.subr.mxu0 0.0
    %244 = vmatpush1.xpose.msra.mxu0 0.0
    %245 = vmatprep.subr.mxu0 0.0
    %246 = vmatpush1.xpose.msra.mxu0 0.0
    %247 = vmatprep.subr.mxu0 0.0
    %248 = vmatpush1.xpose.msra.mxu0 0.0
    %249 = vmatprep.mubr.f32.mxu0 %v160
    %250 = vmatmul.mubr.f32.gmra.mrb[0].mxu0 %v152
    %v251 = vpop.f32.mrb[0].mxu0
    %v252 = vadd.f32 0.0, %v251
    %v253 = vpop.f32.mrb[0].mxu0
    %254 = vdwg.mxu0
    %255 = vmatprep.subr.mxu0 %v180
    %256 = vmatpush1.xpose.msra.mxu0 %v141
    %257 = vmatprep.subr.mxu0 0.0
    %258 = vmatpush1.xpose.msra.mxu0 0.0
    %259 = vmatprep.subr.mxu0 0.0
    %260 = vmatpush1.xpose.msra.mxu0 0.0
    %261 = vmatprep.subr.mxu0 0.0
    %262 = vmatpush1.xpose.msra.mxu0 0.0
    %263 = vmatprep.subr.mxu0 0.0
    %264 = vmatpush1.xpose.msra.mxu0 0.0
    %265 = vmatprep.subr.mxu0 0.0
    %266 = vmatpush1.xpose.msra.mxu0 0.0
    %267 = vmatprep.subr.mxu0 0.0
    %268 = vmatpush1.xpose.msra.mxu0 0.0
    %269 = vmatprep.subr.mxu0 0.0
    %270 = vmatpush1.xpose.msra.mxu0 0.0
    %271 = vmatprep.subr.mxu0 0.0
    %272 = vmatpush1.xpose.msra.mxu0 0.0
    %273 = vmatprep.subr.mxu0 0.0
    %274 = vmatpush1.xpose.msra.mxu0 0.0
    %275 = vmatprep.subr.mxu0 0.0
    %276 = vmatpush1.xpose.msra.mxu0 0.0
    %277 = vmatprep.subr.mxu0 0.0
    %278 = vmatpush1.xpose.msra.mxu0 0.0
    %279 = vmatprep.subr.mxu0 0.0
    %280 = vmatpush1.xpose.msra.mxu0 0.0
    %281 = vmatprep.subr.mxu0 0.0
    %282 = vmatpush1.xpose.msra.mxu0 0.0
    %283 = vmatprep.subr.mxu0 0.0
    %284 = vmatpush1.xpose.msra.mxu0 0.0
    %285 = vmatprep.subr.mxu0 0.0
    %286 = vmatpush1.xpose.msra.mxu0 0.0
    %287 = vmatprep.subr.mxu0 0.0
    %288 = vmatpush1.xpose.msra.mxu0 0.0
    %289 = vmatprep.subr.mxu0 0.0
    %290 = vmatpush1.xpose.msra.mxu0 0.0
    %291 = vmatprep.subr.mxu0 0.0
    %292 = vmatpush1.xpose.msra.mxu0 0.0
    %293 = vmatprep.subr.mxu0 0.0
    %294 = vmatpush1.xpose.msra.mxu0 0.0
    %295 = vmatprep.subr.mxu0 0.0
    %296 = vmatpush1.xpose.msra.mxu0 0.0
    %297 = vmatprep.subr.mxu0 0.0
    %298 = vmatpush1.xpose.msra.mxu0 0.0
    %299 = vmatprep.subr.mxu0 0.0
    %300 = vmatpush1.xpose.msra.mxu0 0.0
    %301 = vmatprep.subr.mxu0 0.0
    %302 = vmatpush1.xpose.msra.mxu0 0.0
    %303 = vmatprep.subr.mxu0 0.0
    %304 = vmatpush1.xpose.msra.mxu0 0.0
    %305 = vmatprep.subr.mxu0 0.0
    %306 = vmatpush1.xpose.msra.mxu0 0.0
    %307 = vmatprep.subr.mxu0 0.0
    %308 = vmatpush1.xpose.msra.mxu0 0.0
    %309 = vmatprep.subr.mxu0 0.0
    %310 = vmatpush1.xpose.msra.mxu0 0.0
    %311 = vmatprep.subr.mxu0 0.0
    %312 = vmatpush1.xpose.msra.mxu0 0.0
    %313 = vmatprep.subr.mxu0 0.0
    %314 = vmatpush1.xpose.msra.mxu0 0.0
    %315 = vmatprep.subr.mxu0 0.0
    %316 = vmatpush1.xpose.msra.mxu0 0.0
    %317 = vmatprep.subr.mxu0 0.0
    %318 = vmatpush1.xpose.msra.mxu0 0.0
    %319 = vmatprep.mubr.f32.mxu0 %v161
    %320 = vmatmul.mubr.f32.gmra.mrb[0].mxu0 %v159
    %v321 = vpop.f32.mrb[0].mxu0
    %v322 = vadd.f32 %v252, %v321
    %v323 = vpop.f32.mrb[0].mxu0
    %324 = vdwg.mxu0
    %325 = vmatprep.subr.mxu0 %v181
    %326 = vmatpush1.xpose.msra.mxu0 %v142
    %327 = vmatprep.subr.mxu0 0.0
    %328 = vmatpush1.xpose.msra.mxu0 0.0
    %329 = vmatprep.subr.mxu0 0.0
    %330 = vmatpush1.xpose.msra.mxu0 0.0
    %331 = vmatprep.subr.mxu0 0.0
    %332 = vmatpush1.xpose.msra.mxu0 0.0
    %333 = vmatprep.subr.mxu0 0.0
    %334 = vmatpush1.xpose.msra.mxu0 0.0
    %335 = vmatprep.subr.mxu0 0.0
    %336 = vmatpush1.xpose.msra.mxu0 0.0
    %337 = vmatprep.subr.mxu0 0.0
    %338 = vmatpush1.xpose.msra.mxu0 0.0
    %339 = vmatprep.subr.mxu0 0.0
    %340 = vmatpush1.xpose.msra.mxu0 0.0
    %341 = vmatprep.subr.mxu0 0.0
    %342 = vmatpush1.xpose.msra.mxu0 0.0
    %343 = vmatprep.subr.mxu0 0.0
    %344 = vmatpush1.xpose.msra.mxu0 0.0
    %345 = vmatprep.subr.mxu0 0.0
    %346 = vmatpush1.xpose.msra.mxu0 0.0
    %347 = vmatprep.subr.mxu0 0.0
    %348 = vmatpush1.xpose.msra.mxu0 0.0
    %349 = vmatprep.subr.mxu0 0.0
    %350 = vmatpush1.xpose.msra.mxu0 0.0
    %351 = vmatprep.subr.mxu0 0.0
    %352 = vmatpush1.xpose.msra.mxu0 0.0
    %353 = vmatprep.subr.mxu0 0.0
    %354 = vmatpush1.xpose.msra.mxu0 0.0
    %355 = vmatprep.subr.mxu0 0.0
    %356 = vmatpush1.xpose.msra.mxu0 0.0
    %357 = vmatprep.subr.mxu0 0.0
    %358 = vmatpush1.xpose.msra.mxu0 0.0
    %359 = vmatprep.subr.mxu0 0.0
    %360 = vmatpush1.xpose.msra.mxu0 0.0
    %361 = vmatprep.subr.mxu0 0.0
    %362 = vmatpush1.xpose.msra.mxu0 0.0
    %363 = vmatprep.subr.mxu0 0.0
    %364 = vmatpush1.xpose.msra.mxu0 0.0
    %365 = vmatprep.subr.mxu0 0.0
    %366 = vmatpush1.xpose.msra.mxu0 0.0
    %367 = vmatprep.subr.mxu0 0.0
    %368 = vmatpush1.xpose.msra.mxu0 0.0
    %369 = vmatprep.subr.mxu0 0.0
    %370 = vmatpush1.xpose.msra.mxu0 0.0
    %371 = vmatprep.subr.mxu0 0.0
    %372 = vmatpush1.xpose.msra.mxu0 0.0
    %373 = vmatprep.subr.mxu0 0.0
    %374 = vmatpush1.xpose.msra.mxu0 0.0
    %375 = vmatprep.subr.mxu0 0.0
    %376 = vmatpush1.xpose.msra.mxu0 0.0
    %377 = vmatprep.subr.mxu0 0.0
    %378 = vmatpush1.xpose.msra.mxu0 0.0
    %379 = vmatprep.subr.mxu0 0.0
    %380 = vmatpush1.xpose.msra.mxu0 0.0
    %381 = vmatprep.subr.mxu0 0.0
    %382 = vmatpush1.xpose.msra.mxu0 0.0
    %383 = vmatprep.subr.mxu0 0.0
    %384 = vmatpush1.xpose.msra.mxu0 0.0
    %385 = vmatprep.subr.mxu0 0.0
    %386 = vmatpush1.xpose.msra.mxu0 0.0
    %387 = vmatprep.subr.mxu0 0.0
    %388 = vmatpush1.xpose.msra.mxu0 0.0
    %389 = vmatprep.mubr.f32.mxu0 %v169
    %390 = vmatmul.mubr.f32.gmra.mrb[0].mxu0 %v168
    %v391 = vpop.f32.mrb[0].mxu0
    %v392 = vadd.f32 %v322, %v391
    %v393 = vpop.f32.mrb[0].mxu0
    %394 = vdwg.mxu0
    %v395 = vmul.f32 %v92, %v92
    %v396 = vmul.f32 %v93, %v93
    %v397 = vmul.f32 %v94, %v94
    %v398 = vmul.f32 %v95, %v95
    %v399 = vmul.f32 %v96, %v96
    %v402 = vcombine.high %v395, %v395
    %v404 = vunpack.c.l.s4 1983009808
    %v405 = vunpack.c.0.s8 %v404
    %v406 = vlaneseq
    %v407 = vshrl.u32 %v406, 7
    %v408 = vsub.s32 %v405, %v407
    %v409 = vrot.slane %v395, %v408
    %v411 = vunpack.c.l.s4 1983009808
    %v412 = vunpack.c.0.s8 %v411
    %v413 = vlaneseq
    %v414 = vshrl.u32 %v413, 7
    %v415 = vsub.s32 %v412, %v414
    %v416 = vrot.slane %v402, %v415
    %v417 = vcombine.high %v409, %v409
    %v418 = vcombine.high %v416, %v416
    %v420 = vunpack.c.l.s4 1983009808
    %v421 = vunpack.c.0.s8 %v420
    %v422 = vlaneseq
    %v423 = vshrl.u32 %v422, 7
    %v424 = vsub.s32 %v421, %v423
    %v425 = vrot.slane %v396, %v424
    %v426 = vcombine.high %v425, %v425
    %v436 = vcombine.high %v397, %v397
    %v437 = vcombine.high %v398, %v398
    %v438 = vcombine.high %v399, %v399
    %442 = vmatprep.subr.mxu0 %v436
    %443 = vmatpush1.xpose.msra.mxu0 %v397
    %444 = vmatprep.subr.mxu0 0.0
    %445 = vmatpush1.xpose.msra.mxu0 0.0
    %446 = vmatprep.subr.mxu0 0.0
    %447 = vmatpush1.xpose.msra.mxu0 0.0
    %448 = vmatprep.subr.mxu0 0.0
    %449 = vmatpush1.xpose.msra.mxu0 0.0
    %450 = vmatprep.subr.mxu0 0.0
    %451 = vmatpush1.xpose.msra.mxu0 0.0
    %452 = vmatprep.subr.mxu0 0.0
    %453 = vmatpush1.xpose.msra.mxu0 0.0
    %454 = vmatprep.subr.mxu0 0.0
    %455 = vmatpush1.xpose.msra.mxu0 0.0
    %456 = vmatprep.subr.mxu0 0.0
    %457 = vmatpush1.xpose.msra.mxu0 0.0
    %458 = vmatprep.subr.mxu0 0.0
    %459 = vmatpush1.xpose.msra.mxu0 0.0
    %460 = vmatprep.subr.mxu0 0.0
    %461 = vmatpush1.xpose.msra.mxu0 0.0
    %462 = vmatprep.subr.mxu0 0.0
    %463 = vmatpush1.xpose.msra.mxu0 0.0
    %464 = vmatprep.subr.mxu0 0.0
    %465 = vmatpush1.xpose.msra.mxu0 0.0
    %466 = vmatprep.subr.mxu0 0.0
    %467 = vmatpush1.xpose.msra.mxu0 0.0
    %468 = vmatprep.subr.mxu0 0.0
    %469 = vmatpush1.xpose.msra.mxu0 0.0
    %470 = vmatprep.subr.mxu0 0.0
    %471 = vmatpush1.xpose.msra.mxu0 0.0
    %472 = vmatprep.subr.mxu0 0.0
    %473 = vmatpush1.xpose.msra.mxu0 0.0
    %474 = vmatprep.subr.mxu0 0.0
    %475 = vmatpush1.xpose.msra.mxu0 0.0
    %476 = vmatprep.subr.mxu0 0.0
    %477 = vmatpush1.xpose.msra.mxu0 0.0
    %478 = vmatprep.subr.mxu0 0.0
    %479 = vmatpush1.xpose.msra.mxu0 0.0
    %480 = vmatprep.subr.mxu0 0.0
    %481 = vmatpush1.xpose.msra.mxu0 0.0
    %482 = vmatprep.subr.mxu0 0.0
    %483 = vmatpush1.xpose.msra.mxu0 0.0
    %484 = vmatprep.subr.mxu0 0.0
    %485 = vmatpush1.xpose.msra.mxu0 0.0
    %486 = vmatprep.subr.mxu0 0.0
    %487 = vmatpush1.xpose.msra.mxu0 0.0
    %488 = vmatprep.subr.mxu0 0.0
    %489 = vmatpush1.xpose.msra.mxu0 0.0
    %490 = vmatprep.subr.mxu0 0.0
    %491 = vmatpush1.xpose.msra.mxu0 0.0
    %492 = vmatprep.subr.mxu0 0.0
    %493 = vmatpush1.xpose.msra.mxu0 0.0
    %494 = vmatprep.subr.mxu0 0.0
    %495 = vmatpush1.xpose.msra.mxu0 0.0
    %496 = vmatprep.subr.mxu0 0.0
    %497 = vmatpush1.xpose.msra.mxu0 0.0
    %498 = vmatprep.subr.mxu0 0.0
    %499 = vmatpush1.xpose.msra.mxu0 0.0
    %500 = vmatprep.subr.mxu0 0.0
    %501 = vmatpush1.xpose.msra.mxu0 0.0
    %502 = vmatprep.subr.mxu0 0.0
    %503 = vmatpush1.xpose.msra.mxu0 0.0
    %504 = vmatprep.subr.mxu0 0.0
    %505 = vmatpush1.xpose.msra.mxu0 0.0
    %506 = vmatprep.mubr.f32.mxu0 %v417
    %507 = vmatmul.mubr.f32.gmra.mrb[0].mxu0 %v409
    %v508 = vpop.f32.mrb[0].mxu0
    %v509 = vadd.f32 0.0, %v508
    %v510 = vpop.f32.mrb[0].mxu0
    %511 = vdwg.mxu0
    %512 = vmatprep.subr.mxu0 %v437
    %513 = vmatpush1.xpose.msra.mxu0 %v398
    %514 = vmatprep.subr.mxu0 0.0
    %515 = vmatpush1.xpose.msra.mxu0 0.0
    %516 = vmatprep.subr.mxu0 0.0
    %517 = vmatpush1.xpose.msra.mxu0 0.0
    %518 = vmatprep.subr.mxu0 0.0
    %519 = vmatpush1.xpose.msra.mxu0 0.0
    %520 = vmatprep.subr.mxu0 0.0
    %521 = vmatpush1.xpose.msra.mxu0 0.0
    %522 = vmatprep.subr.mxu0 0.0
    %523 = vmatpush1.xpose.msra.mxu0 0.0
    %524 = vmatprep.subr.mxu0 0.0
    %525 = vmatpush1.xpose.msra.mxu0 0.0
    %526 = vmatprep.subr.mxu0 0.0
    %527 = vmatpush1.xpose.msra.mxu0 0.0
    %528 = vmatprep.subr.mxu0 0.0
    %529 = vmatpush1.xpose.msra.mxu0 0.0
    %530 = vmatprep.subr.mxu0 0.0
    %531 = vmatpush1.xpose.msra.mxu0 0.0
    %532 = vmatprep.subr.mxu0 0.0
    %533 = vmatpush1.xpose.msra.mxu0 0.0
    %534 = vmatprep.subr.mxu0 0.0
    %535 = vmatpush1.xpose.msra.mxu0 0.0
    %536 = vmatprep.subr.mxu0 0.0
    %537 = vmatpush1.xpose.msra.mxu0 0.0
    %538 = vmatprep.subr.mxu0 0.0
    %539 = vmatpush1.xpose.msra.mxu0 0.0
    %540 = vmatprep.subr.mxu0 0.0
    %541 = vmatpush1.xpose.msra.mxu0 0.0
    %542 = vmatprep.subr.mxu0 0.0
    %543 = vmatpush1.xpose.msra.mxu0 0.0
    %544 = vmatprep.subr.mxu0 0.0
    %545 = vmatpush1.xpose.msra.mxu0 0.0
    %546 = vmatprep.subr.mxu0 0.0
    %547 = vmatpush1.xpose.msra.mxu0 0.0
    %548 = vmatprep.subr.mxu0 0.0
    %549 = vmatpush1.xpose.msra.mxu0 0.0
    %550 = vmatprep.subr.mxu0 0.0
    %551 = vmatpush1.xpose.msra.mxu0 0.0
    %552 = vmatprep.subr.mxu0 0.0
    %553 = vmatpush1.xpose.msra.mxu0 0.0
    %554 = vmatprep.subr.mxu0 0.0
    %555 = vmatpush1.xpose.msra.mxu0 0.0
    %556 = vmatprep.subr.mxu0 0.0
    %557 = vmatpush1.xpose.msra.mxu0 0.0
    %558 = vmatprep.subr.mxu0 0.0
    %559 = vmatpush1.xpose.msra.mxu0 0.0
    %560 = vmatprep.subr.mxu0 0.0
    %561 = vmatpush1.xpose.msra.mxu0 0.0
    %562 = vmatprep.subr.mxu0 0.0
    %563 = vmatpush1.xpose.msra.mxu0 0.0
    %564 = vmatprep.subr.mxu0 0.0
    %565 = vmatpush1.xpose.msra.mxu0 0.0
    %566 = vmatprep.subr.mxu0 0.0
    %567 = vmatpush1.xpose.msra.mxu0 0.0
    %568 = vmatprep.subr.mxu0 0.0
    %569 = vmatpush1.xpose.msra.mxu0 0.0
    %570 = vmatprep.subr.mxu0 0.0
    %571 = vmatpush1.xpose.msra.mxu0 0.0
    %572 = vmatprep.subr.mxu0 0.0
    %573 = vmatpush1.xpose.msra.mxu0 0.0
    %574 = vmatprep.subr.mxu0 0.0
    %575 = vmatpush1.xpose.msra.mxu0 0.0
    %576 = vmatprep.mubr.f32.mxu0 %v418
    %577 = vmatmul.mubr.f32.gmra.mrb[0].mxu0 %v416
    %v578 = vpop.f32.mrb[0].mxu0
    %v579 = vadd.f32 %v509, %v578
    %v580 = vpop.f32.mrb[0].mxu0
    %581 = vdwg.mxu0
    %582 = vmatprep.subr.mxu0 %v438
    %583 = vmatpush1.xpose.msra.mxu0 %v399
    %584 = vmatprep.subr.mxu0 0.0
    %585 = vmatpush1.xpose.msra.mxu0 0.0
    %586 = vmatprep.subr.mxu0 0.0
    %587 = vmatpush1.xpose.msra.mxu0 0.0
    %588 = vmatprep.subr.mxu0 0.0
    %589 = vmatpush1.xpose.msra.mxu0 0.0
    %590 = vmatprep.subr.mxu0 0.0
    %591 = vmatpush1.xpose.msra.mxu0 0.0
    %592 = vmatprep.subr.mxu0 0.0
    %593 = vmatpush1.xpose.msra.mxu0 0.0
    %594 = vmatprep.subr.mxu0 0.0
    %595 = vmatpush1.xpose.msra.mxu0 0.0
    %596 = vmatprep.subr.mxu0 0.0
    %597 = vmatpush1.xpose.msra.mxu0 0.0
    %598 = vmatprep.subr.mxu0 0.0
    %599 = vmatpush1.xpose.msra.mxu0 0.0
    %600 = vmatprep.subr.mxu0 0.0
    %601 = vmatpush1.xpose.msra.mxu0 0.0
    %602 = vmatprep.subr.mxu0 0.0
    %603 = vmatpush1.xpose.msra.mxu0 0.0
    %604 = vmatprep.subr.mxu0 0.0
    %605 = vmatpush1.xpose.msra.mxu0 0.0
    %606 = vmatprep.subr.mxu0 0.0
    %607 = vmatpush1.xpose.msra.mxu0 0.0
    %608 = vmatprep.subr.mxu0 0.0
    %609 = vmatpush1.xpose.msra.mxu0 0.0
    %610 = vmatprep.subr.mxu0 0.0
    %611 = vmatpush1.xpose.msra.mxu0 0.0
    %612 = vmatprep.subr.mxu0 0.0
    %613 = vmatpush1.xpose.msra.mxu0 0.0
    %614 = vmatprep.subr.mxu0 0.0
    %615 = vmatpush1.xpose.msra.mxu0 0.0
    %616 = vmatprep.subr.mxu0 0.0
    %617 = vmatpush1.xpose.msra.mxu0 0.0
    %618 = vmatprep.subr.mxu0 0.0
    %619 = vmatpush1.xpose.msra.mxu0 0.0
    %620 = vmatprep.subr.mxu0 0.0
    %621 = vmatpush1.xpose.msra.mxu0 0.0
    %622 = vmatprep.subr.mxu0 0.0
    %623 = vmatpush1.xpose.msra.mxu0 0.0
    %624 = vmatprep.subr.mxu0 0.0
    %625 = vmatpush1.xpose.msra.mxu0 0.0
    %626 = vmatprep.subr.mxu0 0.0
    %627 = vmatpush1.xpose.msra.mxu0 0.0
    %628 = vmatprep.subr.mxu0 0.0
    %629 = vmatpush1.xpose.msra.mxu0 0.0
    %630 = vmatprep.subr.mxu0 0.0
    %631 = vmatpush1.xpose.msra.mxu0 0.0
    %632 = vmatprep.subr.mxu0 0.0
    %633 = vmatpush1.xpose.msra.mxu0 0.0
    %634 = vmatprep.subr.mxu0 0.0
    %635 = vmatpush1.xpose.msra.mxu0 0.0
    %636 = vmatprep.subr.mxu0 0.0
    %637 = vmatpush1.xpose.msra.mxu0 0.0
    %638 = vmatprep.subr.mxu0 0.0
    %639 = vmatpush1.xpose.msra.mxu0 0.0
    %640 = vmatprep.subr.mxu0 0.0
    %641 = vmatpush1.xpose.msra.mxu0 0.0
    %642 = vmatprep.subr.mxu0 0.0
    %643 = vmatpush1.xpose.msra.mxu0 0.0
    %644 = vmatprep.subr.mxu0 0.0
    %645 = vmatpush1.xpose.msra.mxu0 0.0
    %646 = vmatprep.mubr.f32.mxu0 %v426
    %647 = vmatmul.mubr.f32.gmra.mrb[0].mxu0 %v425
    %v648 = vpop.f32.mrb[0].mxu0
    %v649 = vadd.f32 %v579, %v648
    %v650 = vpop.f32.mrb[0].mxu0
    %651 = vdwg.mxu0
    %v652 = vmax.f32 %v649, 1e-24
    %v653 = vrsqrt.pop %v652
    %v654 = vmul.f32 %v392, %v653
    %v655 = vpack.c.bf16 %v654, %v654
    %v656 = vld [vmem:[#allocation9] sm:$0xff]
    %v657 = vld [vmem:[#allocation9 + $0x8] sm:$0xff]
    %v658 = vld [vmem:[#allocation9 + $0x10] sm:$0xff]
    %v659 = vld [vmem:[#allocation9 + $0x18] sm:$0xff]
    %v660 = vld [vmem:[#allocation9 + $0x20] sm:$0xff]
    %v661 = vld [vmem:[#allocation9 + $0x28] sm:$0xff]
    %v662 = vld [vmem:[#allocation9 + $0x30] sm:$0xff]
    %v663 = vld [vmem:[#allocation9 + $0x38] sm:$0xff]
    %v664 = vld [vmem:[#allocation9 + $0x40] sm:$0xff]
    %v665 = vld [vmem:[#allocation9 + $0x48] sm:$0xff]
    %v666 = vld [vmem:[#allocation9 + $0x50] sm:$0xff]
    %v667 = vld [vmem:[#allocation9 + $0x58] sm:$0xff]
    %v680 = vcombine.high %v656, %v656
    %v682 = vunpack.c.l.s4 1983009808
    %v683 = vunpack.c.0.s8 %v682
    %v684 = vlaneseq
    %v685 = vshrl.u32 %v684, 7
    %v686 = vsub.s32 %v683, %v685
    %v687 = vrot.slane %v656, %v686
    %v689 = vunpack.c.l.s4 1983009808
    %v690 = vunpack.c.0.s8 %v689
    %v691 = vlaneseq
    %v692 = vshrl.u32 %v691, 7
    %v693 = vsub.s32 %v690, %v692
    %v694 = vrot.slane %v680, %v693
    %v695 = vcombine.high %v687, %v687
    %v696 = vcombine.high %v694, %v694
    %v697 = vcombine.high %v657, %v657
    %v699 = vunpack.c.l.s4 1983009808
    %v700 = vunpack.c.0.s8 %v699
    %v701 = vlaneseq
    %v702 = vshrl.u32 %v701, 7
    %v703 = vsub.s32 %v700, %v702
    %v704 = vrot.slane %v657, %v703
    %v706 = vunpack.c.l.s4 1983009808
    %v707 = vunpack.c.0.s8 %v706
    %v708 = vlaneseq
    %v709 = vshrl.u32 %v708, 7
    %v710 = vsub.s32 %v707, %v709
    %v711 = vrot.slane %v697, %v710
    %v712 = vcombine.high %v704, %v704
    %v713 = vcombine.high %v711, %v711
    %v714 = vcombine.high %v658, %v658
    %v716 = vunpack.c.l.s4 1983009808
    %v717 = vunpack.c.0.s8 %v716
    %v718 = vlaneseq
    %v719 = vshrl.u32 %v718, 7
    %v720 = vsub.s32 %v717, %v719
    %v721 = vrot.slane %v658, %v720
    %v723 = vunpack.c.l.s4 1983009808
    %v724 = vunpack.c.0.s8 %v723
    %v725 = vlaneseq
    %v726 = vshrl.u32 %v725, 7
    %v727 = vsub.s32 %v724, %v726
    %v728 = vrot.slane %v714, %v727
    %v729 = vcombine.high %v721, %v721
    %v730 = vcombine.high %v728, %v728
    %v731 = vcombine.high %v659, %v659
    %v733 = vunpack.c.l.s4 1983009808
    %v734 = vunpack.c.0.s8 %v733
    %v735 = vlaneseq
    %v736 = vshrl.u32 %v735, 7
    %v737 = vsub.s32 %v734, %v736
    %v738 = vrot.slane %v659, %v737
    %v740 = vunpack.c.l.s4 1983009808
    %v741 = vunpack.c.0.s8 %v740
    %v742 = vlaneseq
    %v743 = vshrl.u32 %v742, 7
    %v744 = vsub.s32 %v741, %v743
    %v745 = vrot.slane %v731, %v744
    %v746 = vcombine.high %v738, %v738
    %v747 = vcombine.high %v745, %v745
    %v748 = vcombine.high %v660, %v660
    %v750 = vunpack.c.l.s4 1983009808
    %v751 = vunpack.c.0.s8 %v750
    %v752 = vlaneseq
    %v753 = vshrl.u32 %v752, 7
    %v754 = vsub.s32 %v751, %v753
    %v755 = vrot.slane %v660, %v754
    %v757 = vunpack.c.l.s4 1983009808
    %v758 = vunpack.c.0.s8 %v757
    %v759 = vlaneseq
    %v760 = vshrl.u32 %v759, 7
    %v761 = vsub.s32 %v758, %v760
    %v762 = vrot.slane %v748, %v761
    %v763 = vcombine.high %v755, %v755
    %v764 = vcombine.high %v762, %v762
    %v765 = vcombine.high %v661, %v661
    %v767 = vunpack.c.l.s4 1983009808
    %v768 = vunpack.c.0.s8 %v767
    %v769 = vlaneseq
    %v770 = vshrl.u32 %v769, 7
    %v771 = vsub.s32 %v768, %v770
    %v772 = vrot.slane %v661, %v771
    %v774 = vunpack.c.l.s4 1983009808
    %v775 = vunpack.c.0.s8 %v774
    %v776 = vlaneseq
    %v777 = vshrl.u32 %v776, 7
    %v778 = vsub.s32 %v775, %v777
    %v779 = vrot.slane %v765, %v778
    %v780 = vcombine.high %v772, %v772
    %v781 = vcombine.high %v779, %v779
    %v782 = vcombine.high %v662, %v662
    %v784 = vunpack.c.l.s4 1983009808
    %v785 = vunpack.c.0.s8 %v784
    %v786 = vlaneseq
    %v787 = vshrl.u32 %v786, 7
    %v788 = vsub.s32 %v785, %v787
    %v789 = vrot.slane %v662, %v788
    %v791 = vunpack.c.l.s4 1983009808
    %v792 = vunpack.c.0.s8 %v791
    %v793 = vlaneseq
    %v794 = vshrl.u32 %v793, 7
    %v795 = vsub.s32 %v792, %v794
    %v796 = vrot.slane %v782, %v795
    %v797 = vcombine.high %v789, %v789
    %v798 = vcombine.high %v796, %v796
    %v799 = vcombine.high %v663, %v663
    %v801 = vunpack.c.l.s4 1983009808
    %v802 = vunpack.c.0.s8 %v801
    %v803 = vlaneseq
    %v804 = vshrl.u32 %v803, 7
    %v805 = vsub.s32 %v802, %v804
    %v806 = vrot.slane %v663, %v805
    %v808 = vunpack.c.l.s4 1983009808
    %v809 = vunpack.c.0.s8 %v808
    %v810 = vlaneseq
    %v811 = vshrl.u32 %v810, 7
    %v812 = vsub.s32 %v809, %v811
    %v813 = vrot.slane %v799, %v812
    %v814 = vcombine.high %v806, %v806
    %v815 = vcombine.high %v813, %v813
    %v816 = vcombine.high %v664, %v664
    %v818 = vunpack.c.l.s4 1983009808
    %v819 = vunpack.c.0.s8 %v818
    %v820 = vlaneseq
    %v821 = vshrl.u32 %v820, 7
    %v822 = vsub.s32 %v819, %v821
    %v823 = vrot.slane %v664, %v822
    %v825 = vunpack.c.l.s4 1983009808
    %v826 = vunpack.c.0.s8 %v825
    %v827 = vlaneseq
    %v828 = vshrl.u32 %v827, 7
    %v829 = vsub.s32 %v826, %v828
    %v830 = vrot.slane %v816, %v829
    %v831 = vcombine.high %v823, %v823
    %v832 = vcombine.high %v830, %v830
    %v833 = vcombine.high %v665, %v665
    %v835 = vunpack.c.l.s4 1983009808
    %v836 = vunpack.c.0.s8 %v835
    %v837 = vlaneseq
    %v838 = vshrl.u32 %v837, 7
    %v839 = vsub.s32 %v836, %v838
    %v840 = vrot.slane %v665, %v839
    %v842 = vunpack.c.l.s4 1983009808
    %v843 = vunpack.c.0.s8 %v842
    %v844 = vlaneseq
    %v845 = vshrl.u32 %v844, 7
    %v846 = vsub.s32 %v843, %v845
    %v847 = vrot.slane %v833, %v846
    %v848 = vcombine.high %v840, %v840
    %v849 = vcombine.high %v847, %v847
    %v850 = vcombine.high %v666, %v666
    %v852 = vunpack.c.l.s4 1983009808
    %v853 = vunpack.c.0.s8 %v852
    %v854 = vlaneseq
    %v855 = vshrl.u32 %v854, 7
    %v856 = vsub.s32 %v853, %v855
    %v857 = vrot.slane %v666, %v856
    %v859 = vunpack.c.l.s4 1983009808
    %v860 = vunpack.c.0.s8 %v859
    %v861 = vlaneseq
    %v862 = vshrl.u32 %v861, 7
    %v863 = vsub.s32 %v860, %v862
    %v864 = vrot.slane %v850, %v863
    %v865 = vcombine.high %v857, %v857
    %v866 = vcombine.high %v864, %v864
    %v867 = vcombine.high %v667, %v667
    %v869 = vunpack.c.l.s4 1983009808
    %v870 = vunpack.c.0.s8 %v869
    %v871 = vlaneseq
    %v872 = vshrl.u32 %v871, 7
    %v873 = vsub.s32 %v870, %v872
    %v874 = vrot.slane %v667, %v873
    %v876 = vunpack.c.l.s4 1983009808
    %v877 = vunpack.c.0.s8 %v876
    %v878 = vlaneseq
    %v879 = vshrl.u32 %v878, 7
    %v880 = vsub.s32 %v877, %v879
    %v881 = vrot.slane %v867, %v880
    %v882 = vcombine.high %v874, %v874
    %v883 = vcombine.high %v881, %v881
    %vm884 = vcmask 31744
    %v886 = vsel %vm884, %v655, 0
    %vm888 = vcmask 1041408
    %v890 = vsel %vm888, %v687, 0
    %v893 = vsel %vm888, %v695, 0
    %v896 = vsel %vm888, %v694, 0
    %v899 = vsel %vm888, %v696, 0
    %v902 = vsel %vm888, %v704, 0
    %v905 = vsel %vm888, %v712, 0
    %v908 = vsel %vm888, %v711, 0
    %v911 = vsel %vm888, %v713, 0
    %v914 = vsel %vm888, %v721, 0
    %v917 = vsel %vm888, %v729, 0
    %v920 = vsel %vm888, %v728, 0
    %v923 = vsel %vm888, %v730, 0
    %v926 = vsel %vm888, %v738, 0
    %v929 = vsel %vm888, %v746, 0
    %v932 = vsel %vm888, %v745, 0
    %v935 = vsel %vm888, %v747, 0
    %v938 = vsel %vm888, %v755, 0
    %v941 = vsel %vm888, %v763, 0
    %v944 = vsel %vm888, %v762, 0
    %v947 = vsel %vm888, %v764, 0
    %v950 = vsel %vm888, %v772, 0
    %v953 = vsel %vm888, %v780, 0
    %v956 = vsel %vm888, %v779, 0
    %v959 = vsel %vm888, %v781, 0
    %v962 = vsel %vm888, %v789, 0
    %v965 = vsel %vm888, %v797, 0
    %v968 = vsel %vm888, %v796, 0
    %v971 = vsel %vm888, %v798, 0
    %v974 = vsel %vm888, %v806, 0
    %v977 = vsel %vm888, %v814, 0
    %v980 = vsel %vm888, %v813, 0
    %v983 = vsel %vm888, %v815, 0
    %v986 = vsel %vm888, %v823, 0
    %v989 = vsel %vm888, %v831, 0
    %v992 = vsel %vm888, %v830, 0
    %v995 = vsel %vm888, %v832, 0
    %v998 = vsel %vm888, %v840, 0
    %v1001 = vsel %vm888, %v848, 0
    %v1004 = vsel %vm888, %v847, 0
    %v1007 = vsel %vm888, %v849, 0
    %v1010 = vsel %vm888, %v857, 0
    %v1013 = vsel %vm888, %v865, 0
    %v1016 = vsel %vm888, %v864, 0
    %v1019 = vsel %vm888, %v866, 0
    %v1022 = vsel %vm888, %v874, 0
    %v1025 = vsel %vm888, %v882, 0
    %v1028 = vsel %vm888, %v881, 0
    %v1031 = vsel %vm888, %v883, 0
    %1033 = vmatprep.subr.bf16.mxu0 %v893
    %1034 = vmatpush1.bf16.msra.mxu0 %v890
    %1035 = vmatprep.subr.bf16.mxu0 0
    %1036 = vmatpush1.bf16.msra.mxu0 0
    %1037 = vmatprep.subr.bf16.mxu0 0
    %1038 = vmatpush1.bf16.msra.mxu0 0
    %1039 = vmatprep.subr.bf16.mxu0 0
    %1040 = vmatpush1.bf16.msra.mxu0 0
    %1041 = vmatprep.subr.bf16.mxu0 0
    %1042 = vmatpush1.bf16.msra.mxu0 0
    %1043 = vmatprep.subr.bf16.mxu0 0
    %1044 = vmatpush1.bf16.msra.mxu0 0
    %1045 = vmatprep.subr.bf16.mxu0 0
    %1046 = vmatpush1.bf16.msra.mxu0 0
    %1047 = vmatprep.subr.bf16.mxu0 0
    %1048 = vmatpush1.bf16.msra.mxu0 0
    %1049 = vmatprep.subr.bf16.mxu0 0
    %1050 = vmatpush1.bf16.msra.mxu0 0
    %1051 = vmatprep.subr.bf16.mxu0 0
    %1052 = vmatpush1.bf16.msra.mxu0 0
    %1053 = vmatprep.subr.bf16.mxu0 0
    %1054 = vmatpush1.bf16.msra.mxu0 0
    %1055 = vmatprep.subr.bf16.mxu0 0
    %1056 = vmatpush1.bf16.msra.mxu0 0
    %1057 = vmatprep.subr.bf16.mxu0 0
    %1058 = vmatpush1.bf16.msra.mxu0 0
    %1059 = vmatprep.subr.bf16.mxu0 0
    %1060 = vmatpush1.bf16.msra.mxu0 0
    %1061 = vmatprep.subr.bf16.mxu0 0
    %1062 = vmatpush1.bf16.msra.mxu0 0
    %1063 = vmatprep.subr.bf16.mxu0 0
    %1064 = vmatpush1.bf16.msra.mxu0 0
    %1065 = vmatprep.mubr.bf16.mxu0 0
    %1066 = vmatmul.mubr.bf16.gmra.mrb[0].mxu0 %v886
    %v1067 = vpop.f32.mrb[0].mxu0
    %v1068 = vadd.f32 0.0, %v1067
    %v1069 = vpop.f32.mrb[0].mxu0
    %v1070 = vadd.f32 0.0, %v1069
    %v1071 = vpop.f32.mrb[0].mxu0
    %v1072 = vpop.f32.mrb[0].mxu0
    %1073 = vdwg.mxu0
    %1074 = vmatprep.subr.bf16.mxu0 %v899
    %1075 = vmatpush1.bf16.msra.mxu0 %v896
    %1076 = vmatprep.subr.bf16.mxu0 0
    %1077 = vmatpush1.bf16.msra.mxu0 0
    %1078 = vmatprep.subr.bf16.mxu0 0
    %1079 = vmatpush1.bf16.msra.mxu0 0
    %1080 = vmatprep.subr.bf16.mxu0 0
    %1081 = vmatpush1.bf16.msra.mxu0 0
    %1082 = vmatprep.subr.bf16.mxu0 0
    %1083 = vmatpush1.bf16.msra.mxu0 0
    %1084 = vmatprep.subr.bf16.mxu0 0
    %1085 = vmatpush1.bf16.msra.mxu0 0
    %1086 = vmatprep.subr.bf16.mxu0 0
    %1087 = vmatpush1.bf16.msra.mxu0 0
    %1088 = vmatprep.subr.bf16.mxu0 0
    %1089 = vmatpush1.bf16.msra.mxu0 0
    %1090 = vmatprep.subr.bf16.mxu0 0
    %1091 = vmatpush1.bf16.msra.mxu0 0
    %1092 = vmatprep.subr.bf16.mxu0 0
    %1093 = vmatpush1.bf16.msra.mxu0 0
    %1094 = vmatprep.subr.bf16.mxu0 0
    %1095 = vmatpush1.bf16.msra.mxu0 0
    %1096 = vmatprep.subr.bf16.mxu0 0
    %1097 = vmatpush1.bf16.msra.mxu0 0
    %1098 = vmatprep.subr.bf16.mxu0 0
    %1099 = vmatpush1.bf16.msra.mxu0 0
    %1100 = vmatprep.subr.bf16.mxu0 0
    %1101 = vmatpush1.bf16.msra.mxu0 0
    %1102 = vmatprep.subr.bf16.mxu0 0
    %1103 = vmatpush1.bf16.msra.mxu0 0
    %1104 = vmatprep.subr.bf16.mxu0 0
    %1105 = vmatpush1.bf16.msra.mxu0 0
    %1106 = vmatprep.mubr.bf16.mxu0 0
    %1107 = vmatmul.mubr.bf16.gmra.mrb[0].mxu0 %v886
    %v1108 = vpop.f32.mrb[0].mxu0
    %v1109 = vadd.f32 0.0, %v1108
    %v1110 = vpop.f32.mrb[0].mxu0
    %v1111 = vadd.f32 0.0, %v1110
    %v1112 = vpop.f32.mrb[0].mxu0
    %v1113 = vpop.f32.mrb[0].mxu0
    %1114 = vdwg.mxu0
    %1115 = vmatprep.subr.bf16.mxu0 %v905
    %1116 = vmatpush1.bf16.msra.mxu0 %v902
    %1117 = vmatprep.subr.bf16.mxu0 0
    %1118 = vmatpush1.bf16.msra.mxu0 0
    %1119 = vmatprep.subr.bf16.mxu0 0
    %1120 = vmatpush1.bf16.msra.mxu0 0
    %1121 = vmatprep.subr.bf16.mxu0 0
    %1122 = vmatpush1.bf16.msra.mxu0 0
    %1123 = vmatprep.subr.bf16.mxu0 0
    %1124 = vmatpush1.bf16.msra.mxu0 0
    %1125 = vmatprep.subr.bf16.mxu0 0
    %1126 = vmatpush1.bf16.msra.mxu0 0
    %1127 = vmatprep.subr.bf16.mxu0 0
    %1128 = vmatpush1.bf16.msra.mxu0 0
    %1129 = vmatprep.subr.bf16.mxu0 0
    %1130 = vmatpush1.bf16.msra.mxu0 0
    %1131 = vmatprep.subr.bf16.mxu0 0
    %1132 = vmatpush1.bf16.msra.mxu0 0
    %1133 = vmatprep.subr.bf16.mxu0 0
    %1134 = vmatpush1.bf16.msra.mxu0 0
    %1135 = vmatprep.subr.bf16.mxu0 0
    %1136 = vmatpush1.bf16.msra.mxu0 0
    %1137 = vmatprep.subr.bf16.mxu0 0
    %1138 = vmatpush1.bf16.msra.mxu0 0
    %1139 = vmatprep.subr.bf16.mxu0 0
    %1140 = vmatpush1.bf16.msra.mxu0 0
    %1141 = vmatprep.subr.bf16.mxu0 0
    %1142 = vmatpush1.bf16.msra.mxu0 0
    %1143 = vmatprep.subr.bf16.mxu0 0
    %1144 = vmatpush1.bf16.msra.mxu0 0
    %1145 = vmatprep.subr.bf16.mxu0 0
    %1146 = vmatpush1.bf16.msra.mxu0 0
    %1147 = vmatprep.mubr.bf16.mxu0 0
    %1148 = vmatmul.mubr.bf16.gmra.mrb[0].mxu0 %v886
    %v1149 = vpop.f32.mrb[0].mxu0
    %v1150 = vadd.f32 0.0, %v1149
    %v1151 = vpop.f32.mrb[0].mxu0
    %v1152 = vadd.f32 0.0, %v1151
    %v1153 = vpop.f32.mrb[0].mxu0
    %v1154 = vpop.f32.mrb[0].mxu0
    %1155 = vdwg.mxu0
    %1156 = vmatprep.subr.bf16.mxu0 %v911
    %1157 = vmatpush1.bf16.msra.mxu0 %v908
    %1158 = vmatprep.subr.bf16.mxu0 0
    %1159 = vmatpush1.bf16.msra.mxu0 0
    %1160 = vmatprep.subr.bf16.mxu0 0
    %1161 = vmatpush1.bf16.msra.mxu0 0
    %1162 = vmatprep.subr.bf16.mxu0 0
    %1163 = vmatpush1.bf16.msra.mxu0 0
    %1164 = vmatprep.subr.bf16.mxu0 0
    %1165 = vmatpush1.bf16.msra.mxu0 0
    %1166 = vmatprep.subr.bf16.mxu0 0
    %1167 = vmatpush1.bf16.msra.mxu0 0
    %1168 = vmatprep.subr.bf16.mxu0 0
    %1169 = vmatpush1.bf16.msra.mxu0 0
    %1170 = vmatprep.subr.bf16.mxu0 0
    %1171 = vmatpush1.bf16.msra.mxu0 0
    %1172 = vmatprep.subr.bf16.mxu0 0
    %1173 = vmatpush1.bf16.msra.mxu0 0
    %1174 = vmatprep.subr.bf16.mxu0 0
    %1175 = vmatpush1.bf16.msra.mxu0 0
    %1176 = vmatprep.subr.bf16.mxu0 0
    %1177 = vmatpush1.bf16.msra.mxu0 0
    %1178 = vmatprep.subr.bf16.mxu0 0
    %1179 = vmatpush1.bf16.msra.mxu0 0
    %1180 = vmatprep.subr.bf16.mxu0 0
    %1181 = vmatpush1.bf16.msra.mxu0 0
    %1182 = vmatprep.subr.bf16.mxu0 0
    %1183 = vmatpush1.bf16.msra.mxu0 0
    %1184 = vmatprep.subr.bf16.mxu0 0
    %1185 = vmatpush1.bf16.msra.mxu0 0
    %1186 = vmatprep.subr.bf16.mxu0 0
    %1187 = vmatpush1.bf16.msra.mxu0 0
    %1188 = vmatprep.mubr.bf16.mxu0 0
    %1189 = vmatmul.mubr.bf16.gmra.mrb[0].mxu0 %v886
    %v1190 = vpop.f32.mrb[0].mxu0
    %v1191 = vadd.f32 0.0, %v1190
    %v1192 = vpop.f32.mrb[0].mxu0
    %v1193 = vadd.f32 0.0, %v1192
    %v1194 = vpop.f32.mrb[0].mxu0
    %v1195 = vpop.f32.mrb[0].mxu0
    %1196 = vdwg.mxu0
    %1197 = vmatprep.subr.bf16.mxu0 %v917
    %1198 = vmatpush1.bf16.msra.mxu0 %v914
    %1199 = vmatprep.subr.bf16.mxu0 0
    %1200 = vmatpush1.bf16.msra.mxu0 0
    %1201 = vmatprep.subr.bf16.mxu0 0
    %1202 = vmatpush1.bf16.msra.mxu0 0
    %1203 = vmatprep.subr.bf16.mxu0 0
    %1204 = vmatpush1.bf16.msra.mxu0 0
    %1205 = vmatprep.subr.bf16.mxu0 0
    %1206 = vmatpush1.bf16.msra.mxu0 0
    %1207 = vmatprep.subr.bf16.mxu0 0
    %1208 = vmatpush1.bf16.msra.mxu0 0
    %1209 = vmatprep.subr.bf16.mxu0 0
    %1210 = vmatpush1.bf16.msra.mxu0 0
    %1211 = vmatprep.subr.bf16.mxu0 0
    %1212 = vmatpush1.bf16.msra.mxu0 0
    %1213 = vmatprep.subr.bf16.mxu0 0
    %1214 = vmatpush1.bf16.msra.mxu0 0
    %1215 = vmatprep.subr.bf16.mxu0 0
    %1216 = vmatpush1.bf16.msra.mxu0 0
    %1217 = vmatprep.subr.bf16.mxu0 0
    %1218 = vmatpush1.bf16.msra.mxu0 0
    %1219 = vmatprep.subr.bf16.mxu0 0
    %1220 = vmatpush1.bf16.msra.mxu0 0
    %1221 = vmatprep.subr.bf16.mxu0 0
    %1222 = vmatpush1.bf16.msra.mxu0 0
    %1223 = vmatprep.subr.bf16.mxu0 0
    %1224 = vmatpush1.bf16.msra.mxu0 0
    %1225 = vmatprep.subr.bf16.mxu0 0
    %1226 = vmatpush1.bf16.msra.mxu0 0
    %1227 = vmatprep.subr.bf16.mxu0 0
    %1228 = vmatpush1.bf16.msra.mxu0 0
    %1229 = vmatprep.mubr.bf16.mxu0 0
    %1230 = vmatmul.mubr.bf16.gmra.mrb[0].mxu0 %v886
    %v1231 = vpop.f32.mrb[0].mxu0
    %v1232 = vadd.f32 0.0, %v1231
    %v1233 = vpop.f32.mrb[0].mxu0
    %v1234 = vadd.f32 0.0, %v1233
    %v1235 = vpop.f32.mrb[0].mxu0
    %v1236 = vpop.f32.mrb[0].mxu0
    %1237 = vdwg.mxu0
    %1238 = vmatprep.subr.bf16.mxu0 %v923
    %1239 = vmatpush1.bf16.msra.mxu0 %v920
    %1240 = vmatprep.subr.bf16.mxu0 0
    %1241 = vmatpush1.bf16.msra.mxu0 0
    %1242 = vmatprep.subr.bf16.mxu0 0
    %1243 = vmatpush1.bf16.msra.mxu0 0
    %1244 = vmatprep.subr.bf16.mxu0 0
    %1245 = vmatpush1.bf16.msra.mxu0 0
    %1246 = vmatprep.subr.bf16.mxu0 0
    %1247 = vmatpush1.bf16.msra.mxu0 0
    %1248 = vmatprep.subr.bf16.mxu0 0
    %1249 = vmatpush1.bf16.msra.mxu0 0
    %1250 = vmatprep.subr.bf16.mxu0 0
    %1251 = vmatpush1.bf16.msra.mxu0 0
    %1252 = vmatprep.subr.bf16.mxu0 0
    %1253 = vmatpush1.bf16.msra.mxu0 0
    %1254 = vmatprep.subr.bf16.mxu0 0
    %1255 = vmatpush1.bf16.msra.mxu0 0
    %1256 = vmatprep.subr.bf16.mxu0 0
    %1257 = vmatpush1.bf16.msra.mxu0 0
    %1258 = vmatprep.subr.bf16.mxu0 0
    %1259 = vmatpush1.bf16.msra.mxu0 0
    %1260 = vmatprep.subr.bf16.mxu0 0
    %1261 = vmatpush1.bf16.msra.mxu0 0
    %1262 = vmatprep.subr.bf16.mxu0 0
    %1263 = vmatpush1.bf16.msra.mxu0 0
    %1264 = vmatprep.subr.bf16.mxu0 0
    %1265 = vmatpush1.bf16.msra.mxu0 0
    %1266 = vmatprep.subr.bf16.mxu0 0
    %1267 = vmatpush1.bf16.msra.mxu0 0
    %1268 = vmatprep.subr.bf16.mxu0 0
    %1269 = vmatpush1.bf16.msra.mxu0 0
    %1270 = vmatprep.mubr.bf16.mxu0 0
    %1271 = vmatmul.mubr.bf16.gmra.mrb[0].mxu0 %v886
    %v1272 = vpop.f32.mrb[0].mxu0
    %v1273 = vadd.f32 0.0, %v1272
    %v1274 = vpop.f32.mrb[0].mxu0
    %v1275 = vadd.f32 0.0, %v1274
    %v1276 = vpop.f32.mrb[0].mxu0
    %v1277 = vpop.f32.mrb[0].mxu0
    %1278 = vdwg.mxu0
    %1279 = vmatprep.subr.bf16.mxu0 %v929
    %1280 = vmatpush1.bf16.msra.mxu0 %v926
    %1281 = vmatprep.subr.bf16.mxu0 0
    %1282 = vmatpush1.bf16.msra.mxu0 0
    %1283 = vmatprep.subr.bf16.mxu0 0
    %1284 = vmatpush1.bf16.msra.mxu0 0
    %1285 = vmatprep.subr.bf16.mxu0 0
    %1286 = vmatpush1.bf16.msra.mxu0 0
    %1287 = vmatprep.subr.bf16.mxu0 0
    %1288 = vmatpush1.bf16.msra.mxu0 0
    %1289 = vmatprep.subr.bf16.mxu0 0
    %1290 = vmatpush1.bf16.msra.mxu0 0
    %1291 = vmatprep.subr.bf16.mxu0 0
    %1292 = vmatpush1.bf16.msra.mxu0 0
    %1293 = vmatprep.subr.bf16.mxu0 0
    %1294 = vmatpush1.bf16.msra.mxu0 0
    %1295 = vmatprep.subr.bf16.mxu0 0
    %1296 = vmatpush1.bf16.msra.mxu0 0
    %1297 = vmatprep.subr.bf16.mxu0 0
    %1298 = vmatpush1.bf16.msra.mxu0 0
    %1299 = vmatprep.subr.bf16.mxu0 0
    %1300 = vmatpush1.bf16.msra.mxu0 0
    %1301 = vmatprep.subr.bf16.mxu0 0
    %1302 = vmatpush1.bf16.msra.mxu0 0
    %1303 = vmatprep.subr.bf16.mxu0 0
    %1304 = vmatpush1.bf16.msra.mxu0 0
    %1305 = vmatprep.subr.bf16.mxu0 0
    %1306 = vmatpush1.bf16.msra.mxu0 0
    %1307 = vmatprep.subr.bf16.mxu0 0
    %1308 = vmatpush1.bf16.msra.mxu0 0
    %1309 = vmatprep.subr.bf16.mxu0 0
    %1310 = vmatpush1.bf16.msra.mxu0 0
    %1311 = vmatprep.mubr.bf16.mxu0 0
    %1312 = vmatmul.mubr.bf16.gmra.mrb[0].mxu0 %v886
    %v1313 = vpop.f32.mrb[0].mxu0
    %v1314 = vadd.f32 0.0, %v1313
    %v1315 = vpop.f32.mrb[0].mxu0
    %v1316 = vadd.f32 0.0, %v1315
    %v1317 = vpop.f32.mrb[0].mxu0
    %v1318 = vpop.f32.mrb[0].mxu0
    %1319 = vdwg.mxu0
    %1320 = vmatprep.subr.bf16.mxu0 %v935
    %1321 = vmatpush1.bf16.msra.mxu0 %v932
    %1322 = vmatprep.subr.bf16.mxu0 0
    %1323 = vmatpush1.bf16.msra.mxu0 0
    %1324 = vmatprep.subr.bf16.mxu0 0
    %1325 = vmatpush1.bf16.msra.mxu0 0
    %1326 = vmatprep.subr.bf16.mxu0 0
    %1327 = vmatpush1.bf16.msra.mxu0 0
    %1328 = vmatprep.subr.bf16.mxu0 0
    %1329 = vmatpush1.bf16.msra.mxu0 0
    %1330 = vmatprep.subr.bf16.mxu0 0
    %1331 = vmatpush1.bf16.msra.mxu0 0
    %1332 = vmatprep.subr.bf16.mxu0 0
    %1333 = vmatpush1.bf16.msra.mxu0 0
    %1334 = vmatprep.subr.bf16.mxu0 0
    %1335 = vmatpush1.bf16.msra.mxu0 0
    %1336 = vmatprep.subr.bf16.mxu0 0
    %1337 = vmatpush1.bf16.msra.mxu0 0
    %1338 = vmatprep.subr.bf16.mxu0 0
    %1339 = vmatpush1.bf16.msra.mxu0 0
    %1340 = vmatprep.subr.bf16.mxu0 0
    %1341 = vmatpush1.bf16.msra.mxu0 0
    %1342 = vmatprep.subr.bf16.mxu0 0
    %1343 = vmatpush1.bf16.msra.mxu0 0
    %1344 = vmatprep.subr.bf16.mxu0 0
    %1345 = vmatpush1.bf16.msra.mxu0 0
    %1346 = vmatprep.subr.bf16.mxu0 0
    %1347 = vmatpush1.bf16.msra.mxu0 0
    %1348 = vmatprep.subr.bf16.mxu0 0
    %1349 = vmatpush1.bf16.msra.mxu0 0
    %1350 = vmatprep.subr.bf16.mxu0 0
    %1351 = vmatpush1.bf16.msra.mxu0 0
    %1352 = vmatprep.mubr.bf16.mxu0 0
    %1353 = vmatmul.mubr.bf16.gmra.mrb[0].mxu0 %v886
    %v1354 = vpop.f32.mrb[0].mxu0
    %v1355 = vadd.f32 0.0, %v1354
    %v1356 = vpop.f32.mrb[0].mxu0
    %v1357 = vadd.f32 0.0, %v1356
    %v1358 = vpop.f32.mrb[0].mxu0
    %v1359 = vpop.f32.mrb[0].mxu0
    %1360 = vdwg.mxu0
    %1361 = vmatprep.subr.bf16.mxu0 %v941
    %1362 = vmatpush1.bf16.msra.mxu0 %v938
    %1363 = vmatprep.subr.bf16.mxu0 0
    %1364 = vmatpush1.bf16.msra.mxu0 0
    %1365 = vmatprep.subr.bf16.mxu0 0
    %1366 = vmatpush1.bf16.msra.mxu0 0
    %1367 = vmatprep.subr.bf16.mxu0 0
    %1368 = vmatpush1.bf16.msra.mxu0 0
    %1369 = vmatprep.subr.bf16.mxu0 0
    %1370 = vmatpush1.bf16.msra.mxu0 0
    %1371 = vmatprep.subr.bf16.mxu0 0
    %1372 = vmatpush1.bf16.msra.mxu0 0
    %1373 = vmatprep.subr.bf16.mxu0 0
    %1374 = vmatpush1.bf16.msra.mxu0 0
    %1375 = vmatprep.subr.bf16.mxu0 0
    %1376 = vmatpush1.bf16.msra.mxu0 0
    %1377 = vmatprep.subr.bf16.mxu0 0
    %1378 = vmatpush1.bf16.msra.mxu0 0
    %1379 = vmatprep.subr.bf16.mxu0 0
    %1380 = vmatpush1.bf16.msra.mxu0 0
    %1381 = vmatprep.subr.bf16.mxu0 0
    %1382 = vmatpush1.bf16.msra.mxu0 0
    %1383 = vmatprep.subr.bf16.mxu0 0
    %1384 = vmatpush1.bf16.msra.mxu0 0
    %1385 = vmatprep.subr.bf16.mxu0 0
    %1386 = vmatpush1.bf16.msra.mxu0 0
    %1387 = vmatprep.subr.bf16.mxu0 0
    %1388 = vmatpush1.bf16.msra.mxu0 0
    %1389 = vmatprep.subr.bf16.mxu0 0
    %1390 = vmatpush1.bf16.msra.mxu0 0
    %1391 = vmatprep.subr.bf16.mxu0 0
    %1392 = vmatpush1.bf16.msra.mxu0 0
    %1393 = vmatprep.mubr.bf16.mxu0 0
    %1394 = vmatmul.mubr.bf16.gmra.mrb[0].mxu0 %v886
    %v1395 = vpop.f32.mrb[0].mxu0
    %v1396 = vadd.f32 0.0, %v1395
    %v1397 = vpop.f32.mrb[0].mxu0
    %v1398 = vadd.f32 0.0, %v1397
    %v1399 = vpop.f32.mrb[0].mxu0
    %v1400 = vpop.f32.mrb[0].mxu0
    %1401 = vdwg.mxu0
    %1402 = vmatprep.subr.bf16.mxu0 %v947
    %1403 = vmatpush1.bf16.msra.mxu0 %v944
    %1404 = vmatprep.subr.bf16.mxu0 0
    %1405 = vmatpush1.bf16.msra.mxu0 0
    %1406 = vmatprep.subr.bf16.mxu0 0
    %1407 = vmatpush1.bf16.msra.mxu0 0
    %1408 = vmatprep.subr.bf16.mxu0 0
    %1409 = vmatpush1.bf16.msra.mxu0 0
    %1410 = vmatprep.subr.bf16.mxu0 0
    %1411 = vmatpush1.bf16.msra.mxu0 0
    %1412 = vmatprep.subr.bf16.mxu0 0
    %1413 = vmatpush1.bf16.msra.mxu0 0
    %1414 = vmatprep.subr.bf16.mxu0 0
    %1415 = vmatpush1.bf16.msra.mxu0 0
    %1416 = vmatprep.subr.bf16.mxu0 0
    %1417 = vmatpush1.bf16.msra.mxu0 0
    %1418 = vmatprep.subr.bf16.mxu0 0
    %1419 = vmatpush1.bf16.msra.mxu0 0
    %1420 = vmatprep.subr.bf16.mxu0 0
    %1421 = vmatpush1.bf16.msra.mxu0 0
    %1422 = vmatprep.subr.bf16.mxu0 0
    %1423 = vmatpush1.bf16.msra.mxu0 0
    %1424 = vmatprep.subr.bf16.mxu0 0
    %1425 = vmatpush1.bf16.msra.mxu0 0
    %1426 = vmatprep.subr.bf16.mxu0 0
    %1427 = vmatpush1.bf16.msra.mxu0 0
    %1428 = vmatprep.subr.bf16.mxu0 0
    %1429 = vmatpush1.bf16.msra.mxu0 0
    %1430 = vmatprep.subr.bf16.mxu0 0
    %1431 = vmatpush1.bf16.msra.mxu0 0
    %1432 = vmatprep.subr.bf16.mxu0 0
    %1433 = vmatpush1.bf16.msra.mxu0 0
    %1434 = vmatprep.mubr.bf16.mxu0 0
    %1435 = vmatmul.mubr.bf16.gmra.mrb[0].mxu0 %v886
    %v1436 = vpop.f32.mrb[0].mxu0
    %v1437 = vadd.f32 0.0, %v1436
    %v1438 = vpop.f32.mrb[0].mxu0
    %v1439 = vadd.f32 0.0, %v1438
    %v1440 = vpop.f32.mrb[0].mxu0
    %v1441 = vpop.f32.mrb[0].mxu0
    %1442 = vdwg.mxu0
    %1443 = vmatprep.subr.bf16.mxu0 %v953
    %1444 = vmatpush1.bf16.msra.mxu0 %v950
    %1445 = vmatprep.subr.bf16.mxu0 0
    %1446 = vmatpush1.bf16.msra.mxu0 0
    %1447 = vmatprep.subr.bf16.mxu0 0
    %1448 = vmatpush1.bf16.msra.mxu0 0
    %1449 = vmatprep.subr.bf16.mxu0 0
    %1450 = vmatpush1.bf16.msra.mxu0 0
    %1451 = vmatprep.subr.bf16.mxu0 0
    %1452 = vmatpush1.bf16.msra.mxu0 0
    %1453 = vmatprep.subr.bf16.mxu0 0
    %1454 = vmatpush1.bf16.msra.mxu0 0
    %1455 = vmatprep.subr.bf16.mxu0 0
    %1456 = vmatpush1.bf16.msra.mxu0 0
    %1457 = vmatprep.subr.bf16.mxu0 0
    %1458 = vmatpush1.bf16.msra.mxu0 0
    %1459 = vmatprep.subr.bf16.mxu0 0
    %1460 = vmatpush1.bf16.msra.mxu0 0
    %1461 = vmatprep.subr.bf16.mxu0 0
    %1462 = vmatpush1.bf16.msra.mxu0 0
    %1463 = vmatprep.subr.bf16.mxu0 0
    %1464 = vmatpush1.bf16.msra.mxu0 0
    %1465 = vmatprep.subr.bf16.mxu0 0
    %1466 = vmatpush1.bf16.msra.mxu0 0
    %1467 = vmatprep.subr.bf16.mxu0 0
    %1468 = vmatpush1.bf16.msra.mxu0 0
    %1469 = vmatprep.subr.bf16.mxu0 0
    %1470 = vmatpush1.bf16.msra.mxu0 0
    %1471 = vmatprep.subr.bf16.mxu0 0
    %1472 = vmatpush1.bf16.msra.mxu0 0
    %1473 = vmatprep.subr.bf16.mxu0 0
    %1474 = vmatpush1.bf16.msra.mxu0 0
    %1475 = vmatprep.mubr.bf16.mxu0 0
    %1476 = vmatmul.mubr.bf16.gmra.mrb[0].mxu0 %v886
    %v1477 = vpop.f32.mrb[0].mxu0
    %v1478 = vadd.f32 0.0, %v1477
    %v1479 = vpop.f32.mrb[0].mxu0
    %v1480 = vadd.f32 0.0, %v1479
    %v1481 = vpop.f32.mrb[0].mxu0
    %v1482 = vpop.f32.mrb[0].mxu0
    %1483 = vdwg.mxu0
    %1484 = vmatprep.subr.bf16.mxu0 %v959
    %1485 = vmatpush1.bf16.msra.mxu0 %v956
    %1486 = vmatprep.subr.bf16.mxu0 0
    %1487 = vmatpush1.bf16.msra.mxu0 0
    %1488 = vmatprep.subr.bf16.mxu0 0
    %1489 = vmatpush1.bf16.msra.mxu0 0
    %1490 = vmatprep.subr.bf16.mxu0 0
    %1491 = vmatpush1.bf16.msra.mxu0 0
    %1492 = vmatprep.subr.bf16.mxu0 0
    %1493 = vmatpush1.bf16.msra.mxu0 0
    %1494 = vmatprep.subr.bf16.mxu0 0
    %1495 = vmatpush1.bf16.msra.mxu0 0
    %1496 = vmatprep.subr.bf16.mxu0 0
    %1497 = vmatpush1.bf16.msra.mxu0 0
    %1498 = vmatprep.subr.bf16.mxu0 0
    %1499 = vmatpush1.bf16.msra.mxu0 0
    %1500 = vmatprep.subr.bf16.mxu0 0
    %1501 = vmatpush1.bf16.msra.mxu0 0
    %1502 = vmatprep.subr.bf16.mxu0 0
    %1503 = vmatpush1.bf16.msra.mxu0 0
    %1504 = vmatprep.subr.bf16.mxu0 0
    %1505 = vmatpush1.bf16.msra.mxu0 0
    %1506 = vmatprep.subr.bf16.mxu0 0
    %1507 = vmatpush1.bf16.msra.mxu0 0
    %1508 = vmatprep.subr.bf16.mxu0 0
    %1509 = vmatpush1.bf16.msra.mxu0 0
    %1510 = vmatprep.subr.bf16.mxu0 0
    %1511 = vmatpush1.bf16.msra.mxu0 0
    %1512 = vmatprep.subr.bf16.mxu0 0
    %1513 = vmatpush1.bf16.msra.mxu0 0
    %1514 = vmatprep.subr.bf16.mxu0 0
    %1515 = vmatpush1.bf16.msra.mxu0 0
    %1516 = vmatprep.mubr.bf16.mxu0 0
    %1517 = vmatmul.mubr.bf16.gmra.mrb[0].mxu0 %v886
    %v1518 = vpop.f32.mrb[0].mxu0
    %v1519 = vadd.f32 0.0, %v1518
    %v1520 = vpop.f32.mrb[0].mxu0
    %v1521 = vadd.f32 0.0, %v1520
    %v1522 = vpop.f32.mrb[0].mxu0
    %v1523 = vpop.f32.mrb[0].mxu0
    %1524 = vdwg.mxu0
    %1525 = vmatprep.subr.bf16.mxu0 %v965
    %1526 = vmatpush1.bf16.msra.mxu0 %v962
    %1527 = vmatprep.subr.bf16.mxu0 0
    %1528 = vmatpush1.bf16.msra.mxu0 0
    %1529 = vmatprep.subr.bf16.mxu0 0
    %1530 = vmatpush1.bf16.msra.mxu0 0
    %1531 = vmatprep.subr.bf16.mxu0 0
    %1532 = vmatpush1.bf16.msra.mxu0 0
    %1533 = vmatprep.subr.bf16.mxu0 0
    %1534 = vmatpush1.bf16.msra.mxu0 0
    %1535 = vmatprep.subr.bf16.mxu0 0
    %1536 = vmatpush1.bf16.msra.mxu0 0
    %1537 = vmatprep.subr.bf16.mxu0 0
    %1538 = vmatpush1.bf16.msra.mxu0 0
    %1539 = vmatprep.subr.bf16.mxu0 0
    %1540 = vmatpush1.bf16.msra.mxu0 0
    %1541 = vmatprep.subr.bf16.mxu0 0
    %1542 = vmatpush1.bf16.msra.mxu0 0
    %1543 = vmatprep.subr.bf16.mxu0 0
    %1544 = vmatpush1.bf16.msra.mxu0 0
    %1545 = vmatprep.subr.bf16.mxu0 0
    %1546 = vmatpush1.bf16.msra.mxu0 0
    %1547 = vmatprep.subr.bf16.mxu0 0
    %1548 = vmatpush1.bf16.msra.mxu0 0
    %1549 = vmatprep.subr.bf16.mxu0 0
    %1550 = vmatpush1.bf16.msra.mxu0 0
    %1551 = vmatprep.subr.bf16.mxu0 0
    %1552 = vmatpush1.bf16.msra.mxu0 0
    %1553 = vmatprep.subr.bf16.mxu0 0
    %1554 = vmatpush1.bf16.msra.mxu0 0
    %1555 = vmatprep.subr.bf16.mxu0 0
    %1556 = vmatpush1.bf16.msra.mxu0 0
    %1557 = vmatprep.mubr.bf16.mxu0 0
    %1558 = vmatmul.mubr.bf16.gmra.mrb[0].mxu0 %v886
    %v1559 = vpop.f32.mrb[0].mxu0
    %v1560 = vadd.f32 0.0, %v1559
    %v1561 = vpop.f32.mrb[0].mxu0
    %v1562 = vadd.f32 0.0, %v1561
    %v1563 = vpop.f32.mrb[0].mxu0
    %v1564 = vpop.f32.mrb[0].mxu0
    %1565 = vdwg.mxu0
    %1566 = vmatprep.subr.bf16.mxu0 %v971
    %1567 = vmatpush1.bf16.msra.mxu0 %v968
    %1568 = vmatprep.subr.bf16.mxu0 0
    %1569 = vmatpush1.bf16.msra.mxu0 0
    %1570 = vmatprep.subr.bf16.mxu0 0
    %1571 = vmatpush1.bf16.msra.mxu0 0
    %1572 = vmatprep.subr.bf16.mxu0 0
    %1573 = vmatpush1.bf16.msra.mxu0 0
    %1574 = vmatprep.subr.bf16.mxu0 0
    %1575 = vmatpush1.bf16.msra.mxu0 0
    %1576 = vmatprep.subr.bf16.mxu0 0
    %1577 = vmatpush1.bf16.msra.mxu0 0
    %1578 = vmatprep.subr.bf16.mxu0 0
    %1579 = vmatpush1.bf16.msra.mxu0 0
    %1580 = vmatprep.subr.bf16.mxu0 0
    %1581 = vmatpush1.bf16.msra.mxu0 0
    %1582 = vmatprep.subr.bf16.mxu0 0
    %1583 = vmatpush1.bf16.msra.mxu0 0
    %1584 = vmatprep.subr.bf16.mxu0 0
    %1585 = vmatpush1.bf16.msra.mxu0 0
    %1586 = vmatprep.subr.bf16.mxu0 0
    %1587 = vmatpush1.bf16.msra.mxu0 0
    %1588 = vmatprep.subr.bf16.mxu0 0
    %1589 = vmatpush1.bf16.msra.mxu0 0
    %1590 = vmatprep.subr.bf16.mxu0 0
    %1591 = vmatpush1.bf16.msra.mxu0 0
    %1592 = vmatprep.subr.bf16.mxu0 0
    %1593 = vmatpush1.bf16.msra.mxu0 0
    %1594 = vmatprep.subr.bf16.mxu0 0
    %1595 = vmatpush1.bf16.msra.mxu0 0
    %1596 = vmatprep.subr.bf16.mxu0 0
    %1597 = vmatpush1.bf16.msra.mxu0 0
    %1598 = vmatprep.mubr.bf16.mxu0 0
    %1599 = vmatmul.mubr.bf16.gmra.mrb[0].mxu0 %v886
    %v1600 = vpop.f32.mrb[0].mxu0
    %v1601 = vadd.f32 0.0, %v1600
    %v1602 = vpop.f32.mrb[0].mxu0
    %v1603 = vadd.f32 0.0, %v1602
    %v1604 = vpop.f32.mrb[0].mxu0
    %v1605 = vpop.f32.mrb[0].mxu0
    %1606 = vdwg.mxu0
    %1607 = vmatprep.subr.bf16.mxu0 %v977
    %1608 = vmatpush1.bf16.msra.mxu0 %v974
    %1609 = vmatprep.subr.bf16.mxu0 0
    %1610 = vmatpush1.bf16.msra.mxu0 0
    %1611 = vmatprep.subr.bf16.mxu0 0
    %1612 = vmatpush1.bf16.msra.mxu0 0
    %1613 = vmatprep.subr.bf16.mxu0 0
    %1614 = vmatpush1.bf16.msra.mxu0 0
    %1615 = vmatprep.subr.bf16.mxu0 0
    %1616 = vmatpush1.bf16.msra.mxu0 0
    %1617 = vmatprep.subr.bf16.mxu0 0
    %1618 = vmatpush1.bf16.msra.mxu0 0
    %1619 = vmatprep.subr.bf16.mxu0 0
    %1620 = vmatpush1.bf16.msra.mxu0 0
    %1621 = vmatprep.subr.bf16.mxu0 0
    %1622 = vmatpush1.bf16.msra.mxu0 0
    %1623 = vmatprep.subr.bf16.mxu0 0
    %1624 = vmatpush1.bf16.msra.mxu0 0
    %1625 = vmatprep.subr.bf16.mxu0 0
    %1626 = vmatpush1.bf16.msra.mxu0 0
    %1627 = vmatprep.subr.bf16.mxu0 0
    %1628 = vmatpush1.bf16.msra.mxu0 0
    %1629 = vmatprep.subr.bf16.mxu0 0
    %1630 = vmatpush1.bf16.msra.mxu0 0
    %1631 = vmatprep.subr.bf16.mxu0 0
    %1632 = vmatpush1.bf16.msra.mxu0 0
    %1633 = vmatprep.subr.bf16.mxu0 0
    %1634 = vmatpush1.bf16.msra.mxu0 0
    %1635 = vmatprep.subr.bf16.mxu0 0
    %1636 = vmatpush1.bf16.msra.mxu0 0
    %1637 = vmatprep.subr.bf16.mxu0 0
    %1638 = vmatpush1.bf16.msra.mxu0 0
    %1639 = vmatprep.mubr.bf16.mxu0 0
    %1640 = vmatmul.mubr.bf16.gmra.mrb[0].mxu0 %v886
    %v1641 = vpop.f32.mrb[0].mxu0
    %v1642 = vadd.f32 0.0, %v1641
    %v1643 = vpop.f32.mrb[0].mxu0
    %v1644 = vadd.f32 0.0, %v1643
    %v1645 = vpop.f32.mrb[0].mxu0
    %v1646 = vpop.f32.mrb[0].mxu0
    %1647 = vdwg.mxu0
    %1648 = vmatprep.subr.bf16.mxu0 %v983
    %1649 = vmatpush1.bf16.msra.mxu0 %v980
    %1650 = vmatprep.subr.bf16.mxu0 0
    %1651 = vmatpush1.bf16.msra.mxu0 0
    %1652 = vmatprep.subr.bf16.mxu0 0
    %1653 = vmatpush1.bf16.msra.mxu0 0
    %1654 = vmatprep.subr.bf16.mxu0 0
    %1655 = vmatpush1.bf16.msra.mxu0 0
    %1656 = vmatprep.subr.bf16.mxu0 0
    %1657 = vmatpush1.bf16.msra.mxu0 0
    %1658 = vmatprep.subr.bf16.mxu0 0
    %1659 = vmatpush1.bf16.msra.mxu0 0
    %1660 = vmatprep.subr.bf16.mxu0 0
    %1661 = vmatpush1.bf16.msra.mxu0 0
    %1662 = vmatprep.subr.bf16.mxu0 0
    %1663 = vmatpush1.bf16.msra.mxu0 0
    %1664 = vmatprep.subr.bf16.mxu0 0
    %1665 = vmatpush1.bf16.msra.mxu0 0
    %1666 = vmatprep.subr.bf16.mxu0 0
    %1667 = vmatpush1.bf16.msra.mxu0 0
    %1668 = vmatprep.subr.bf16.mxu0 0
    %1669 = vmatpush1.bf16.msra.mxu0 0
    %1670 = vmatprep.subr.bf16.mxu0 0
    %1671 = vmatpush1.bf16.msra.mxu0 0
    %1672 = vmatprep.subr.bf16.mxu0 0
    %1673 = vmatpush1.bf16.msra.mxu0 0
    %1674 = vmatprep.subr.bf16.mxu0 0
    %1675 = vmatpush1.bf16.msra.mxu0 0
    %1676 = vmatprep.subr.bf16.mxu0 0
    %1677 = vmatpush1.bf16.msra.mxu0 0
    %1678 = vmatprep.subr.bf16.mxu0 0
    %1679 = vmatpush1.bf16.msra.mxu0 0
    %1680 = vmatprep.mubr.bf16.mxu0 0
    %1681 = vmatmul.mubr.bf16.gmra.mrb[0].mxu0 %v886
    %v1682 = vpop.f32.mrb[0].mxu0
    %v1683 = vadd.f32 0.0, %v1682
    %v1684 = vpop.f32.mrb[0].mxu0
    %v1685 = vadd.f32 0.0, %v1684
    %v1686 = vpop.f32.mrb[0].mxu0
    %v1687 = vpop.f32.mrb[0].mxu0
    %1688 = vdwg.mxu0
    %1689 = vmatprep.subr.bf16.mxu0 %v989
    %1690 = vmatpush1.bf16.msra.mxu0 %v986
    %1691 = vmatprep.subr.bf16.mxu0 0
    %1692 = vmatpush1.bf16.msra.mxu0 0
    %1693 = vmatprep.subr.bf16.mxu0 0
    %1694 = vmatpush1.bf16.msra.mxu0 0
    %1695 = vmatprep.subr.bf16.mxu0 0
    %1696 = vmatpush1.bf16.msra.mxu0 0
    %1697 = vmatprep.subr.bf16.mxu0 0
    %1698 = vmatpush1.bf16.msra.mxu0 0
    %1699 = vmatprep.subr.bf16.mxu0 0
    %1700 = vmatpush1.bf16.msra.mxu0 0
    %1701 = vmatprep.subr.bf16.mxu0 0
    %1702 = vmatpush1.bf16.msra.mxu0 0
    %1703 = vmatprep.subr.bf16.mxu0 0
    %1704 = vmatpush1.bf16.msra.mxu0 0
    %1705 = vmatprep.subr.bf16.mxu0 0
    %1706 = vmatpush1.bf16.msra.mxu0 0
    %1707 = vmatprep.subr.bf16.mxu0 0
    %1708 = vmatpush1.bf16.msra.mxu0 0
    %1709 = vmatprep.subr.bf16.mxu0 0
    %1710 = vmatpush1.bf16.msra.mxu0 0
    %1711 = vmatprep.subr.bf16.mxu0 0
    %1712 = vmatpush1.bf16.msra.mxu0 0
    %1713 = vmatprep.subr.bf16.mxu0 0
    %1714 = vmatpush1.bf16.msra.mxu0 0
    %1715 = vmatprep.subr.bf16.mxu0 0
    %1716 = vmatpush1.bf16.msra.mxu0 0
    %1717 = vmatprep.subr.bf16.mxu0 0
    %1718 = vmatpush1.bf16.msra.mxu0 0
    %1719 = vmatprep.subr.bf16.mxu0 0
    %1720 = vmatpush1.bf16.msra.mxu0 0
    %1721 = vmatprep.mubr.bf16.mxu0 0
    %1722 = vmatmul.mubr.bf16.gmra.mrb[0].mxu0 %v886
    %v1723 = vpop.f32.mrb[0].mxu0
    %v1724 = vadd.f32 0.0, %v1723
    %v1725 = vpop.f32.mrb[0].mxu0
    %v1726 = vadd.f32 0.0, %v1725
    %v1727 = vpop.f32.mrb[0].mxu0
    %v1728 = vpop.f32.mrb[0].mxu0
    %1729 = vdwg.mxu0
    %1730 = vmatprep.subr.bf16.mxu0 %v995
    %1731 = vmatpush1.bf16.msra.mxu0 %v992
    %1732 = vmatprep.subr.bf16.mxu0 0
    %1733 = vmatpush1.bf16.msra.mxu0 0
    %1734 = vmatprep.subr.bf16.mxu0 0
    %1735 = vmatpush1.bf16.msra.mxu0 0
    %1736 = vmatprep.subr.bf16.mxu0 0
    %1737 = vmatpush1.bf16.msra.mxu0 0
    %1738 = vmatprep.subr.bf16.mxu0 0
    %1739 = vmatpush1.bf16.msra.mxu0 0
    %1740 = vmatprep.subr.bf16.mxu0 0
    %1741 = vmatpush1.bf16.msra.mxu0 0
    %1742 = vmatprep.subr.bf16.mxu0 0
    %1743 = vmatpush1.bf16.msra.mxu0 0
    %1744 = vmatprep.subr.bf16.mxu0 0
    %1745 = vmatpush1.bf16.msra.mxu0 0
    %1746 = vmatprep.subr.bf16.mxu0 0
    %1747 = vmatpush1.bf16.msra.mxu0 0
    %1748 = vmatprep.subr.bf16.mxu0 0
    %1749 = vmatpush1.bf16.msra.mxu0 0
    %1750 = vmatprep.subr.bf16.mxu0 0
    %1751 = vmatpush1.bf16.msra.mxu0 0
    %1752 = vmatprep.subr.bf16.mxu0 0
    %1753 = vmatpush1.bf16.msra.mxu0 0
    %1754 = vmatprep.subr.bf16.mxu0 0
    %1755 = vmatpush1.bf16.msra.mxu0 0
    %1756 = vmatprep.subr.bf16.mxu0 0
    %1757 = vmatpush1.bf16.msra.mxu0 0
    %1758 = vmatprep.subr.bf16.mxu0 0
    %1759 = vmatpush1.bf16.msra.mxu0 0
    %1760 = vmatprep.subr.bf16.mxu0 0
    %1761 = vmatpush1.bf16.msra.mxu0 0
    %1762 = vmatprep.mubr.bf16.mxu0 0
    %1763 = vmatmul.mubr.bf16.gmra.mrb[0].mxu0 %v886
    %v1764 = vpop.f32.mrb[0].mxu0
    %v1765 = vadd.f32 0.0, %v1764
    %v1766 = vpop.f32.mrb[0].mxu0
    %v1767 = vadd.f32 0.0, %v1766
    %v1768 = vpop.f32.mrb[0].mxu0
    %v1769 = vpop.f32.mrb[0].mxu0
    %1770 = vdwg.mxu0
    %1771 = vmatprep.subr.bf16.mxu0 %v1001
    %1772 = vmatpush1.bf16.msra.mxu0 %v998
    %1773 = vmatprep.subr.bf16.mxu0 0
    %1774 = vmatpush1.bf16.msra.mxu0 0
    %1775 = vmatprep.subr.bf16.mxu0 0
    %1776 = vmatpush1.bf16.msra.mxu0 0
    %1777 = vmatprep.subr.bf16.mxu0 0
    %1778 = vmatpush1.bf16.msra.mxu0 0
    %1779 = vmatprep.subr.bf16.mxu0 0
    %1780 = vmatpush1.bf16.msra.mxu0 0
    %1781 = vmatprep.subr.bf16.mxu0 0
    %1782 = vmatpush1.bf16.msra.mxu0 0
    %1783 = vmatprep.subr.bf16.mxu0 0
    %1784 = vmatpush1.bf16.msra.mxu0 0
    %1785 = vmatprep.subr.bf16.mxu0 0
    %1786 = vmatpush1.bf16.msra.mxu0 0
    %1787 = vmatprep.subr.bf16.mxu0 0
    %1788 = vmatpush1.bf16.msra.mxu0 0
    %1789 = vmatprep.subr.bf16.mxu0 0
    %1790 = vmatpush1.bf16.msra.mxu0 0
    %1791 = vmatprep.subr.bf16.mxu0 0
    %1792 = vmatpush1.bf16.msra.mxu0 0
    %1793 = vmatprep.subr.bf16.mxu0 0
    %1794 = vmatpush1.bf16.msra.mxu0 0
    %1795 = vmatprep.subr.bf16.mxu0 0
    %1796 = vmatpush1.bf16.msra.mxu0 0
    %1797 = vmatprep.subr.bf16.mxu0 0
    %1798 = vmatpush1.bf16.msra.mxu0 0
    %1799 = vmatprep.subr.bf16.mxu0 0
    %1800 = vmatpush1.bf16.msra.mxu0 0
    %1801 = vmatprep.subr.bf16.mxu0 0
    %1802 = vmatpush1.bf16.msra.mxu0 0
    %1803 = vmatprep.mubr.bf16.mxu0 0
    %1804 = vmatmul.mubr.bf16.gmra.mrb[0].mxu0 %v886
    %v1805 = vpop.f32.mrb[0].mxu0
    %v1806 = vadd.f32 0.0, %v1805
    %v1807 = vpop.f32.mrb[0].mxu0
    %v1808 = vadd.f32 0.0, %v1807
    %v1809 = vpop.f32.mrb[0].mxu0
    %v1810 = vpop.f32.mrb[0].mxu0
    %1811 = vdwg.mxu0
    %1812 = vmatprep.subr.bf16.mxu0 %v1007
    %1813 = vmatpush1.bf16.msra.mxu0 %v1004
    %1814 = vmatprep.subr.bf16.mxu0 0
    %1815 = vmatpush1.bf16.msra.mxu0 0
    %1816 = vmatprep.subr.bf16.mxu0 0
    %1817 = vmatpush1.bf16.msra.mxu0 0
    %1818 = vmatprep.subr.bf16.mxu0 0
    %1819 = vmatpush1.bf16.msra.mxu0 0
    %1820 = vmatprep.subr.bf16.mxu0 0
    %1821 = vmatpush1.bf16.msra.mxu0 0
    %1822 = vmatprep.subr.bf16.mxu0 0
    %1823 = vmatpush1.bf16.msra.mxu0 0
    %1824 = vmatprep.subr.bf16.mxu0 0
    %1825 = vmatpush1.bf16.msra.mxu0 0
    %1826 = vmatprep.subr.bf16.mxu0 0
    %1827 = vmatpush1.bf16.msra.mxu0 0
    %1828 = vmatprep.subr.bf16.mxu0 0
    %1829 = vmatpush1.bf16.msra.mxu0 0
    %1830 = vmatprep.subr.bf16.mxu0 0
    %1831 = vmatpush1.bf16.msra.mxu0 0
    %1832 = vmatprep.subr.bf16.mxu0 0
    %1833 = vmatpush1.bf16.msra.mxu0 0
    %1834 = vmatprep.subr.bf16.mxu0 0
    %1835 = vmatpush1.bf16.msra.mxu0 0
    %1836 = vmatprep.subr.bf16.mxu0 0
    %1837 = vmatpush1.bf16.msra.mxu0 0
    %1838 = vmatprep.subr.bf16.mxu0 0
    %1839 = vmatpush1.bf16.msra.mxu0 0
    %1840 = vmatprep.subr.bf16.mxu0 0
    %1841 = vmatpush1.bf16.msra.mxu0 0
    %1842 = vmatprep.subr.bf16.mxu0 0
    %1843 = vmatpush1.bf16.msra.mxu0 0
    %1844 = vmatprep.mubr.bf16.mxu0 0
    %1845 = vmatmul.mubr.bf16.gmra.mrb[0].mxu0 %v886
    %v1846 = vpop.f32.mrb[0].mxu0
    %v1847 = vadd.f32 0.0, %v1846
    %v1848 = vpop.f32.mrb[0].mxu0
    %v1849 = vadd.f32 0.0, %v1848
    %v1850 = vpop.f32.mrb[0].mxu0
    %v1851 = vpop.f32.mrb[0].mxu0
    %1852 = vdwg.mxu0
    %1853 = vmatprep.subr.bf16.mxu0 %v1013
    %1854 = vmatpush1.bf16.msra.mxu0 %v1010
    %1855 = vmatprep.subr.bf16.mxu0 0
    %1856 = vmatpush1.bf16.msra.mxu0 0
    %1857 = vmatprep.subr.bf16.mxu0 0
    %1858 = vmatpush1.bf16.msra.mxu0 0
    %1859 = vmatprep.subr.bf16.mxu0 0
    %1860 = vmatpush1.bf16.msra.mxu0 0
    %1861 = vmatprep.subr.bf16.mxu0 0
    %1862 = vmatpush1.bf16.msra.mxu0 0
    %1863 = vmatprep.subr.bf16.mxu0 0
    %1864 = vmatpush1.bf16.msra.mxu0 0
    %1865 = vmatprep.subr.bf16.mxu0 0
    %1866 = vmatpush1.bf16.msra.mxu0 0
    %1867 = vmatprep.subr.bf16.mxu0 0
    %1868 = vmatpush1.bf16.msra.mxu0 0
    %1869 = vmatprep.subr.bf16.mxu0 0
    %1870 = vmatpush1.bf16.msra.mxu0 0
    %1871 = vmatprep.subr.bf16.mxu0 0
    %1872 = vmatpush1.bf16.msra.mxu0 0
    %1873 = vmatprep.subr.bf16.mxu0 0
    %1874 = vmatpush1.bf16.msra.mxu0 0
    %1875 = vmatprep.subr.bf16.mxu0 0
    %1876 = vmatpush1.bf16.msra.mxu0 0
    %1877 = vmatprep.subr.bf16.mxu0 0
    %1878 = vmatpush1.bf16.msra.mxu0 0
    %1879 = vmatprep.subr.bf16.mxu0 0
    %1880 = vmatpush1.bf16.msra.mxu0 0
    %1881 = vmatprep.subr.bf16.mxu0 0
    %1882 = vmatpush1.bf16.msra.mxu0 0
    %1883 = vmatprep.subr.bf16.mxu0 0
    %1884 = vmatpush1.bf16.msra.mxu0 0
    %1885 = vmatprep.mubr.bf16.mxu0 0
    %1886 = vmatmul.mubr.bf16.gmra.mrb[0].mxu0 %v886
    %v1887 = vpop.f32.mrb[0].mxu0
    %v1888 = vadd.f32 0.0, %v1887
    %v1889 = vpop.f32.mrb[0].mxu0
    %v1890 = vadd.f32 0.0, %v1889
    %v1891 = vpop.f32.mrb[0].mxu0
    %v1892 = vpop.f32.mrb[0].mxu0
    %1893 = vdwg.mxu0
    %1894 = vmatprep.subr.bf16.mxu0 %v1019
    %1895 = vmatpush1.bf16.msra.mxu0 %v1016
    %1896 = vmatprep.subr.bf16.mxu0 0
    %1897 = vmatpush1.bf16.msra.mxu0 0
    %1898 = vmatprep.subr.bf16.mxu0 0
    %1899 = vmatpush1.bf16.msra.mxu0 0
    %1900 = vmatprep.subr.bf16.mxu0 0
    %1901 = vmatpush1.bf16.msra.mxu0 0
    %1902 = vmatprep.subr.bf16.mxu0 0
    %1903 = vmatpush1.bf16.msra.mxu0 0
    %1904 = vmatprep.subr.bf16.mxu0 0
    %1905 = vmatpush1.bf16.msra.mxu0 0
    %1906 = vmatprep.subr.bf16.mxu0 0
    %1907 = vmatpush1.bf16.msra.mxu0 0
    %1908 = vmatprep.subr.bf16.mxu0 0
    %1909 = vmatpush1.bf16.msra.mxu0 0
    %1910 = vmatprep.subr.bf16.mxu0 0
    %1911 = vmatpush1.bf16.msra.mxu0 0
    %1912 = vmatprep.subr.bf16.mxu0 0
    %1913 = vmatpush1.bf16.msra.mxu0 0
    %1914 = vmatprep.subr.bf16.mxu0 0
    %1915 = vmatpush1.bf16.msra.mxu0 0
    %1916 = vmatprep.subr.bf16.mxu0 0
    %1917 = vmatpush1.bf16.msra.mxu0 0
    %1918 = vmatprep.subr.bf16.mxu0 0
    %1919 = vmatpush1.bf16.msra.mxu0 0
    %1920 = vmatprep.subr.bf16.mxu0 0
    %1921 = vmatpush1.bf16.msra.mxu0 0
    %1922 = vmatprep.subr.bf16.mxu0 0
    %1923 = vmatpush1.bf16.msra.mxu0 0
    %1924 = vmatprep.subr.bf16.mxu0 0
    %1925 = vmatpush1.bf16.msra.mxu0 0
    %1926 = vmatprep.mubr.bf16.mxu0 0
    %1927 = vmatmul.mubr.bf16.gmra.mrb[0].mxu0 %v886
    %v1928 = vpop.f32.mrb[0].mxu0
    %v1929 = vadd.f32 0.0, %v1928
    %v1930 = vpop.f32.mrb[0].mxu0
    %v1931 = vadd.f32 0.0, %v1930
    %v1932 = vpop.f32.mrb[0].mxu0
    %v1933 = vpop.f32.mrb[0].mxu0
    %1934 = vdwg.mxu0
    %1935 = vmatprep.subr.bf16.mxu0 %v1025
    %1936 = vmatpush1.bf16.msra.mxu0 %v1022
    %1937 = vmatprep.subr.bf16.mxu0 0
    %1938 = vmatpush1.bf16.msra.mxu0 0
    %1939 = vmatprep.subr.bf16.mxu0 0
    %1940 = vmatpush1.bf16.msra.mxu0 0
    %1941 = vmatprep.subr.bf16.mxu0 0
    %1942 = vmatpush1.bf16.msra.mxu0 0
    %1943 = vmatprep.subr.bf16.mxu0 0
    %1944 = vmatpush1.bf16.msra.mxu0 0
    %1945 = vmatprep.subr.bf16.mxu0 0
    %1946 = vmatpush1.bf16.msra.mxu0 0
    %1947 = vmatprep.subr.bf16.mxu0 0
    %1948 = vmatpush1.bf16.msra.mxu0 0
    %1949 = vmatprep.subr.bf16.mxu0 0
    %1950 = vmatpush1.bf16.msra.mxu0 0
    %1951 = vmatprep.subr.bf16.mxu0 0
    %1952 = vmatpush1.bf16.msra.mxu0 0
    %1953 = vmatprep.subr.bf16.mxu0 0
    %1954 = vmatpush1.bf16.msra.mxu0 0
    %1955 = vmatprep.subr.bf16.mxu0 0
    %1956 = vmatpush1.bf16.msra.mxu0 0
    %1957 = vmatprep.subr.bf16.mxu0 0
    %1958 = vmatpush1.bf16.msra.mxu0 0
    %1959 = vmatprep.subr.bf16.mxu0 0
    %1960 = vmatpush1.bf16.msra.mxu0 0
    %1961 = vmatprep.subr.bf16.mxu0 0
    %1962 = vmatpush1.bf16.msra.mxu0 0
    %1963 = vmatprep.subr.bf16.mxu0 0
    %1964 = vmatpush1.bf16.msra.mxu0 0
    %1965 = vmatprep.subr.bf16.mxu0 0
    %1966 = vmatpush1.bf16.msra.mxu0 0
    %1967 = vmatprep.mubr.bf16.mxu0 0
    %1968 = vmatmul.mubr.bf16.gmra.mrb[0].mxu0 %v886
    %v1969 = vpop.f32.mrb[0].mxu0
    %v1970 = vadd.f32 0.0, %v1969
    %v1971 = vpop.f32.mrb[0].mxu0
    %v1972 = vadd.f32 0.0, %v1971
    %v1973 = vpop.f32.mrb[0].mxu0
    %v1974 = vpop.f32.mrb[0].mxu0
    %1975 = vdwg.mxu0
    %1976 = vmatprep.subr.bf16.mxu0 %v1031
    %1977 = vmatpush1.bf16.msra.mxu0 %v1028
    %1978 = vmatprep.subr.bf16.mxu0 0
    %1979 = vmatpush1.bf16.msra.mxu0 0
    %1980 = vmatprep.subr.bf16.mxu0 0
    %1981 = vmatpush1.bf16.msra.mxu0 0
    %1982 = vmatprep.subr.bf16.mxu0 0
    %1983 = vmatpush1.bf16.msra.mxu0 0
    %1984 = vmatprep.subr.bf16.mxu0 0
    %1985 = vmatpush1.bf16.msra.mxu0 0
    %1986 = vmatprep.subr.bf16.mxu0 0
    %1987 = vmatpush1.bf16.msra.mxu0 0
    %1988 = vmatprep.subr.bf16.mxu0 0
    %1989 = vmatpush1.bf16.msra.mxu0 0
    %1990 = vmatprep.subr.bf16.mxu0 0
    %1991 = vmatpush1.bf16.msra.mxu0 0
    %1992 = vmatprep.subr.bf16.mxu0 0
    %1993 = vmatpush1.bf16.msra.mxu0 0
    %1994 = vmatprep.subr.bf16.mxu0 0
    %1995 = vmatpush1.bf16.msra.mxu0 0
    %1996 = vmatprep.subr.bf16.mxu0 0
    %1997 = vmatpush1.bf16.msra.mxu0 0
    %1998 = vmatprep.subr.bf16.mxu0 0
    %1999 = vmatpush1.bf16.msra.mxu0 0
    %2000 = vmatprep.subr.bf16.mxu0 0
    %2001 = vmatpush1.bf16.msra.mxu0 0
    %2002 = vmatprep.subr.bf16.mxu0 0
    %2003 = vmatpush1.bf16.msra.mxu0 0
    %2004 = vmatprep.subr.bf16.mxu0 0
    %2005 = vmatpush1.bf16.msra.mxu0 0
    %2006 = vmatprep.subr.bf16.mxu0 0
    %2007 = vmatpush1.bf16.msra.mxu0 0
    %2008 = vmatprep.mubr.bf16.mxu0 0
    %2009 = vmatmul.mubr.bf16.gmra.mrb[0].mxu0 %v886
    %v2010 = vpop.f32.mrb[0].mxu0
    %v2011 = vadd.f32 0.0, %v2010
    %v2012 = vpop.f32.mrb[0].mxu0
    %v2013 = vadd.f32 0.0, %v2012
    %v2014 = vpop.f32.mrb[0].mxu0
    %v2015 = vpop.f32.mrb[0].mxu0
    %2016 = vdwg.mxu0
    %v2017 = vpack.c.bf16 %v1068, %v1068
    %v2018 = vpack.c.bf16 %v1070, %v1070
    %v2019 = vpack.c.bf16 %v1109, %v1109
    %v2020 = vpack.c.bf16 %v1111, %v1111
    %v2021 = vpack.c.bf16 %v1150, %v1150
    %v2022 = vpack.c.bf16 %v1152, %v1152
    %v2023 = vpack.c.bf16 %v1191, %v1191
    %v2024 = vpack.c.bf16 %v1193, %v1193
    %v2025 = vpack.c.bf16 %v1232, %v1232
    %v2026 = vpack.c.bf16 %v1234, %v1234
    %v2027 = vpack.c.bf16 %v1273, %v1273
    %v2028 = vpack.c.bf16 %v1275, %v1275
    %v2029 = vpack.c.bf16 %v1314, %v1314
    %v2030 = vpack.c.bf16 %v1316, %v1316
    %v2031 = vpack.c.bf16 %v1355, %v1355
    %v2032 = vpack.c.bf16 %v1357, %v1357
    %v2033 = vpack.c.bf16 %v1396, %v1396
    %v2034 = vpack.c.bf16 %v1398, %v1398
    %v2035 = vpack.c.bf16 %v1437, %v1437
    %v2036 = vpack.c.bf16 %v1439, %v1439
    %v2037 = vpack.c.bf16 %v1478, %v1478
    %v2038 = vpack.c.bf16 %v1480, %v1480
    %v2039 = vpack.c.bf16 %v1519, %v1519
    %v2040 = vpack.c.bf16 %v1521, %v1521
    %v2041 = vpack.c.bf16 %v1560, %v1560
    %v2042 = vpack.c.bf16 %v1562, %v1562
    %v2043 = vpack.c.bf16 %v1601, %v1601
    %v2044 = vpack.c.bf16 %v1603, %v1603
    %v2045 = vpack.c.bf16 %v1642, %v1642
    %v2046 = vpack.c.bf16 %v1644, %v1644
    %v2047 = vpack.c.bf16 %v1683, %v1683
    %v2048 = vpack.c.bf16 %v1685, %v1685
    %v2049 = vpack.c.bf16 %v1724, %v1724
    %v2050 = vpack.c.bf16 %v1726, %v1726
    %v2051 = vpack.c.bf16 %v1765, %v1765
    %v2052 = vpack.c.bf16 %v1767, %v1767
    %v2053 = vpack.c.bf16 %v1806, %v1806
    %v2054 = vpack.c.bf16 %v1808, %v1808
    %v2055 = vpack.c.bf16 %v1847, %v1847
    %v2056 = vpack.c.bf16 %v1849, %v1849
    %v2057 = vpack.c.bf16 %v1888, %v1888
    %v2058 = vpack.c.bf16 %v1890, %v1890
    %v2059 = vpack.c.bf16 %v1929, %v1929
    %v2060 = vpack.c.bf16 %v1931, %v1931
    %v2061 = vpack.c.bf16 %v1970, %v1970
    %v2062 = vpack.c.bf16 %v1972, %v1972
    %v2063 = vpack.c.bf16 %v2011, %v2011
    %v2064 = vpack.c.bf16 %v2013, %v2013
    %v2113 = vcombine.low %v2017, %v2018
    %v2114 = vcombine.low %v2019, %v2020
    %v2115 = vcombine.low %v2021, %v2022
    %v2116 = vcombine.low %v2023, %v2024
    %v2118 = vunpack.c.l.s4 1966171168
    %v2119 = vunpack.c.0.s8 %v2118
    %v2120 = vlaneseq
    %v2121 = vshrl.u32 %v2120, 7
    %v2122 = vsub.s32 %v2119, %v2121
    %v2123 = vrot.slane %v2113, %v2122
    %v2125 = vunpack.c.l.s4 1966171168
    %v2126 = vunpack.c.0.s8 %v2125
    %v2127 = vlaneseq
    %v2128 = vshrl.u32 %v2127, 7
    %v2129 = vsub.s32 %v2126, %v2128
    %v2130 = vrot.slane %v2114, %v2129
    %v2132 = vunpack.c.l.s4 1966171168
    %v2133 = vunpack.c.0.s8 %v2132
    %v2134 = vlaneseq
    %v2135 = vshrl.u32 %v2134, 7
    %v2136 = vsub.s32 %v2133, %v2135
    %v2137 = vrot.slane %v2115, %v2136
    %v2139 = vunpack.c.l.s4 1966171168
    %v2140 = vunpack.c.0.s8 %v2139
    %v2141 = vlaneseq
    %v2142 = vshrl.u32 %v2141, 7
    %v2143 = vsub.s32 %v2140, %v2142
    %v2144 = vrot.slane %v2116, %v2143
    %v2145 = vcombine.low %v2123, %v2130
    %v2146 = vcombine.low %v2137, %v2144
    %v2148 = vunpack.c.l.s4 1966171168
    %v2149 = vunpack.c.0.s8 %v2148
    %v2150 = vlaneseq
    %v2151 = vshrl.u32 %v2150, 7
    %v2152 = vsub.s32 %v2149, %v2151
    %v2153 = vrot.slane %v2145, %v2152
    %v2155 = vunpack.c.l.s4 1966171168
    %v2156 = vunpack.c.0.s8 %v2155
    %v2157 = vlaneseq
    %v2158 = vshrl.u32 %v2157, 7
    %v2159 = vsub.s32 %v2156, %v2158
    %v2160 = vrot.slane %v2146, %v2159
    %v2161 = vcombine.low %v2153, %v2160
    %v2162 = vcombine.low %v2025, %v2026
    %v2163 = vcombine.low %v2027, %v2028
    %v2164 = vcombine.low %v2029, %v2030
    %v2165 = vcombine.low %v2031, %v2032
    %v2167 = vunpack.c.l.s4 1966171168
    %v2168 = vunpack.c.0.s8 %v2167
    %v2169 = vlaneseq
    %v2170 = vshrl.u32 %v2169, 7
    %v2171 = vsub.s32 %v2168, %v2170
    %v2172 = vrot.slane %v2162, %v2171
    %v2174 = vunpack.c.l.s4 1966171168
    %v2175 = vunpack.c.0.s8 %v2174
    %v2176 = vlaneseq
    %v2177 = vshrl.u32 %v2176, 7
    %v2178 = vsub.s32 %v2175, %v2177
    %v2179 = vrot.slane %v2163, %v2178
    %v2181 = vunpack.c.l.s4 1966171168
    %v2182 = vunpack.c.0.s8 %v2181
    %v2183 = vlaneseq
    %v2184 = vshrl.u32 %v2183, 7
    %v2185 = vsub.s32 %v2182, %v2184
    %v2186 = vrot.slane %v2164, %v2185
    %v2188 = vunpack.c.l.s4 1966171168
    %v2189 = vunpack.c.0.s8 %v2188
    %v2190 = vlaneseq
    %v2191 = vshrl.u32 %v2190, 7
    %v2192 = vsub.s32 %v2189, %v2191
    %v2193 = vrot.slane %v2165, %v2192
    %v2194 = vcombine.low %v2172, %v2179
    %v2195 = vcombine.low %v2186, %v2193
    %v2197 = vunpack.c.l.s4 1966171168
    %v2198 = vunpack.c.0.s8 %v2197
    %v2199 = vlaneseq
    %v2200 = vshrl.u32 %v2199, 7
    %v2201 = vsub.s32 %v2198, %v2200
    %v2202 = vrot.slane %v2194, %v2201
    %v2204 = vunpack.c.l.s4 1966171168
    %v2205 = vunpack.c.0.s8 %v2204
    %v2206 = vlaneseq
    %v2207 = vshrl.u32 %v2206, 7
    %v2208 = vsub.s32 %v2205, %v2207
    %v2209 = vrot.slane %v2195, %v2208
    %v2210 = vcombine.low %v2202, %v2209
    %v2211 = vcombine.low %v2033, %v2034
    %v2212 = vcombine.low %v2035, %v2036
    %v2213 = vcombine.low %v2037, %v2038
    %v2214 = vcombine.low %v2039, %v2040
    %v2216 = vunpack.c.l.s4 1966171168
    %v2217 = vunpack.c.0.s8 %v2216
    %v2218 = vlaneseq
    %v2219 = vshrl.u32 %v2218, 7
    %v2220 = vsub.s32 %v2217, %v2219
    %v2221 = vrot.slane %v2211, %v2220
    %v2223 = vunpack.c.l.s4 1966171168
    %v2224 = vunpack.c.0.s8 %v2223
    %v2225 = vlaneseq
    %v2226 = vshrl.u32 %v2225, 7
    %v2227 = vsub.s32 %v2224, %v2226
    %v2228 = vrot.slane %v2212, %v2227
    %v2230 = vunpack.c.l.s4 1966171168
    %v2231 = vunpack.c.0.s8 %v2230
    %v2232 = vlaneseq
    %v2233 = vshrl.u32 %v2232, 7
    %v2234 = vsub.s32 %v2231, %v2233
    %v2235 = vrot.slane %v2213, %v2234
    %v2237 = vunpack.c.l.s4 1966171168
    %v2238 = vunpack.c.0.s8 %v2237
    %v2239 = vlaneseq
    %v2240 = vshrl.u32 %v2239, 7
    %v2241 = vsub.s32 %v2238, %v2240
    %v2242 = vrot.slane %v2214, %v2241
    %v2243 = vcombine.low %v2221, %v2228
    %v2244 = vcombine.low %v2235, %v2242
    %v2246 = vunpack.c.l.s4 1966171168
    %v2247 = vunpack.c.0.s8 %v2246
    %v2248 = vlaneseq
    %v2249 = vshrl.u32 %v2248, 7
    %v2250 = vsub.s32 %v2247, %v2249
    %v2251 = vrot.slane %v2243, %v2250
    %v2253 = vunpack.c.l.s4 1966171168
    %v2254 = vunpack.c.0.s8 %v2253
    %v2255 = vlaneseq
    %v2256 = vshrl.u32 %v2255, 7
    %v2257 = vsub.s32 %v2254, %v2256
    %v2258 = vrot.slane %v2244, %v2257
    %v2259 = vcombine.low %v2251, %v2258
    %v2260 = vcombine.low %v2041, %v2042
    %v2261 = vcombine.low %v2043, %v2044
    %v2262 = vcombine.low %v2045, %v2046
    %v2263 = vcombine.low %v2047, %v2048
    %v2265 = vunpack.c.l.s4 1966171168
    %v2266 = vunpack.c.0.s8 %v2265
    %v2267 = vlaneseq
    %v2268 = vshrl.u32 %v2267, 7
    %v2269 = vsub.s32 %v2266, %v2268
    %v2270 = vrot.slane %v2260, %v2269
    %v2272 = vunpack.c.l.s4 1966171168
    %v2273 = vunpack.c.0.s8 %v2272
    %v2274 = vlaneseq
    %v2275 = vshrl.u32 %v2274, 7
    %v2276 = vsub.s32 %v2273, %v2275
    %v2277 = vrot.slane %v2261, %v2276
    %v2279 = vunpack.c.l.s4 1966171168
    %v2280 = vunpack.c.0.s8 %v2279
    %v2281 = vlaneseq
    %v2282 = vshrl.u32 %v2281, 7
    %v2283 = vsub.s32 %v2280, %v2282
    %v2284 = vrot.slane %v2262, %v2283
    %v2286 = vunpack.c.l.s4 1966171168
    %v2287 = vunpack.c.0.s8 %v2286
    %v2288 = vlaneseq
    %v2289 = vshrl.u32 %v2288, 7
    %v2290 = vsub.s32 %v2287, %v2289
    %v2291 = vrot.slane %v2263, %v2290
    %v2292 = vcombine.low %v2270, %v2277
    %v2293 = vcombine.low %v2284, %v2291
    %v2295 = vunpack.c.l.s4 1966171168
    %v2296 = vunpack.c.0.s8 %v2295
    %v2297 = vlaneseq
    %v2298 = vshrl.u32 %v2297, 7
    %v2299 = vsub.s32 %v2296, %v2298
    %v2300 = vrot.slane %v2292, %v2299
    %v2302 = vunpack.c.l.s4 1966171168
    %v2303 = vunpack.c.0.s8 %v2302
    %v2304 = vlaneseq
    %v2305 = vshrl.u32 %v2304, 7
    %v2306 = vsub.s32 %v2303, %v2305
    %v2307 = vrot.slane %v2293, %v2306
    %v2308 = vcombine.low %v2300, %v2307
    %v2309 = vcombine.low %v2049, %v2050
    %v2310 = vcombine.low %v2051, %v2052
    %v2311 = vcombine.low %v2053, %v2054
    %v2312 = vcombine.low %v2055, %v2056
    %v2314 = vunpack.c.l.s4 1966171168
    %v2315 = vunpack.c.0.s8 %v2314
    %v2316 = vlaneseq
    %v2317 = vshrl.u32 %v2316, 7
    %v2318 = vsub.s32 %v2315, %v2317
    %v2319 = vrot.slane %v2309, %v2318
    %v2321 = vunpack.c.l.s4 1966171168
    %v2322 = vunpack.c.0.s8 %v2321
    %v2323 = vlaneseq
    %v2324 = vshrl.u32 %v2323, 7
    %v2325 = vsub.s32 %v2322, %v2324
    %v2326 = vrot.slane %v2310, %v2325
    %v2328 = vunpack.c.l.s4 1966171168
    %v2329 = vunpack.c.0.s8 %v2328
    %v2330 = vlaneseq
    %v2331 = vshrl.u32 %v2330, 7
    %v2332 = vsub.s32 %v2329, %v2331
    %v2333 = vrot.slane %v2311, %v2332
    %v2335 = vunpack.c.l.s4 1966171168
    %v2336 = vunpack.c.0.s8 %v2335
    %v2337 = vlaneseq
    %v2338 = vshrl.u32 %v2337, 7
    %v2339 = vsub.s32 %v2336, %v2338
    %v2340 = vrot.slane %v2312, %v2339
    %v2341 = vcombine.low %v2319, %v2326
    %v2342 = vcombine.low %v2333, %v2340
    %v2344 = vunpack.c.l.s4 1966171168
    %v2345 = vunpack.c.0.s8 %v2344
    %v2346 = vlaneseq
    %v2347 = vshrl.u32 %v2346, 7
    %v2348 = vsub.s32 %v2345, %v2347
    %v2349 = vrot.slane %v2341, %v2348
    %v2351 = vunpack.c.l.s4 1966171168
    %v2352 = vunpack.c.0.s8 %v2351
    %v2353 = vlaneseq
    %v2354 = vshrl.u32 %v2353, 7
    %v2355 = vsub.s32 %v2352, %v2354
    %v2356 = vrot.slane %v2342, %v2355
    %v2357 = vcombine.low %v2349, %v2356
    %v2358 = vcombine.low %v2057, %v2058
    %v2359 = vcombine.low %v2059, %v2060
    %v2360 = vcombine.low %v2061, %v2062
    %v2361 = vcombine.low %v2063, %v2064
    %v2363 = vunpack.c.l.s4 1966171168
    %v2364 = vunpack.c.0.s8 %v2363
    %v2365 = vlaneseq
    %v2366 = vshrl.u32 %v2365, 7
    %v2367 = vsub.s32 %v2364, %v2366
    %v2368 = vrot.slane %v2358, %v2367
    %v2370 = vunpack.c.l.s4 1966171168
    %v2371 = vunpack.c.0.s8 %v2370
    %v2372 = vlaneseq
    %v2373 = vshrl.u32 %v2372, 7
    %v2374 = vsub.s32 %v2371, %v2373
    %v2375 = vrot.slane %v2359, %v2374
    %v2377 = vunpack.c.l.s4 1966171168
    %v2378 = vunpack.c.0.s8 %v2377
    %v2379 = vlaneseq
    %v2380 = vshrl.u32 %v2379, 7
    %v2381 = vsub.s32 %v2378, %v2380
    %v2382 = vrot.slane %v2360, %v2381
    %v2384 = vunpack.c.l.s4 1966171168
    %v2385 = vunpack.c.0.s8 %v2384
    %v2386 = vlaneseq
    %v2387 = vshrl.u32 %v2386, 7
    %v2388 = vsub.s32 %v2385, %v2387
    %v2389 = vrot.slane %v2361, %v2388
    %v2390 = vcombine.low %v2368, %v2375
    %v2391 = vcombine.low %v2382, %v2389
    %v2393 = vunpack.c.l.s4 1966171168
    %v2394 = vunpack.c.0.s8 %v2393
    %v2395 = vlaneseq
    %v2396 = vshrl.u32 %v2395, 7
    %v2397 = vsub.s32 %v2394, %v2396
    %v2398 = vrot.slane %v2390, %v2397
    %v2400 = vunpack.c.l.s4 1966171168
    %v2401 = vunpack.c.0.s8 %v2400
    %v2402 = vlaneseq
    %v2403 = vshrl.u32 %v2402, 7
    %v2404 = vsub.s32 %v2401, %v2403
    %v2405 = vrot.slane %v2391, %v2404
    %v2406 = vcombine.low %v2398, %v2405
    %2413 = vst [vmem:[#allocation12] sm:$0xff] %v2161
    %2414 = vst [vmem:[#allocation12 + $0x8] sm:$0xff] %v2210
    %2415 = vst [vmem:[#allocation12 + $0x10] sm:$0xff] %v2259
    %2416 = vst [vmem:[#allocation12 + $0x18] sm:$0xff] %v2308
    %2417 = vst [vmem:[#allocation12 + $0x20] sm:$0xff] %v2357
    %2418 = vst [vmem:[#allocation12 + $0x28] sm:$0xff] %v2406
    %v2419 = vld [vmem:[%s5] sm:$0xff]
    %v2420 = vld [vmem:[%s5 + $0x8] sm:$0xf]
    %v2421 = vld [vmem:[#allocation11] sm:$0xff]
    %v2422 = vld [vmem:[#allocation11 + $0x8] sm:$0xff]
    %v2423 = vld [vmem:[#allocation11 + $0x10] sm:$0xff]
    %v2424 = vld [vmem:[#allocation11 + $0x18] sm:$0xff]
    %v2425 = vld [vmem:[#allocation11 + $0x20] sm:$0xff]
    %v2426 = vld [vmem:[#allocation11 + $0x28] sm:$0xff]
    %v2427 = vld [vmem:[#allocation11 + $0x30] sm:$0xff]
    %v2428 = vld [vmem:[#allocation11 + $0x38] sm:$0xff]
    %v2429 = vld [vmem:[#allocation11 + $0x40] sm:$0xff]
    %v2430 = vld [vmem:[#allocation11 + $0x48] sm:$0xff]
    %v2431 = vld [vmem:[#allocation11 + $0x50] sm:$0xff]
    %v2432 = vld [vmem:[#allocation11 + $0x58] sm:$0xff]
    %v2433 = vld [vmem:[#allocation11 + $0x60] sm:$0xf]
    %v2434 = vld [vmem:[#allocation11 + $0x68] sm:$0xf]
    %v2435 = vld [vmem:[#allocation11 + $0x70] sm:$0xf]
    %v2436 = vld [vmem:[#allocation11 + $0x78] sm:$0xf]
    %v2437 = vld [vmem:[#allocation11 + $0x80] sm:$0xf]
    %v2438 = vld [vmem:[#allocation11 + $0x88] sm:$0xf]
    %v2441 = vcombine.high %v2419, %v2419
    %v2443 = vunpack.c.l.s4 1983009808
    %v2444 = vunpack.c.0.s8 %v2443
    %v2445 = vlaneseq
    %v2446 = vshrl.u32 %v2445, 7
    %v2447 = vsub.s32 %v2444, %v2446
    %v2448 = vrot.slane %v2419, %v2447
    %v2450 = vunpack.c.l.s4 1983009808
    %v2451 = vunpack.c.0.s8 %v2450
    %v2452 = vlaneseq
    %v2453 = vshrl.u32 %v2452, 7
    %v2454 = vsub.s32 %v2451, %v2453
    %v2455 = vrot.slane %v2441, %v2454
    %v2456 = vcombine.high %v2448, %v2448
    %v2457 = vcombine.high %v2455, %v2455
    %v2459 = vunpack.c.l.s4 1983009808
    %v2460 = vunpack.c.0.s8 %v2459
    %v2461 = vlaneseq
    %v2462 = vshrl.u32 %v2461, 7
    %v2463 = vsub.s32 %v2460, %v2462
    %v2464 = vrot.slane %v2420, %v2463
    %v2465 = vcombine.high %v2464, %v2464
    %2472 = vmatprep.subr.mxu0 %v2422
    %2473 = vmatpush1.xpose.msra.mxu0 %v2421
    %2474 = vmatprep.subr.mxu0 %v2428
    %2475 = vmatpush1.xpose.msra.mxu0 %v2427
    %2476 = vmatprep.subr.mxu0 %v2434
    %2477 = vmatpush1.xpose.msra.mxu0 %v2433
    %2478 = vmatprep.subr.mxu0 0.0
    %2479 = vmatpush1.xpose.msra.mxu0 0.0
    %2480 = vmatprep.subr.mxu0 0.0
    %2481 = vmatpush1.xpose.msra.mxu0 0.0
    %2482 = vmatprep.subr.mxu0 0.0
    %2483 = vmatpush1.xpose.msra.mxu0 0.0
    %2484 = vmatprep.subr.mxu0 0.0
    %2485 = vmatpush1.xpose.msra.mxu0 0.0
    %2486 = vmatprep.subr.mxu0 0.0
    %2487 = vmatpush1.xpose.msra.mxu0 0.0
    %2488 = vmatprep.subr.mxu0 0.0
    %2489 = vmatpush1.xpose.msra.mxu0 0.0
    %2490 = vmatprep.subr.mxu0 0.0
    %2491 = vmatpush1.xpose.msra.mxu0 0.0
    %2492 = vmatprep.subr.mxu0 0.0
    %2493 = vmatpush1.xpose.msra.mxu0 0.0
    %2494 = vmatprep.subr.mxu0 0.0
    %2495 = vmatpush1.xpose.msra.mxu0 0.0
    %2496 = vmatprep.subr.mxu0 0.0
    %2497 = vmatpush1.xpose.msra.mxu0 0.0
    %2498 = vmatprep.subr.mxu0 0.0
    %2499 = vmatpush1.xpose.msra.mxu0 0.0
    %2500 = vmatprep.subr.mxu0 0.0
    %2501 = vmatpush1.xpose.msra.mxu0 0.0
    %2502 = vmatprep.subr.mxu0 0.0
    %2503 = vmatpush1.xpose.msra.mxu0 0.0
    %2504 = vmatprep.subr.mxu0 0.0
    %2505 = vmatpush1.xpose.msra.mxu0 0.0
    %2506 = vmatprep.subr.mxu0 0.0
    %2507 = vmatpush1.xpose.msra.mxu0 0.0
    %2508 = vmatprep.subr.mxu0 0.0
    %2509 = vmatpush1.xpose.msra.mxu0 0.0
    %2510 = vmatprep.subr.mxu0 0.0
    %2511 = vmatpush1.xpose.msra.mxu0 0.0
    %2512 = vmatprep.subr.mxu0 0.0
    %2513 = vmatpush1.xpose.msra.mxu0 0.0
    %2514 = vmatprep.subr.mxu0 0.0
    %2515 = vmatpush1.xpose.msra.mxu0 0.0
    %2516 = vmatprep.subr.mxu0 0.0
    %2517 = vmatpush1.xpose.msra.mxu0 0.0
    %2518 = vmatprep.subr.mxu0 0.0
    %2519 = vmatpush1.xpose.msra.mxu0 0.0
    %2520 = vmatprep.subr.mxu0 0.0
    %2521 = vmatpush1.xpose.msra.mxu0 0.0
    %2522 = vmatprep.subr.mxu0 0.0
    %2523 = vmatpush1.xpose.msra.mxu0 0.0
    %2524 = vmatprep.subr.mxu0 0.0
    %2525 = vmatpush1.xpose.msra.mxu0 0.0
    %2526 = vmatprep.subr.mxu0 0.0
    %2527 = vmatpush1.xpose.msra.mxu0 0.0
    %2528 = vmatprep.subr.mxu0 0.0
    %2529 = vmatpush1.xpose.msra.mxu0 0.0
    %2530 = vmatprep.subr.mxu0 0.0
    %2531 = vmatpush1.xpose.msra.mxu0 0.0
    %2532 = vmatprep.subr.mxu0 0.0
    %2533 = vmatpush1.xpose.msra.mxu0 0.0
    %2534 = vmatprep.subr.mxu0 0.0
    %2535 = vmatpush1.xpose.msra.mxu0 0.0
    %2536 = vmatprep.mubr.f32.mxu0 %v2456
    %2537 = vmatmul.mubr.f32.gmra.mrb[0].mxu0 %v2448
    %v2538 = vpop.f32.mrb[0].mxu0
    %v2539 = vadd.f32 0.0, %v2538
    %v2540 = vpop.f32.mrb[0].mxu0
    %2541 = vdwg.mxu0
    %2542 = vmatprep.subr.mxu0 %v2424
    %2543 = vmatpush1.xpose.msra.mxu0 %v2423
    %2544 = vmatprep.subr.mxu0 %v2430
    %2545 = vmatpush1.xpose.msra.mxu0 %v2429
    %2546 = vmatprep.subr.mxu0 %v2436
    %2547 = vmatpush1.xpose.msra.mxu0 %v2435
    %2548 = vmatprep.subr.mxu0 0.0
    %2549 = vmatpush1.xpose.msra.mxu0 0.0
    %2550 = vmatprep.subr.mxu0 0.0
    %2551 = vmatpush1.xpose.msra.mxu0 0.0
    %2552 = vmatprep.subr.mxu0 0.0
    %2553 = vmatpush1.xpose.msra.mxu0 0.0
    %2554 = vmatprep.subr.mxu0 0.0
    %2555 = vmatpush1.xpose.msra.mxu0 0.0
    %2556 = vmatprep.subr.mxu0 0.0
    %2557 = vmatpush1.xpose.msra.mxu0 0.0
    %2558 = vmatprep.subr.mxu0 0.0
    %2559 = vmatpush1.xpose.msra.mxu0 0.0
    %2560 = vmatprep.subr.mxu0 0.0
    %2561 = vmatpush1.xpose.msra.mxu0 0.0
    %2562 = vmatprep.subr.mxu0 0.0
    %2563 = vmatpush1.xpose.msra.mxu0 0.0
    %2564 = vmatprep.subr.mxu0 0.0
    %2565 = vmatpush1.xpose.msra.mxu0 0.0
    %2566 = vmatprep.subr.mxu0 0.0
    %2567 = vmatpush1.xpose.msra.mxu0 0.0
    %2568 = vmatprep.subr.mxu0 0.0
    %2569 = vmatpush1.xpose.msra.mxu0 0.0
    %2570 = vmatprep.subr.mxu0 0.0
    %2571 = vmatpush1.xpose.msra.mxu0 0.0
    %2572 = vmatprep.subr.mxu0 0.0
    %2573 = vmatpush1.xpose.msra.mxu0 0.0
    %2574 = vmatprep.subr.mxu0 0.0
    %2575 = vmatpush1.xpose.msra.mxu0 0.0
    %2576 = vmatprep.subr.mxu0 0.0
    %2577 = vmatpush1.xpose.msra.mxu0 0.0
    %2578 = vmatprep.subr.mxu0 0.0
    %2579 = vmatpush1.xpose.msra.mxu0 0.0
    %2580 = vmatprep.subr.mxu0 0.0
    %2581 = vmatpush1.xpose.msra.mxu0 0.0
    %2582 = vmatprep.subr.mxu0 0.0
    %2583 = vmatpush1.xpose.msra.mxu0 0.0
    %2584 = vmatprep.subr.mxu0 0.0
    %2585 = vmatpush1.xpose.msra.mxu0 0.0
    %2586 = vmatprep.subr.mxu0 0.0
    %2587 = vmatpush1.xpose.msra.mxu0 0.0
    %2588 = vmatprep.subr.mxu0 0.0
    %2589 = vmatpush1.xpose.msra.mxu0 0.0
    %2590 = vmatprep.subr.mxu0 0.0
    %2591 = vmatpush1.xpose.msra.mxu0 0.0
    %2592 = vmatprep.subr.mxu0 0.0
    %2593 = vmatpush1.xpose.msra.mxu0 0.0
    %2594 = vmatprep.subr.mxu0 0.0
    %2595 = vmatpush1.xpose.msra.mxu0 0.0
    %2596 = vmatprep.subr.mxu0 0.0
    %2597 = vmatpush1.xpose.msra.mxu0 0.0
    %2598 = vmatprep.subr.mxu0 0.0
    %2599 = vmatpush1.xpose.msra.mxu0 0.0
    %2600 = vmatprep.subr.mxu0 0.0
    %2601 = vmatpush1.xpose.msra.mxu0 0.0
    %2602 = vmatprep.subr.mxu0 0.0
    %2603 = vmatpush1.xpose.msra.mxu0 0.0
    %2604 = vmatprep.subr.mxu0 0.0
    %2605 = vmatpush1.xpose.msra.mxu0 0.0
    %2606 = vmatprep.mubr.f32.mxu0 %v2457
    %2607 = vmatmul.mubr.f32.gmra.mrb[0].mxu0 %v2455
    %v2608 = vpop.f32.mrb[0].mxu0
    %v2609 = vadd.f32 %v2539, %v2608
    %v2610 = vpop.f32.mrb[0].mxu0
    %2611 = vdwg.mxu0
    %2612 = vmatprep.subr.mxu0 %v2426
    %2613 = vmatpush1.xpose.msra.mxu0 %v2425
    %2614 = vmatprep.subr.mxu0 %v2432
    %2615 = vmatpush1.xpose.msra.mxu0 %v2431
    %2616 = vmatprep.subr.mxu0 %v2438
    %2617 = vmatpush1.xpose.msra.mxu0 %v2437
    %2618 = vmatprep.subr.mxu0 0.0
    %2619 = vmatpush1.xpose.msra.mxu0 0.0
    %2620 = vmatprep.subr.mxu0 0.0
    %2621 = vmatpush1.xpose.msra.mxu0 0.0
    %2622 = vmatprep.subr.mxu0 0.0
    %2623 = vmatpush1.xpose.msra.mxu0 0.0
    %2624 = vmatprep.subr.mxu0 0.0
    %2625 = vmatpush1.xpose.msra.mxu0 0.0
    %2626 = vmatprep.subr.mxu0 0.0
    %2627 = vmatpush1.xpose.msra.mxu0 0.0
    %2628 = vmatprep.subr.mxu0 0.0
    %2629 = vmatpush1.xpose.msra.mxu0 0.0
    %2630 = vmatprep.subr.mxu0 0.0
    %2631 = vmatpush1.xpose.msra.mxu0 0.0
    %2632 = vmatprep.subr.mxu0 0.0
    %2633 = vmatpush1.xpose.msra.mxu0 0.0
    %2634 = vmatprep.subr.mxu0 0.0
    %2635 = vmatpush1.xpose.msra.mxu0 0.0
    %2636 = vmatprep.subr.mxu0 0.0
    %2637 = vmatpush1.xpose.msra.mxu0 0.0
    %2638 = vmatprep.subr.mxu0 0.0
    %2639 = vmatpush1.xpose.msra.mxu0 0.0
    %2640 = vmatprep.subr.mxu0 0.0
    %2641 = vmatpush1.xpose.msra.mxu0 0.0
    %2642 = vmatprep.subr.mxu0 0.0
    %2643 = vmatpush1.xpose.msra.mxu0 0.0
    %2644 = vmatprep.subr.mxu0 0.0
    %2645 = vmatpush1.xpose.msra.mxu0 0.0
    %2646 = vmatprep.subr.mxu0 0.0
    %2647 = vmatpush1.xpose.msra.mxu0 0.0
    %2648 = vmatprep.subr.mxu0 0.0
    %2649 = vmatpush1.xpose.msra.mxu0 0.0
    %2650 = vmatprep.subr.mxu0 0.0
    %2651 = vmatpush1.xpose.msra.mxu0 0.0
    %2652 = vmatprep.subr.mxu0 0.0
    %2653 = vmatpush1.xpose.msra.mxu0 0.0
    %2654 = vmatprep.subr.mxu0 0.0
    %2655 = vmatpush1.xpose.msra.mxu0 0.0
    %2656 = vmatprep.subr.mxu0 0.0
    %2657 = vmatpush1.xpose.msra.mxu0 0.0
    %2658 = vmatprep.subr.mxu0 0.0
    %2659 = vmatpush1.xpose.msra.mxu0 0.0
    %2660 = vmatprep.subr.mxu0 0.0
    %2661 = vmatpush1.xpose.msra.mxu0 0.0
    %2662 = vmatprep.subr.mxu0 0.0
    %2663 = vmatpush1.xpose.msra.mxu0 0.0
    %2664 = vmatprep.subr.mxu0 0.0
    %2665 = vmatpush1.xpose.msra.mxu0 0.0
    %2666 = vmatprep.subr.mxu0 0.0
    %2667 = vmatpush1.xpose.msra.mxu0 0.0
    %2668 = vmatprep.subr.mxu0 0.0
    %2669 = vmatpush1.xpose.msra.mxu0 0.0
    %2670 = vmatprep.subr.mxu0 0.0
    %2671 = vmatpush1.xpose.msra.mxu0 0.0
    %2672 = vmatprep.subr.mxu0 0.0
    %2673 = vmatpush1.xpose.msra.mxu0 0.0
    %2674 = vmatprep.subr.mxu0 0.0
    %2675 = vmatpush1.xpose.msra.mxu0 0.0
    %2676 = vmatprep.mubr.f32.mxu0 %v2465
    %2677 = vmatmul.mubr.f32.gmra.mrb[0].mxu0 %v2464
    %v2678 = vpop.f32.mrb[0].mxu0
    %v2679 = vadd.f32 %v2609, %v2678
    %v2680 = vpop.f32.mrb[0].mxu0
    %2681 = vdwg.mxu0
    %v2682 = vmul.f32 %v2419, %v2419
    %v2683 = vmul.f32 %v2420, %v2420
    %v2686 = vcombine.high %v2682, %v2682
    %v2688 = vunpack.c.l.s4 1983009808
    %v2689 = vunpack.c.0.s8 %v2688
    %v2690 = vlaneseq
    %v2691 = vshrl.u32 %v2690, 7
    %v2692 = vsub.s32 %v2689, %v2691
    %v2693 = vrot.slane %v2682, %v2692
    %v2695 = vunpack.c.l.s4 1983009808
    %v2696 = vunpack.c.0.s8 %v2695
    %v2697 = vlaneseq
    %v2698 = vshrl.u32 %v2697, 7
    %v2699 = vsub.s32 %v2696, %v2698
    %v2700 = vrot.slane %v2686, %v2699
    %v2701 = vcombine.high %v2693, %v2693
    %v2702 = vcombine.high %v2700, %v2700
    %v2704 = vunpack.c.l.s4 1983009808
    %v2705 = vunpack.c.0.s8 %v2704
    %v2706 = vlaneseq
    %v2707 = vshrl.u32 %v2706, 7
    %v2708 = vsub.s32 %v2705, %v2707
    %v2709 = vrot.slane %v2683, %v2708
    %v2710 = vcombine.high %v2709, %v2709
    %v2717 = vsel %vm888, %v2693, 0.0
    %v2718 = vsel %vm888, %v2701, 0.0
    %v2719 = vadd.f32 %v2717, %v2718
    %v2720 = vsel %vm888, %v2700, 0.0
    %v2721 = vadd.f32 %v2719, %v2720
    %v2722 = vsel %vm888, %v2702, 0.0
    %v2723 = vadd.f32 %v2721, %v2722
    %v2724 = vsel %vm888, %v2709, 0.0
    %v2725 = vadd.f32 %v2723, %v2724
    %v2726 = vsel %vm888, %v2710, 0.0
    %v2727 = vadd.f32 %v2725, %v2726
    %2728 = vadd.xlane.f32.xlu0 %v2727
    %v2729 = vpop.xlane.xlu0 %2728
    %v2730 = vmul.f32 %v2421, %v2421
    %v2731 = vmul.f32 %v2422, %v2422
    %v2732 = vmul.f32 %v2423, %v2423
    %v2733 = vmul.f32 %v2424, %v2424
    %v2734 = vmul.f32 %v2425, %v2425
    %v2735 = vmul.f32 %v2426, %v2426
    %v2736 = vmul.f32 %v2427, %v2427
    %v2737 = vmul.f32 %v2428, %v2428
    %v2738 = vmul.f32 %v2429, %v2429
    %v2739 = vmul.f32 %v2430, %v2430
    %v2740 = vmul.f32 %v2431, %v2431
    %v2741 = vmul.f32 %v2432, %v2432
    %v2742 = vmul.f32 %v2433, %v2433
    %v2743 = vmul.f32 %v2434, %v2434
    %v2744 = vmul.f32 %v2435, %v2435
    %v2745 = vmul.f32 %v2436, %v2436
    %v2746 = vmul.f32 %v2437, %v2437
    %v2747 = vmul.f32 %v2438, %v2438
    %2748 = vmatprep.subr.mxu0 %v2731
    %2749 = vmatpush1.xpose.msra.mxu0 %v2730
    %2750 = vmatprep.subr.mxu0 %v2737
    %2751 = vmatpush1.xpose.msra.mxu0 %v2736
    %2752 = vmatprep.subr.mxu0 %v2743
    %2753 = vmatpush1.xpose.msra.mxu0 %v2742
    %2754 = vmatprep.subr.mxu0 0.0
    %2755 = vmatpush1.xpose.msra.mxu0 0.0
    %2756 = vmatprep.subr.mxu0 0.0
    %2757 = vmatpush1.xpose.msra.mxu0 0.0
    %2758 = vmatprep.subr.mxu0 0.0
    %2759 = vmatpush1.xpose.msra.mxu0 0.0
    %2760 = vmatprep.subr.mxu0 0.0
    %2761 = vmatpush1.xpose.msra.mxu0 0.0
    %2762 = vmatprep.subr.mxu0 0.0
    %2763 = vmatpush1.xpose.msra.mxu0 0.0
    %2764 = vmatprep.subr.mxu0 0.0
    %2765 = vmatpush1.xpose.msra.mxu0 0.0
    %2766 = vmatprep.subr.mxu0 0.0
    %2767 = vmatpush1.xpose.msra.mxu0 0.0
    %2768 = vmatprep.subr.mxu0 0.0
    %2769 = vmatpush1.xpose.msra.mxu0 0.0
    %2770 = vmatprep.subr.mxu0 0.0
    %2771 = vmatpush1.xpose.msra.mxu0 0.0
    %2772 = vmatprep.subr.mxu0 0.0
    %2773 = vmatpush1.xpose.msra.mxu0 0.0
    %2774 = vmatprep.subr.mxu0 0.0
    %2775 = vmatpush1.xpose.msra.mxu0 0.0
    %2776 = vmatprep.subr.mxu0 0.0
    %2777 = vmatpush1.xpose.msra.mxu0 0.0
    %2778 = vmatprep.subr.mxu0 0.0
    %2779 = vmatpush1.xpose.msra.mxu0 0.0
    %2780 = vmatprep.subr.mxu0 0.0
    %2781 = vmatpush1.xpose.msra.mxu0 0.0
    %2782 = vmatprep.subr.mxu0 0.0
    %2783 = vmatpush1.xpose.msra.mxu0 0.0
    %2784 = vmatprep.subr.mxu0 0.0
    %2785 = vmatpush1.xpose.msra.mxu0 0.0
    %2786 = vmatprep.subr.mxu0 0.0
    %2787 = vmatpush1.xpose.msra.mxu0 0.0
    %2788 = vmatprep.subr.mxu0 0.0
    %2789 = vmatpush1.xpose.msra.mxu0 0.0
    %2790 = vmatprep.subr.mxu0 0.0
    %2791 = vmatpush1.xpose.msra.mxu0 0.0
    %2792 = vmatprep.subr.mxu0 0.0
    %2793 = vmatpush1.xpose.msra.mxu0 0.0
    %2794 = vmatprep.subr.mxu0 0.0
    %2795 = vmatpush1.xpose.msra.mxu0 0.0
    %2796 = vmatprep.subr.mxu0 0.0
    %2797 = vmatpush1.xpose.msra.mxu0 0.0
    %2798 = vmatprep.subr.mxu0 0.0
    %2799 = vmatpush1.xpose.msra.mxu0 0.0
    %2800 = vmatprep.subr.mxu0 0.0
    %2801 = vmatpush1.xpose.msra.mxu0 0.0
    %2802 = vmatprep.subr.mxu0 0.0
    %2803 = vmatpush1.xpose.msra.mxu0 0.0
    %2804 = vmatprep.subr.mxu0 0.0
    %2805 = vmatpush1.xpose.msra.mxu0 0.0
    %2806 = vmatprep.subr.mxu0 0.0
    %2807 = vmatpush1.xpose.msra.mxu0 0.0
    %2808 = vmatprep.subr.mxu0 0.0
    %2809 = vmatpush1.xpose.msra.mxu0 0.0
    %2810 = vmatprep.subr.mxu0 0.0
    %2811 = vmatpush1.xpose.msra.mxu0 0.0
    %2812 = vmatprep.mubr.f32.mxu0 1.0
    %2813 = vmatmul.mubr.f32.gmra.mrb[0].mxu0 1.0
    %v2814 = vpop.f32.mrb[0].mxu0
    %v2815 = vadd.f32 0.0, %v2814
    %v2816 = vpop.f32.mrb[0].mxu0
    %2817 = vdwg.mxu0
    %2818 = vmatprep.subr.mxu0 %v2733
    %2819 = vmatpush1.xpose.msra.mxu0 %v2732
    %2820 = vmatprep.subr.mxu0 %v2739
    %2821 = vmatpush1.xpose.msra.mxu0 %v2738
    %2822 = vmatprep.subr.mxu0 %v2745
    %2823 = vmatpush1.xpose.msra.mxu0 %v2744
    %2824 = vmatprep.subr.mxu0 0.0
    %2825 = vmatpush1.xpose.msra.mxu0 0.0
    %2826 = vmatprep.subr.mxu0 0.0
    %2827 = vmatpush1.xpose.msra.mxu0 0.0
    %2828 = vmatprep.subr.mxu0 0.0
    %2829 = vmatpush1.xpose.msra.mxu0 0.0
    %2830 = vmatprep.subr.mxu0 0.0
    %2831 = vmatpush1.xpose.msra.mxu0 0.0
    %2832 = vmatprep.subr.mxu0 0.0
    %2833 = vmatpush1.xpose.msra.mxu0 0.0
    %2834 = vmatprep.subr.mxu0 0.0
    %2835 = vmatpush1.xpose.msra.mxu0 0.0
    %2836 = vmatprep.subr.mxu0 0.0
    %2837 = vmatpush1.xpose.msra.mxu0 0.0
    %2838 = vmatprep.subr.mxu0 0.0
    %2839 = vmatpush1.xpose.msra.mxu0 0.0
    %2840 = vmatprep.subr.mxu0 0.0
    %2841 = vmatpush1.xpose.msra.mxu0 0.0
    %2842 = vmatprep.subr.mxu0 0.0
    %2843 = vmatpush1.xpose.msra.mxu0 0.0
    %2844 = vmatprep.subr.mxu0 0.0
    %2845 = vmatpush1.xpose.msra.mxu0 0.0
    %2846 = vmatprep.subr.mxu0 0.0
    %2847 = vmatpush1.xpose.msra.mxu0 0.0
    %2848 = vmatprep.subr.mxu0 0.0
    %2849 = vmatpush1.xpose.msra.mxu0 0.0
    %2850 = vmatprep.subr.mxu0 0.0
    %2851 = vmatpush1.xpose.msra.mxu0 0.0
    %2852 = vmatprep.subr.mxu0 0.0
    %2853 = vmatpush1.xpose.msra.mxu0 0.0
    %2854 = vmatprep.subr.mxu0 0.0
    %2855 = vmatpush1.xpose.msra.mxu0 0.0
    %2856 = vmatprep.subr.mxu0 0.0
    %2857 = vmatpush1.xpose.msra.mxu0 0.0
    %2858 = vmatprep.subr.mxu0 0.0
    %2859 = vmatpush1.xpose.msra.mxu0 0.0
    %2860 = vmatprep.subr.mxu0 0.0
    %2861 = vmatpush1.xpose.msra.mxu0 0.0
    %2862 = vmatprep.subr.mxu0 0.0
    %2863 = vmatpush1.xpose.msra.mxu0 0.0
    %2864 = vmatprep.subr.mxu0 0.0
    %2865 = vmatpush1.xpose.msra.mxu0 0.0
    %2866 = vmatprep.subr.mxu0 0.0
    %2867 = vmatpush1.xpose.msra.mxu0 0.0
    %2868 = vmatprep.subr.mxu0 0.0
    %2869 = vmatpush1.xpose.msra.mxu0 0.0
    %2870 = vmatprep.subr.mxu0 0.0
    %2871 = vmatpush1.xpose.msra.mxu0 0.0
    %2872 = vmatprep.subr.mxu0 0.0
    %2873 = vmatpush1.xpose.msra.mxu0 0.0
    %2874 = vmatprep.subr.mxu0 0.0
    %2875 = vmatpush1.xpose.msra.mxu0 0.0
    %2876 = vmatprep.subr.mxu0 0.0
    %2877 = vmatpush1.xpose.msra.mxu0 0.0
    %2878 = vmatprep.subr.mxu0 0.0
    %2879 = vmatpush1.xpose.msra.mxu0 0.0
    %2880 = vmatprep.subr.mxu0 0.0
    %2881 = vmatpush1.xpose.msra.mxu0 0.0
    %2882 = vmatprep.mubr.f32.mxu0 1.0
    %2883 = vmatmul.mubr.f32.gmra.mrb[0].mxu0 1.0
    %v2884 = vpop.f32.mrb[0].mxu0
    %v2885 = vadd.f32 %v2815, %v2884
    %v2886 = vpop.f32.mrb[0].mxu0
    %2887 = vdwg.mxu0
    %2888 = vmatprep.subr.mxu0 %v2735
    %2889 = vmatpush1.xpose.msra.mxu0 %v2734
    %2890 = vmatprep.subr.mxu0 %v2741
    %2891 = vmatpush1.xpose.msra.mxu0 %v2740
    %2892 = vmatprep.subr.mxu0 %v2747
    %2893 = vmatpush1.xpose.msra.mxu0 %v2746
    %2894 = vmatprep.subr.mxu0 0.0
    %2895 = vmatpush1.xpose.msra.mxu0 0.0
    %2896 = vmatprep.subr.mxu0 0.0
    %2897 = vmatpush1.xpose.msra.mxu0 0.0
    %2898 = vmatprep.subr.mxu0 0.0
    %2899 = vmatpush1.xpose.msra.mxu0 0.0
    %2900 = vmatprep.subr.mxu0 0.0
    %2901 = vmatpush1.xpose.msra.mxu0 0.0
    %2902 = vmatprep.subr.mxu0 0.0
    %2903 = vmatpush1.xpose.msra.mxu0 0.0
    %2904 = vmatprep.subr.mxu0 0.0
    %2905 = vmatpush1.xpose.msra.mxu0 0.0
    %2906 = vmatprep.subr.mxu0 0.0
    %2907 = vmatpush1.xpose.msra.mxu0 0.0
    %2908 = vmatprep.subr.mxu0 0.0
    %2909 = vmatpush1.xpose.msra.mxu0 0.0
    %2910 = vmatprep.subr.mxu0 0.0
    %2911 = vmatpush1.xpose.msra.mxu0 0.0
    %2912 = vmatprep.subr.mxu0 0.0
    %2913 = vmatpush1.xpose.msra.mxu0 0.0
    %2914 = vmatprep.subr.mxu0 0.0
    %2915 = vmatpush1.xpose.msra.mxu0 0.0
    %2916 = vmatprep.subr.mxu0 0.0
    %2917 = vmatpush1.xpose.msra.mxu0 0.0
    %2918 = vmatprep.subr.mxu0 0.0
    %2919 = vmatpush1.xpose.msra.mxu0 0.0
    %2920 = vmatprep.subr.mxu0 0.0
    %2921 = vmatpush1.xpose.msra.mxu0 0.0
    %2922 = vmatprep.subr.mxu0 0.0
    %2923 = vmatpush1.xpose.msra.mxu0 0.0
    %2924 = vmatprep.subr.mxu0 0.0
    %2925 = vmatpush1.xpose.msra.mxu0 0.0
    %2926 = vmatprep.subr.mxu0 0.0
    %2927 = vmatpush1.xpose.msra.mxu0 0.0
    %2928 = vmatprep.subr.mxu0 0.0
    %2929 = vmatpush1.xpose.msra.mxu0 0.0
    %2930 = vmatprep.subr.mxu0 0.0
    %2931 = vmatpush1.xpose.msra.mxu0 0.0
    %2932 = vmatprep.subr.mxu0 0.0
    %2933 = vmatpush1.xpose.msra.mxu0 0.0
    %2934 = vmatprep.subr.mxu0 0.0
    %2935 = vmatpush1.xpose.msra.mxu0 0.0
    %2936 = vmatprep.subr.mxu0 0.0
    %2937 = vmatpush1.xpose.msra.mxu0 0.0
    %2938 = vmatprep.subr.mxu0 0.0
    %2939 = vmatpush1.xpose.msra.mxu0 0.0
    %2940 = vmatprep.subr.mxu0 0.0
    %2941 = vmatpush1.xpose.msra.mxu0 0.0
    %2942 = vmatprep.subr.mxu0 0.0
    %2943 = vmatpush1.xpose.msra.mxu0 0.0
    %2944 = vmatprep.subr.mxu0 0.0
    %2945 = vmatpush1.xpose.msra.mxu0 0.0
    %2946 = vmatprep.subr.mxu0 0.0
    %2947 = vmatpush1.xpose.msra.mxu0 0.0
    %2948 = vmatprep.subr.mxu0 0.0
    %2949 = vmatpush1.xpose.msra.mxu0 0.0
    %2950 = vmatprep.subr.mxu0 0.0
    %2951 = vmatpush1.xpose.msra.mxu0 0.0
    %2952 = vmatprep.mubr.f32.mxu0 1.0
    %2953 = vmatmul.mubr.f32.gmra.mrb[0].mxu0 1.0
    %v2954 = vpop.f32.mrb[0].mxu0
    %v2955 = vadd.f32 %v2885, %v2954
    %v2956 = vpop.f32.mrb[0].mxu0
    %2957 = vdwg.mxu0
    %v2958 = vlaneseq
    %v2959 = vshrl.u32 %v2958, 7
    %v2960 = vlaneseq
    %v2961 = vand.u32 %v2960, 127
    %v2962 = vmul.u32 %v2959, 10
    %vm2963 = vcmp.ge.s32.totalorder %v2961, %v2962
    %v2964 = vadd.s32 %v2959, 1
    %v2965 = vmul.u32 %v2964, 10
    %vm2966 = vcmp.lt.s32.totalorder %v2961, %v2965
    %vm2967 = vmand %vm2963, %vm2966
    %v2968 = vmax.f32 %v2955, 1e-24
    %v2969 = vrsqrt.pop %v2968
    %v2970 = vlaneseq
    %v2971 = vshrl.u32 %v2970, 7
    %v2972 = vsub.s32 0, %v2971
    %v2973 = vrot.slane %v2969, %v2972
    %v2974 = vmul.f32 %v2679, %v2973
    %v2975 = vsel %vm2967, %v2974, 0.0
    %v2976 = vadd.s32 %v2959, 8
    %v2977 = vadd.s32 %v2959, 16
    %vm2978 = vcmp.lt.s32.totalorder %v2959, 0
    %v2979 = vsub.s32 0, %v2959
    %v2980 = vsel %vm2978, %v2979, %v2959
    %v2981 = vmul.u32.u64.compose %v2980, 3435973837
    %v2982 = vextract.low.u32 %v2981
    %v2983 = vextract.high.u32 %v2981
    %v2984 = vshrl.u32 %v2983, 3
    %v2985 = vmul.u32 %v2984, 10
    %v2986 = vsub.s32 %v2980, %v2985
    %v2987 = vsub.s32 0, %v2986
    %v2988 = vsel %vm2978, %v2987, %v2986
    %vm2989 = vcmp.lt.s32.totalorder %v2976, 0
    %v2990 = vsub.s32 0, %v2976
    %v2991 = vsel %vm2989, %v2990, %v2976
    %v2992 = vmul.u32.u64.compose %v2991, 3435973837
    %v2993 = vextract.low.u32 %v2992
    %v2994 = vextract.high.u32 %v2992
    %v2995 = vshrl.u32 %v2994, 3
    %v2996 = vmul.u32 %v2995, 10
    %v2997 = vsub.s32 %v2991, %v2996
    %v2998 = vsub.s32 0, %v2997
    %v2999 = vsel %vm2989, %v2998, %v2997
    %vm3000 = vcmp.lt.s32.totalorder %v2977, 0
    %v3001 = vsub.s32 0, %v2977
    %v3002 = vsel %vm3000, %v3001, %v2977
    %v3003 = vmul.u32.u64.compose %v3002, 3435973837
    %v3004 = vextract.low.u32 %v3003
    %v3005 = vextract.high.u32 %v3003
    %v3006 = vshrl.u32 %v3005, 3
    %v3007 = vmul.u32 %v3006, 10
    %v3008 = vsub.s32 %v3002, %v3007
    %v3009 = vsub.s32 0, %v3008
    %v3010 = vsel %vm3000, %v3009, %v3008
    %vm3011 = vcmp.ne.s32.totalorder %v2988, 0
    %vm3012 = vcmp.ne.s32.totalorder %v2999, 0
    %vm3013 = vcmp.ne.s32.totalorder %v3010, 0
    %vm3014 = vcmp.lt.s32.totalorder %v2988, 0
    %vm3015 = vcmp.lt.s32.totalorder %v2999, 0
    %vm3016 = vcmp.lt.s32.totalorder %v3010, 0
    %vm3017 = vmand %vm3014, %vm3011
    %vm3018 = vmand %vm3015, %vm3012
    %vm3019 = vmand %vm3016, %vm3013
    %v3020 = vadd.s32 %v2988, 10
    %v3021 = vadd.s32 %v2999, 10
    %v3022 = vadd.s32 %v3010, 10
    %v3023 = vsel %vm3017, %v3020, %v2988
    %v3024 = vsel %vm3018, %v3021, %v2999
    %v3025 = vsel %vm3019, %v3022, %v3010
    %vm3026 = vcmp.eq.s32.totalorder %v3023, %v2961
    %vm3027 = vcmp.eq.s32.totalorder %v3024, %v2961
    %vm3028 = vcmp.eq.s32.totalorder %v3025, %v2961
    %v3029 = vsel %vm3026, 1, 0
    %v3030 = vsel %vm3027, 1, 0
    %v3031 = vsel %vm3028, 1, 0
    %v3032 = vcvt.s32.f32 %v3029
    %v3033 = vcvt.s32.f32 %v3030
    %v3034 = vcvt.s32.f32 %v3031
    %vm3035 = vcmask 162816
    %v3037 = vsel %vm3035, %v2975, 0
    %v3040 = vsel %vm112, %v3034, 0
    %3042 = vmatprep.subr.mxu0 0.0
    %3043 = vmatpush1.msra.mxu0 %v3032
    %3044 = vmatprep.subr.mxu0 0.0
    %3045 = vmatpush1.msra.mxu0 %v3033
    %3046 = vmatprep.subr.mxu0 0.0
    %3047 = vmatpush1.msra.mxu0 %v3040
    %3048 = vmatprep.subr.mxu0 0.0
    %3049 = vmatpush1.msra.mxu0 0.0
    %3050 = vmatprep.subr.mxu0 0.0
    %3051 = vmatpush1.msra.mxu0 0.0
    %3052 = vmatprep.subr.mxu0 0.0
    %3053 = vmatpush1.msra.mxu0 0.0
    %3054 = vmatprep.subr.mxu0 0.0
    %3055 = vmatpush1.msra.mxu0 0.0
    %3056 = vmatprep.subr.mxu0 0.0
    %3057 = vmatpush1.msra.mxu0 0.0
    %3058 = vmatprep.subr.mxu0 0.0
    %3059 = vmatpush1.msra.mxu0 0.0
    %3060 = vmatprep.subr.mxu0 0.0
    %3061 = vmatpush1.msra.mxu0 0.0
    %3062 = vmatprep.subr.mxu0 0.0
    %3063 = vmatpush1.msra.mxu0 0.0
    %3064 = vmatprep.subr.mxu0 0.0
    %3065 = vmatpush1.msra.mxu0 0.0
    %3066 = vmatprep.subr.mxu0 0.0
    %3067 = vmatpush1.msra.mxu0 0.0
    %3068 = vmatprep.subr.mxu0 0.0
    %3069 = vmatpush1.msra.mxu0 0.0
    %3070 = vmatprep.subr.mxu0 0.0
    %3071 = vmatpush1.msra.mxu0 0.0
    %3072 = vmatprep.subr.mxu0 0.0
    %3073 = vmatpush1.msra.mxu0 0.0
    %3074 = vmatprep.subr.mxu0 0.0
    %3075 = vmatpush1.msra.mxu0 0.0
    %3076 = vmatprep.subr.mxu0 0.0
    %3077 = vmatpush1.msra.mxu0 0.0
    %3078 = vmatprep.subr.mxu0 0.0
    %3079 = vmatpush1.msra.mxu0 0.0
    %3080 = vmatprep.subr.mxu0 0.0
    %3081 = vmatpush1.msra.mxu0 0.0
    %3082 = vmatprep.subr.mxu0 0.0
    %3083 = vmatpush1.msra.mxu0 0.0
    %3084 = vmatprep.subr.mxu0 0.0
    %3085 = vmatpush1.msra.mxu0 0.0
    %3086 = vmatprep.subr.mxu0 0.0
    %3087 = vmatpush1.msra.mxu0 0.0
    %3088 = vmatprep.subr.mxu0 0.0
    %3089 = vmatpush1.msra.mxu0 0.0
    %3090 = vmatprep.subr.mxu0 0.0
    %3091 = vmatpush1.msra.mxu0 0.0
    %3092 = vmatprep.subr.mxu0 0.0
    %3093 = vmatpush1.msra.mxu0 0.0
    %3094 = vmatprep.subr.mxu0 0.0
    %3095 = vmatpush1.msra.mxu0 0.0
    %3096 = vmatprep.subr.mxu0 0.0
    %3097 = vmatpush1.msra.mxu0 0.0
    %3098 = vmatprep.subr.mxu0 0.0
    %3099 = vmatpush1.msra.mxu0 0.0
    %3100 = vmatprep.subr.mxu0 0.0
    %3101 = vmatpush1.msra.mxu0 0.0
    %3102 = vmatprep.subr.mxu0 0.0
    %3103 = vmatpush1.msra.mxu0 0.0
    %3104 = vmatprep.subr.mxu0 0.0
    %3105 = vmatpush1.msra.mxu0 0.0
    %3106 = vmatprep.mubr.f32.mxu0 0.0
    %3107 = vmatmul.mubr.f32.gmra.mrb[0].mxu0 %v3037
    %v3108 = vpop.f32.mrb[0].mxu0
    %v3109 = vadd.f32 0.0, %v3108
    %v3110 = vpop.f32.mrb[0].mxu0
    %3111 = vdwg.mxu0
    %s3112 = sld [smem:[#allocation2]]
    %v3113 = vstv %s3112
    %v3114 = vmul.f32 %v3113, 1.442695
    %v3115 = vpow.pop %v3114
    %s3116 = vtos %v3115
    %v3117 = vmax.f32 %v2729, 1e-24
    %v3118 = vrsqrt.pop %v3117
    %v3119 = vstv %s3116
    %v3120 = vmul.f32 %v3119, %v3118
    %v3121 = vmul.f32 %v3120, %v3109
    %vm3122 = vcmask 74752
    %3123 = vst.msk [vmem:[#allocation13] sm:$0x3] %vm3122, %v3121
    // Predicated region
    $region50: #{tpu_custom_call.1} parent=1 // pred_check
      _
    $region51: #{tpu_custom_call.1} parent=1 // pred_check_branch
      %3125 = sbr.rel (0) target = $region53
    $region52: #{tpu_custom_call.1} parent=1 // pred_region
      %s3127 = ssub.s32 768, 768
      %3128 = vsyncadd [#allocation5], %s3127
      %s3130 = sshll.u32 [#allocation12], 4
      %s3131 = int_to_ptr.vmem [resolvable:$true] %s3130
      %3133 = dma.vmem_to_hbm [thread:$0]  %s3131, 768, %s7, [#allocation5]
    $region53: #{tpu_custom_call.1} parent=1 // pred_fallthru
      _
    // Predicated region
    $region54: #{tpu_custom_call.1} parent=1 // pred_check
      _
    $region55: #{tpu_custom_call.1} parent=1 // pred_check_branch
      %3135 = sbr.rel (0) target = $region57
    $region56: #{tpu_custom_call.1} parent=1 // pred_region
      %s3137 = ssub.s32 32, 32
      %3138 = vsyncadd [#allocation14], %s3137
      %s3140 = sshll.u32 [#allocation13], 4
      %s3141 = int_to_ptr.vmem [resolvable:$true] %s3140
      %3143 = dma.vmem_to_hbm [thread:$0]  %s3141, 32, %s8, [#allocation14]
    $region57: #{tpu_custom_call.1} parent=1 // pred_fallthru
      _
    // Predicated region
    $region58: #{tpu_custom_call.1} parent=1 // pred_check
      _
    $region59: #{tpu_custom_call.1} parent=1 // pred_check_branch
      %3145 = sbr.rel (0) target = $region61
    $region60: #{tpu_custom_call.1} parent=1 // pred_region
      %3146 = dma.done [#allocation5], 768
    $region61: #{tpu_custom_call.1} parent=1 // pred_fallthru
      _
    // Predicated region
    $region62: #{tpu_custom_call.1} parent=1 // pred_check
      _
    $region63: #{tpu_custom_call.1} parent=1 // pred_check_branch
      %3148 = sbr.rel (0) target = $region65
    $region64: #{tpu_custom_call.1} parent=1 // pred_region
      %3149 = dma.done [#allocation14], 32
    $region65: #{tpu_custom_call.1} parent=1 // pred_fallthru
      _
    %3150 = vsyncpa [#allocation4], 1
    %3151 = vsyncpa [#allocation7], 1
    %3152 = vsyncpa [#allocation10], 1
    %3153 = vsyncpa [#allocation5], 1
    %3154 = vsyncpa [#allocation14], 1

</llo_original>
